<compile_context>
chip_gen: v5e
topology: v5e:2x2
jax: 0.10.0
libtpu: 0.0.40
codegen_flags: <defaults>
</compile_context>

<pallas_src>
import functools

import jax
import jax.numpy as jnp
from jax.experimental import pallas as pl
from jax.experimental.pallas import tpu as pltpu  # noqa: F401  (TPU backend)

LANES = 128


def _round_up(n, m):
    return ((n + m - 1) // m) * m


# ---------------------------------------------------------------------------
# Kernel 1: conv1 (im2col matmul) + bias + ReLU + 2x2/stride-2 max pool
# ---------------------------------------------------------------------------
def _conv_pool_kernel(p_ref, w_ref, b_ref, o_ref, *, rows):
    """p_ref: (4*rows, Kp) bf16  4 stacked pool-window corners of the patches
       w_ref: (Kp, 128)    bf16  padded (CI*KH*KW, CO) weight
       b_ref: (1, 128)     f32   padded bias row
       o_ref: (rows, 128)  bf16  pooled, ReLU'd activation (lane = channel)
    """
    acc = jnp.dot(p_ref[...], w_ref[...], preferred_element_type=jnp.float32)
    m = jnp.maximum(
        jnp.maximum(acc[0 * rows:1 * rows], acc[1 * rows:2 * rows]),
        jnp.maximum(acc[2 * rows:3 * rows], acc[3 * rows:4 * rows]))
    # maxpool(relu(conv + b)) == relu(max_corners(conv) + b)
    o_ref[...] = jnp.maximum(m + b_ref[...], 0.0).astype(o_ref.dtype)


def conv1_relu_pool(x, w_mat, b_row):
    """x: (B, 3, H, W) NCHW f32 -> (B*PH*PW, 128) bf16, rows=(b,ph,pw), lane=c."""
    B, _, H, W = x.shape
    k = 5
    OH, OW = H - k + 1, W - k + 1
    PH, PW = OH // 2, OW // 2
    R = B * PH * PW
    assert R % 8 == 0, "conv1 pooled-row count must be sublane aligned"
    kp = w_mat.shape[0]

    # im2col, feature-last: (B, OH, OW, C*k*k); feature order (c, kh, kw)
    # matches torch conv weight.reshape(CO, CI*K*K) column order.
    pat = jax.lax.conv_general_dilated_patches(
        x, (k, k), (1, 1), "VALID",
        dimension_numbers=("NCHW", "OIHW", "NHWC"))
    ckk = pat.shape[-1]

    # 4 pool-window corners; no per-corner transpose needed (already NHWC).
    corners = [pat[:, dy:dy + 2 * PH:2, dx:dx + 2 * PW:2, :]
               for dy in (0, 1) for dx in (0, 1)]
    p4 = jnp.stack(corners, axis=0)                      # (4, B, PH, PW, ckk)
    p4 = jnp.pad(p4, ((0, 0),) * 4 + ((0, kp - ckk),))   # one K pad
    p4 = p4.astype(jnp.bfloat16).reshape(4 * R, kp)      # bf16 MXU operand

    out = pl.pallas_call(
        functools.partial(_conv_pool_kernel, rows=R),
        out_shape=jax.ShapeDtypeStruct((R, LANES), jnp.bfloat16),
    )(p4, w_mat, b_row)
    return out, (B, PH, PW)


# ---------------------------------------------------------------------------
# Kernel 2: conv2 + bias + ReLU + pool + fc1 + ReLU + fc2 + ReLU + fc3 (fused)
# ---------------------------------------------------------------------------
def _conv2_mlp_kernel(p_ref, w2_ref, b2_ref, w1_ref, b1_ref,
                      wf2_ref, bf2_ref, wf3_ref, bf3_ref, o_ref,
                      *, npos, bp, batch):
    """p_ref : (4*npos*bp, K2p) bf16  conv2 patch corners, rows=(corner,pos,b)
       w2_ref: (K2p, 128)        bf16
       b2_ref: (1, 128)          f32
       w1_ref: (npos, 128, 128)  bf16  fc1 with the torch flatten absorbed:
                                       w1_ref[pos, c, n] = fc1_w[n, c*npos+pos]
       wf2/bf2, wf3/bf3                fc2 / fc3 (K padded to 128 lanes)
       o_ref : (batch, classes)  f32
    """
    r = npos * bp
    acc = jnp.dot(p_ref[...], w2_ref[...], preferred_element_type=jnp.float32)
    m = jnp.maximum(jnp.maximum(acc[0 * r:1 * r], acc[1 * r:2 * r]),
                    jnp.maximum(acc[2 * r:3 * r], acc[3 * r:4 * r]))
    a = jnp.maximum(m + b2_ref[...], 0.0)                # (npos*bp, 128) f32

    # fc1: one (bp,128)x(128,128) MXU dot per pooled position, f32 accumulate.
    h = jnp.dot(a[0:bp].astype(jnp.bfloat16), w1_ref[0],
                preferred_element_type=jnp.float32)
    for pos in range(1, npos):
        h = h + jnp.dot(a[pos * bp:(pos + 1) * bp].astype(jnp.bfloat16),
                        w1_ref[pos], preferred_element_type=jnp.float32)
    h = jnp.maximum(h + b1_ref[...], 0.0).astype(jnp.bfloat16)
    h = jnp.dot(h, wf2_ref[...], preferred_element_type=jnp.float32)
    h = jnp.maximum(h + bf2_ref[...], 0.0).astype(jnp.bfloat16)
    h = jnp.dot(h, wf3_ref[...], preferred_element_type=jnp.float32) + bf3_ref[...]
    o_ref[...] = h[:batch].astype(o_ref.dtype)           # drop padded batch rows


def conv2_relu_pool_mlp(o1, meta, p):
    B, PH, PW = meta
    c_in = 6                                  # LeNet conv2 input channels
    k = 5
    OH, OW = PH - k + 1, PW - k + 1           # 10, 10
    P2H, P2W = OH // 2, OW // 2               # 5, 5
    npos = P2H * P2W                          # 25
    BP = _round_up(B, 8)                      # batch rows padded to a sublane group
    k2p = p["c2_w"].shape[0]

    # conv1 output is already NHWC-flat (rows=(b,ph,pw), lane=c): one channel
    # slice + reshape gives the conv2 input, no NCHW transpose.
    x1 = o1[:, :c_in].reshape(B, PH, PW, c_in)            # bf16

    # im2col with batch AFTER the spatial dims ("HWNC") so patch rows come out
    # in (pos, b) order with no transpose; feature order is (c, kh, kw).
    pat = jax.lax.conv_general_dilated_patches(
        x1, (k, k), (1, 1), "VALID",
        dimension_numbers=("NHWC", "HWIO", "HWNC"))       # (OH, OW, B, 150)
    ckk = pat.shape[-1]

    corners = [pat[dy:dy + 2 * P2H:2, dx:dx + 2 * P2W:2, :, :]
               for dy in (0, 1) for dx in (0, 1)]
    p4 = jnp.stack(corners, axis=0)                       # (4, P2H, P2W, B, ckk)
    p4 = jnp.pad(p4, ((0, 0), (0, 0), (0, 0), (0, BP - B), (0, k2p - ckk)))
    p4 = p4.reshape(4 * npos * BP, k2p)                   # (800, 256) bf16

    classes = p["fc3_b"].shape[-1]
    return pl.pallas_call(
        functools.partial(_conv2_mlp_kernel, npos=npos, bp=BP, batch=B),
        out_shape=jax.ShapeDtypeStruct((B, classes), jnp.float32),
    )(p4, p["c2_w"], p["c2_b"], p["w1p"], p["fc1_b"],
      p["fc2_w"], p["fc2_b"], p["fc3_w"], p["fc3_b"])


# ---------------------------------------------------------------------------
# One-time parameter repacking (lane-dense, bf16 operands, flatten absorbed)
# ---------------------------------------------------------------------------
def prepare_params(params):
    def prep_conv(w, b):
        co, ci, kh, kw = w.shape
        ckk = ci * kh * kw
        kp = _round_up(ckk, LANES)
        wm = jnp.pad(w.reshape(co, ckk).T, ((0, kp - ckk), (0, LANES - co)))
        br = jnp.pad(b, (0, LANES - co)).reshape(1, LANES)        # bias stays f32
        return wm.astype(jnp.bfloat16), br

    c1_w, c1_b = prep_conv(params["conv1_w"], params["conv1_b"])
    c2_w, c2_b = prep_conv(params["conv2_w"], params["conv2_b"])

    # fc1 (120, 16*5*5): torch .view() flattens (c, ph, pw).  Repack per pooled
    # position so the fused kernel consumes the lane=c activation directly:
    # w1p[pos, c, n] = fc1_w[n, c*25 + pos].
    co2 = params["conv2_w"].shape[0]              # 16
    n1 = params["fc1_w"].shape[0]                 # 120
    npos = params["fc1_w"].shape[1] // co2        # 25
    w1 = params["fc1_w"].reshape(n1, co2, npos).transpose(2, 1, 0)   # (25,16,120)
    w1p = jnp.pad(w1, ((0, 0), (0, LANES - co2), (0, LANES - n1))
                  ).astype(jnp.bfloat16)                             # (25,128,128)
    fc1_b = jnp.pad(params["fc1_b"], (0, LANES - n1)).reshape(1, LANES)

    n2 = params["fc2_w"].shape[0]                 # 84
    fc2_w = jnp.pad(params["fc2_w"].T,
                    ((0, LANES - n1), (0, LANES - n2))).astype(jnp.bfloat16)
    fc2_b = jnp.pad(params["fc2_b"], (0, LANES - n2)).reshape(1, LANES)

    classes = params["fc3_w"].shape[0]
    fc3_w = jnp.pad(params["fc3_w"].T, ((0, LANES - n2), (0, 0))).astype(jnp.bfloat16)
    fc3_b = params["fc3_b"].reshape(1, classes)

    return {"c1_w": c1_w, "c1_b": c1_b, "c2_w": c2_w, "c2_b": c2_b,
            "w1p": w1p, "fc1_b": fc1_b, "fc2_w": fc2_w, "fc2_b": fc2_b,
            "fc3_w": fc3_w, "fc3_b": fc3_b}


# ---------------------------------------------------------------------------
# LeNet forward: 2 Pallas kernel launches total
# ---------------------------------------------------------------------------
def lenet_forward(x, p):
    o1, meta = conv1_relu_pool(x, p["c1_w"], p["c1_b"])   # (B*14*14, 128) bf16
    return conv2_relu_pool_mlp(o1, meta, p)               # (B, classes) f32


def init_params(key, classes):
    ks = jax.random.split(key, 10)

    def xavier_normal(k, shape):
        fan_out = shape[0] * shape[2] * shape[3]
        fan_in = shape[1] * shape[2] * shape[3]
        std = (2.0 / (fan_in + fan_out)) ** 0.5
        return std * jax.random.normal(k, shape, dtype=jnp.float32)

    return {
        "conv1_w": xavier_normal(ks[0], (6, 3, 5, 5)),
        "conv1_b": 0.1 * jax.random.normal(ks[1], (6,), dtype=jnp.float32),
        "conv2_w": xavier_normal(ks[2], (16, 6, 5, 5)),
        "conv2_b": 0.1 * jax.random.normal(ks[3], (16,), dtype=jnp.float32),
        "fc1_w": 0.1 * jax.random.normal(ks[4], (120, 400), dtype=jnp.float32),
        "fc1_b": 0.1 * jax.random.normal(ks[5], (120,), dtype=jnp.float32),
        "fc2_w": 0.1 * jax.random.normal(ks[6], (84, 120), dtype=jnp.float32),
        "fc2_b": 0.1 * jax.random.normal(ks[7], (84,), dtype=jnp.float32),
        "fc3_w": 0.1 * jax.random.normal(ks[8], (classes, 84), dtype=jnp.float32),
        "fc3_b": 0.1 * jax.random.normal(ks[9], (classes,), dtype=jnp.float32),
    }


# ---------------------------------------------------------------------------
# Pure-JAX f32 reference (correctness check)
# ---------------------------------------------------------------------------
def lenet_reference(x, params):
    def conv(x, w, b):
        y = jax.lax.conv_general_dilated(
            x, w, window_strides=(1, 1), padding="VALID",
            dimension_numbers=("NCHW", "OIHW", "NCHW"))
        return jax.nn.relu(y + b.reshape(1, -1, 1, 1))

    def pool(x):
        B, C, H, W = x.shape
        return x.reshape(B, C, H // 2, 2, W // 2, 2).max(axis=(3, 5))

    out = pool(conv(x, params["conv1_w"], params["conv1_b"]))
    out = pool(conv(out, params["conv2_w"], params["conv2_b"]))
    out = out.reshape(out.shape[0], -1)
    out = jax.nn.relu(out @ params["fc1_w"].T + params["fc1_b"])
    out = jax.nn.relu(out @ params["fc2_w"].T + params["fc2_b"])
    return out @ params["fc3_w"].T + params["fc3_b"]


if __name__ == "__main__":
    classes = 10
    key = jax.random.PRNGKey(0)
    k_param, k_x = jax.random.split(key)

    params = init_params(k_param, classes)
    # LeNet's fc1 (16*5*5 inputs) implies 3x32x32 inputs; batch=2.
    x = jax.random.normal(k_x, (2, 3, 32, 32), dtype=jnp.float32)

    prepped = prepare_params(params)          # pad / repack / bf16-cast once
    fwd = jax.jit(lenet_forward)
    out = jax.block_until_ready(fwd(x, prepped))

    ref = jax.block_until_ready(lenet_reference(x, params))
    assert out.shape == (2, classes)
    # bf16 matmul operands (f32 accumulation) -> loosened tolerance vs f32 ref.
    assert jnp.allclose(out, ref, rtol=5e-2, atol=5e-2)

    print("KERNEL_OK")
</pallas_src>

<mosaic_0001>
module attributes {stable_mosaic.version = 11 : i64} {
  func.func @_conv_pool_kernel(%arg0: memref<1568x128xbf16, #tpu.memory_space<vmem>>, %arg1: memref<128x128xbf16, #tpu.memory_space<vmem>>, %arg2: memref<1x128xf32, #tpu.memory_space<vmem>>, %arg3: memref<392x128xbf16, #tpu.memory_space<vmem>>) attributes {dimension_semantics = [], scalar_prefetch = 0 : i64, scratch_operands = 0 : i64, tpu.core_type = #tpu.core_type<tc>} {
    %c0 = arith.constant 0 : index
    %c0_0 = arith.constant 0 : index
    %0 = vector.load %arg0[%c0, %c0_0] : memref<1568x128xbf16, #tpu.memory_space<vmem>>, vector<1568x128xbf16>
    %c0_1 = arith.constant 0 : index
    %c0_2 = arith.constant 0 : index
    %1 = vector.load %arg1[%c0_1, %c0_2] : memref<128x128xbf16, #tpu.memory_space<vmem>>, vector<128x128xbf16>
    %cst = arith.constant dense<0.000000e+00> : vector<1568x128xf32>
    %2 = tpu.matmul %0, %1, %cst {dimension_numbers = #tpu.dot_dimension_numbers<[1], [0], [0], [1], [0, 0, 1, 1], [], []>} : vector<1568x128xbf16>, vector<128x128xbf16>, vector<1568x128xf32> -> vector<1568x128xf32>
    %3 = vector.extract_strided_slice %2 {offsets = [0, 0], sizes = [392, 128], strides = [1, 1]} : vector<1568x128xf32> to vector<392x128xf32>
    %4 = vector.extract_strided_slice %2 {offsets = [392, 0], sizes = [392, 128], strides = [1, 1]} : vector<1568x128xf32> to vector<392x128xf32>
    %5 = arith.maximumf %3, %4 : vector<392x128xf32>
    %6 = vector.extract_strided_slice %2 {offsets = [784, 0], sizes = [392, 128], strides = [1, 1]} : vector<1568x128xf32> to vector<392x128xf32>
    %7 = vector.extract_strided_slice %2 {offsets = [1176, 0], sizes = [392, 128], strides = [1, 1]} : vector<1568x128xf32> to vector<392x128xf32>
    %8 = arith.maximumf %6, %7 : vector<392x128xf32>
    %9 = arith.maximumf %5, %8 : vector<392x128xf32>
    %c0_3 = arith.constant 0 : index
    %c0_4 = arith.constant 0 : index
    %10 = vector.load %arg2[%c0_3, %c0_4] : memref<1x128xf32, #tpu.memory_space<vmem>>, vector<1x128xf32>
    %11 = vector.broadcast %10 : vector<1x128xf32> to vector<392x128xf32>
    %12 = arith.addf %9, %11 : vector<392x128xf32>
    %cst_5 = arith.constant 0.000000e+00 : f32
    %13 = vector.broadcast %cst_5 : f32 to vector<392x128xf32>
    %14 = arith.maximumf %12, %13 : vector<392x128xf32>
    %15 = arith.truncf %14 : vector<392x128xf32> to vector<392x128xbf16>
    %c0_6 = arith.constant 0 : index
    %c0_7 = arith.constant 0 : index
    %16 = vector.load %arg3[%c0_6, %c0_7] : memref<392x128xbf16, #tpu.memory_space<vmem>>, vector<392x128xbf16>
    tpu.vector_store %arg3[%c0_6, %c0_7], %15 {strides = array<i32>} : memref<392x128xbf16, #tpu.memory_space<vmem>>, vector<392x128xbf16>,
    return
  }
}

module attributes {stable_mosaic.version = 11 : i64} {
  func.func @_conv2_mlp_kernel(%arg0: memref<800x256xbf16, #tpu.memory_space<vmem>>, %arg1: memref<256x128xbf16, #tpu.memory_space<vmem>>, %arg2: memref<1x128xf32, #tpu.memory_space<vmem>>, %arg3: memref<25x128x128xbf16, #tpu.memory_space<vmem>>, %arg4: memref<1x128xf32, #tpu.memory_space<vmem>>, %arg5: memref<128x128xbf16, #tpu.memory_space<vmem>>, %arg6: memref<1x128xf32, #tpu.memory_space<vmem>>, %arg7: memref<128x10xbf16, #tpu.memory_space<vmem>>, %arg8: memref<1x10xf32, #tpu.memory_space<vmem>>, %arg9: memref<2x10xf32, #tpu.memory_space<vmem>>) attributes {dimension_semantics = [], scalar_prefetch = 0 : i64, scratch_operands = 0 : i64, tpu.core_type = #tpu.core_type<tc>} {
    %c0 = arith.constant 0 : index
    %c0_0 = arith.constant 0 : index
    %0 = vector.load %arg0[%c0, %c0_0] : memref<800x256xbf16, #tpu.memory_space<vmem>>, vector<800x256xbf16>
    %c0_1 = arith.constant 0 : index
    %c0_2 = arith.constant 0 : index
    %1 = vector.load %arg1[%c0_1, %c0_2] : memref<256x128xbf16, #tpu.memory_space<vmem>>, vector<256x128xbf16>
    %cst = arith.constant dense<0.000000e+00> : vector<800x128xf32>
    %2 = tpu.matmul %0, %1, %cst {dimension_numbers = #tpu.dot_dimension_numbers<[1], [0], [0], [1], [0, 0, 1, 1], [], []>} : vector<800x256xbf16>, vector<256x128xbf16>, vector<800x128xf32> -> vector<800x128xf32>
    %3 = vector.extract_strided_slice %2 {offsets = [0, 0], sizes = [200, 128], strides = [1, 1]} : vector<800x128xf32> to vector<200x128xf32>
    %4 = vector.extract_strided_slice %2 {offsets = [200, 0], sizes = [200, 128], strides = [1, 1]} : vector<800x128xf32> to vector<200x128xf32>
    %5 = arith.maximumf %3, %4 : vector<200x128xf32>
    %6 = vector.extract_strided_slice %2 {offsets = [400, 0], sizes = [200, 128], strides = [1, 1]} : vector<800x128xf32> to vector<200x128xf32>
    %7 = vector.extract_strided_slice %2 {offsets = [600, 0], sizes = [200, 128], strides = [1, 1]} : vector<800x128xf32> to vector<200x128xf32>
    %8 = arith.maximumf %6, %7 : vector<200x128xf32>
    %9 = arith.maximumf %5, %8 : vector<200x128xf32>
    %c0_3 = arith.constant 0 : index
    %c0_4 = arith.constant 0 : index
    %10 = vector.load %arg2[%c0_3, %c0_4] : memref<1x128xf32, #tpu.memory_space<vmem>>, vector<1x128xf32>
    %11 = vector.broadcast %10 : vector<1x128xf32> to vector<200x128xf32>
    %12 = arith.addf %9, %11 : vector<200x128xf32>
    %cst_5 = arith.constant 0.000000e+00 : f32
    %13 = vector.broadcast %cst_5 : f32 to vector<200x128xf32>
    %14 = arith.maximumf %12, %13 : vector<200x128xf32>
    %15 = vector.extract_strided_slice %14 {offsets = [0, 0], sizes = [8, 128], strides = [1, 1]} : vector<200x128xf32> to vector<8x128xf32>
    %16 = arith.truncf %15 : vector<8x128xf32> to vector<8x128xbf16>
    %c0_6 = arith.constant 0 : index
    %c0_7 = arith.constant 0 : index
    %c0_8 = arith.constant 0 : index
    %17 = vector.load %arg3[%c0_6, %c0_7, %c0_8] : memref<25x128x128xbf16, #tpu.memory_space<vmem>>, vector<1x128x128xbf16>
    %18 = vector.shape_cast %17 : vector<1x128x128xbf16> to vector<128x128xbf16>
    %cst_9 = arith.constant dense<0.000000e+00> : vector<8x128xf32>
    %19 = tpu.matmul %16, %18, %cst_9 {dimension_numbers = #tpu.dot_dimension_numbers<[1], [0], [0], [1], [0, 0, 1, 1], [], []>} : vector<8x128xbf16>, vector<128x128xbf16>, vector<8x128xf32> -> vector<8x128xf32>
    %20 = vector.extract_strided_slice %14 {offsets = [8, 0], sizes = [8, 128], strides = [1, 1]} : vector<200x128xf32> to vector<8x128xf32>
    %21 = arith.truncf %20 : vector<8x128xf32> to vector<8x128xbf16>
    %c1 = arith.constant 1 : index
    %c0_10 = arith.constant 0 : index
    %c0_11 = arith.constant 0 : index
    %22 = vector.load %arg3[%c1, %c0_10, %c0_11] : memref<25x128x128xbf16, #tpu.memory_space<vmem>>, vector<1x128x128xbf16>
    %23 = vector.shape_cast %22 : vector<1x128x128xbf16> to vector<128x128xbf16>
    %cst_12 = arith.constant dense<0.000000e+00> : vector<8x128xf32>
    %24 = tpu.matmul %21, %23, %cst_12 {dimension_numbers = #tpu.dot_dimension_numbers<[1], [0], [0], [1], [0, 0, 1, 1], [], []>} : vector<8x128xbf16>, vector<128x128xbf16>, vector<8x128xf32> -> vector<8x128xf32>
    %25 = arith.addf %19, %24 : vector<8x128xf32>
    %26 = vector.extract_strided_slice %14 {offsets = [16, 0], sizes = [8, 128], strides = [1, 1]} : vector<200x128xf32> to vector<8x128xf32>
    %27 = arith.truncf %26 : vector<8x128xf32> to vector<8x128xbf16>
    %c2 = arith.constant 2 : index
    %c0_13 = arith.constant 0 : index
    %c0_14 = arith.constant 0 : index
    %28 = vector.load %arg3[%c2, %c0_13, %c0_14] : memref<25x128x128xbf16, #tpu.memory_space<vmem>>, vector<1x128x128xbf16>
    %29 = vector.shape_cast %28 : vector<1x128x128xbf16> to vector<128x128xbf16>
    %cst_15 = arith.constant dense<0.000000e+00> : vector<8x128xf32>
    %30 = tpu.matmul %27, %29, %cst_15 {dimension_numbers = #tpu.dot_dimension_numbers<[1], [0], [0], [1], [0, 0, 1, 1], [], []>} : vector<8x128xbf16>, vector<128x128xbf16>, vector<8x128xf32> -> vector<8x128xf32>
    %31 = arith.addf %25, %30 : vector<8x128xf32>
    %32 = vector.extract_strided_slice %14 {offsets = [24, 0], sizes = [8, 128], strides = [1, 1]} : vector<200x128xf32> to vector<8x128xf32>
    %33 = arith.truncf %32 : vector<8x128xf32> to vector<8x128xbf16>
    %c3 = arith.constant 3 : index
    %c0_16 = arith.constant 0 : index
    %c0_17 = arith.constant 0 : index
    %34 = vector.load %arg3[%c3, %c0_16, %c0_17] : memref<25x128x128xbf16, #tpu.memory_space<vmem>>, vector<1x128x128xbf16>
    %35 = vector.shape_cast %34 : vector<1x128x128xbf16> to vector<128x128xbf16>
    %cst_18 = arith.constant dense<0.000000e+00> : vector<8x128xf32>
    %36 = tpu.matmul %33, %35, %cst_18 {dimension_numbers = #tpu.dot_dimension_numbers<[1], [0], [0], [1], [0, 0, 1, 1], [], []>} : vector<8x128xbf16>, vector<128x128xbf16>, vector<8x128xf32> -> vector<8x128xf32>
    %37 = arith.addf %31, %36 : vector<8x128xf32>
    %38 = vector.extract_strided_slice %14 {offsets = [32, 0], sizes = [8, 128], strides = [1, 1]} : vector<200x128xf32> to vector<8x128xf32>
    %39 = arith.truncf %38 : vector<8x128xf32> to vector<8x128xbf16>
    %c4 = arith.constant 4 : index
    %c0_19 = arith.constant 0 : index
    %c0_20 = arith.constant 0 : index
    %40 = vector.load %arg3[%c4, %c0_19, %c0_20] : memref<25x128x128xbf16, #tpu.memory_space<vmem>>, vector<1x128x128xbf16>
    %41 = vector.shape_cast %40 : vector<1x128x128xbf16> to vector<128x128xbf16>
    %cst_21 = arith.constant dense<0.000000e+00> : vector<8x128xf32>
    %42 = tpu.matmul %39, %41, %cst_21 {dimension_numbers = #tpu.dot_dimension_numbers<[1], [0], [0], [1], [0, 0, 1, 1], [], []>} : vector<8x128xbf16>, vector<128x128xbf16>, vector<8x128xf32> -> vector<8x128xf32>
    %43 = arith.addf %37, %42 : vector<8x128xf32>
    %44 = vector.extract_strided_slice %14 {offsets = [40, 0], sizes = [8, 128], strides = [1, 1]} : vector<200x128xf32> to vector<8x128xf32>
    %45 = arith.truncf %44 : vector<8x128xf32> to vector<8x128xbf16>
    %c5 = arith.constant 5 : index
    %c0_22 = arith.constant 0 : index
    %c0_23 = arith.constant 0 : index
    %46 = vector.load %arg3[%c5, %c0_22, %c0_23] : memref<25x128x128xbf16, #tpu.memory_space<vmem>>, vector<1x128x128xbf16>
    %47 = vector.shape_cast %46 : vector<1x128x128xbf16> to vector<128x128xbf16>
    %cst_24 = arith.constant dense<0.000000e+00> : vector<8x128xf32>
    %48 = tpu.matmul %45, %47, %cst_24 {dimension_numbers = #tpu.dot_dimension_numbers<[1], [0], [0], [1], [0, 0, 1, 1], [], []>} : vector<8x128xbf16>, vector<128x128xbf16>, vector<8x128xf32> -> vector<8x128xf32>
    %49 = arith.addf %43, %48 : vector<8x128xf32>
    %50 = vector.extract_strided_slice %14 {offsets = [48, 0], sizes = [8, 128], strides = [1, 1]} : vector<200x128xf32> to vector<8x128xf32>
    %51 = arith.truncf %50 : vector<8x128xf32> to vector<8x128xbf16>
    %c6 = arith.constant 6 : index
    %c0_25 = arith.constant 0 : index
    %c0_26 = arith.constant 0 : index
    %52 = vector.load %arg3[%c6, %c0_25, %c0_26] : memref<25x128x128xbf16, #tpu.memory_space<vmem>>, vector<1x128x128xbf16>
    %53 = vector.shape_cast %52 : vector<1x128x128xbf16> to vector<128x128xbf16>
    %cst_27 = arith.constant dense<0.000000e+00> : vector<8x128xf32>
    %54 = tpu.matmul %51, %53, %cst_27 {dimension_numbers = #tpu.dot_dimension_numbers<[1], [0], [0], [1], [0, 0, 1, 1], [], []>} : vector<8x128xbf16>, vector<128x128xbf16>, vector<8x128xf32> -> vector<8x128xf32>
    %55 = arith.addf %49, %54 : vector<8x128xf32>
    %56 = vector.extract_strided_slice %14 {offsets = [56, 0], sizes = [8, 128], strides = [1, 1]} : vector<200x128xf32> to vector<8x128xf32>
    %57 = arith.truncf %56 : vector<8x128xf32> to vector<8x128xbf16>
    %c7 = arith.constant 7 : index
    %c0_28 = arith.constant 0 : index
    %c0_29 = arith.constant 0 : index
    %58 = vector.load %arg3[%c7, %c0_28, %c0_29] : memref<25x128x128xbf16, #tpu.memory_space<vmem>>, vector<1x128x128xbf16>
    %59 = vector.shape_cast %58 : vector<1x128x128xbf16> to vector<128x128xbf16>
    %cst_30 = arith.constant dense<0.000000e+00> : vector<8x128xf32>
    %60 = tpu.matmul %57, %59, %cst_30 {dimension_numbers = #tpu.dot_dimension_numbers<[1], [0], [0], [1], [0, 0, 1, 1], [], []>} : vector<8x128xbf16>, vector<128x128xbf16>, vector<8x128xf32> -> vector<8x128xf32>
    %61 = arith.addf %55, %60 : vector<8x128xf32>
    %62 = vector.extract_strided_slice %14 {offsets = [64, 0], sizes = [8, 128], strides = [1, 1]} : vector<200x128xf32> to vector<8x128xf32>
    %63 = arith.truncf %62 : vector<8x128xf32> to vector<8x128xbf16>
    %c8 = arith.constant 8 : index
    %c0_31 = arith.constant 0 : index
    %c0_32 = arith.constant 0 : index
    %64 = vector.load %arg3[%c8, %c0_31, %c0_32] : memref<25x128x128xbf16, #tpu.memory_space<vmem>>, vector<1x128x128xbf16>
    %65 = vector.shape_cast %64 : vector<1x128x128xbf16> to vector<128x128xbf16>
    %cst_33 = arith.constant dense<0.000000e+00> : vector<8x128xf32>
    %66 = tpu.matmul %63, %65, %cst_33 {dimension_numbers = #tpu.dot_dimension_numbers<[1], [0], [0], [1], [0, 0, 1, 1], [], []>} : vector<8x128xbf16>, vector<128x128xbf16>, vector<8x128xf32> -> vector<8x128xf32>
    %67 = arith.addf %61, %66 : vector<8x128xf32>
    %68 = vector.extract_strided_slice %14 {offsets = [72, 0], sizes = [8, 128], strides = [1, 1]} : vector<200x128xf32> to vector<8x128xf32>
    %69 = arith.truncf %68 : vector<8x128xf32> to vector<8x128xbf16>
    %c9 = arith.constant 9 : index
    %c0_34 = arith.constant 0 : index
    %c0_35 = arith.constant 0 : index
    %70 = vector.load %arg3[%c9, %c0_34, %c0_35] : memref<25x128x128xbf16, #tpu.memory_space<vmem>>, vector<1x128x128xbf16>
    %71 = vector.shape_cast %70 : vector<1x128x128xbf16> to vector<128x128xbf16>
    %cst_36 = arith.constant dense<0.000000e+00> : vector<8x128xf32>
    %72 = tpu.matmul %69, %71, %cst_36 {dimension_numbers = #tpu.dot_dimension_numbers<[1], [0], [0], [1], [0, 0, 1, 1], [], []>} : vector<8x128xbf16>, vector<128x128xbf16>, vector<8x128xf32> -> vector<8x128xf32>
    %73 = arith.addf %67, %72 : vector<8x128xf32>
    %74 = vector.extract_strided_slice %14 {offsets = [80, 0], sizes = [8, 128], strides = [1, 1]} : vector<200x128xf32> to vector<8x128xf32>
    %75 = arith.truncf %74 : vector<8x128xf32> to vector<8x128xbf16>
    %c10 = arith.constant 10 : index
    %c0_37 = arith.constant 0 : index
    %c0_38 = arith.constant 0 : index
    %76 = vector.load %arg3[%c10, %c0_37, %c0_38] : memref<25x128x128xbf16, #tpu.memory_space<vmem>>, vector<1x128x128xbf16>
    %77 = vector.shape_cast %76 : vector<1x128x128xbf16> to vector<128x128xbf16>
    %cst_39 = arith.constant dense<0.000000e+00> : vector<8x128xf32>
    %78 = tpu.matmul %75, %77, %cst_39 {dimension_numbers = #tpu.dot_dimension_numbers<[1], [0], [0], [1], [0, 0, 1, 1], [], []>} : vector<8x128xbf16>, vector<128x128xbf16>, vector<8x128xf32> -> vector<8x128xf32>
    %79 = arith.addf %73, %78 : vector<8x128xf32>
    %80 = vector.extract_strided_slice %14 {offsets = [88, 0], sizes = [8, 128], strides = [1, 1]} : vector<200x128xf32> to vector<8x128xf32>
    %81 = arith.truncf %80 : vector<8x128xf32> to vector<8x128xbf16>
    %c11 = arith.constant 11 : index
    %c0_40 = arith.constant 0 : index
    %c0_41 = arith.constant 0 : index
    %82 = vector.load %arg3[%c11, %c0_40, %c0_41] : memref<25x128x128xbf16, #tpu.memory_space<vmem>>, vector<1x128x128xbf16>
    %83 = vector.shape_cast %82 : vector<1x128x128xbf16> to vector<128x128xbf16>
    %cst_42 = arith.constant dense<0.000000e+00> : vector<8x128xf32>
    %84 = tpu.matmul %81, %83, %cst_42 {dimension_numbers = #tpu.dot_dimension_numbers<[1], [0], [0], [1], [0, 0, 1, 1], [], []>} : vector<8x128xbf16>, vector<128x128xbf16>, vector<8x128xf32> -> vector<8x128xf32>
    %85 = arith.addf %79, %84 : vector<8x128xf32>
    %86 = vector.extract_strided_slice %14 {offsets = [96, 0], sizes = [8, 128], strides = [1, 1]} : vector<200x128xf32> to vector<8x128xf32>
    %87 = arith.truncf %86 : vector<8x128xf32> to vector<8x128xbf16>
    %c12 = arith.constant 12 : index
    %c0_43 = arith.constant 0 : index
    %c0_44 = arith.constant 0 : index
    %88 = vector.load %arg3[%c12, %c0_43, %c0_44] : memref<25x128x128xbf16, #tpu.memory_space<vmem>>, vector<1x128x128xbf16>
    %89 = vector.shape_cast %88 : vector<1x128x128xbf16> to vector<128x128xbf16>
    %cst_45 = arith.constant dense<0.000000e+00> : vector<8x128xf32>
    %90 = tpu.matmul %87, %89, %cst_45 {dimension_numbers = #tpu.dot_dimension_numbers<[1], [0], [0], [1], [0, 0, 1, 1], [], []>} : vector<8x128xbf16>, vector<128x128xbf16>, vector<8x128xf32> -> vector<8x128xf32>
    %91 = arith.addf %85, %90 : vector<8x128xf32>
    %92 = vector.extract_strided_slice %14 {offsets = [104, 0], sizes = [8, 128], strides = [1, 1]} : vector<200x128xf32> to vector<8x128xf32>
    %93 = arith.truncf %92 : vector<8x128xf32> to vector<8x128xbf16>
    %c13 = arith.constant 13 : index
    %c0_46 = arith.constant 0 : index
    %c0_47 = arith.constant 0 : index
    %94 = vector.load %arg3[%c13, %c0_46, %c0_47] : memref<25x128x128xbf16, #tpu.memory_space<vmem>>, vector<1x128x128xbf16>
    %95 = vector.shape_cast %94 : vector<1x128x128xbf16> to vector<128x128xbf16>
    %cst_48 = arith.constant dense<0.000000e+00> : vector<8x128xf32>
    %96 = tpu.matmul %93, %95, %cst_48 {dimension_numbers = #tpu.dot_dimension_numbers<[1], [0], [0], [1], [0, 0, 1, 1], [], []>} : vector<8x128xbf16>, vector<128x128xbf16>, vector<8x128xf32> -> vector<8x128xf32>
    %97 = arith.addf %91, %96 : vector<8x128xf32>
    %98 = vector.extract_strided_slice %14 {offsets = [112, 0], sizes = [8, 128], strides = [1, 1]} : vector<200x128xf32> to vector<8x128xf32>
    %99 = arith.truncf %98 : vector<8x128xf32> to vector<8x128xbf16>
    %c14 = arith.constant 14 : index
    %c0_49 = arith.constant 0 : index
    %c0_50 = arith.constant 0 : index
    %100 = vector.load %arg3[%c14, %c0_49, %c0_50] : memref<25x128x128xbf16, #tpu.memory_space<vmem>>, vector<1x128x128xbf16>
    %101 = vector.shape_cast %100 : vector<1x128x128xbf16> to vector<128x128xbf16>
    %cst_51 = arith.constant dense<0.000000e+00> : vector<8x128xf32>
    %102 = tpu.matmul %99, %101, %cst_51 {dimension_numbers = #tpu.dot_dimension_numbers<[1], [0], [0], [1], [0, 0, 1, 1], [], []>} : vector<8x128xbf16>, vector<128x128xbf16>, vector<8x128xf32> -> vector<8x128xf32>
    %103 = arith.addf %97, %102 : vector<8x128xf32>
    %104 = vector.extract_strided_slice %14 {offsets = [120, 0], sizes = [8, 128], strides = [1, 1]} : vector<200x128xf32> to vector<8x128xf32>
    %105 = arith.truncf %104 : vector<8x128xf32> to vector<8x128xbf16>
    %c15 = arith.constant 15 : index
    %c0_52 = arith.constant 0 : index
    %c0_53 = arith.constant 0 : index
    %106 = vector.load %arg3[%c15, %c0_52, %c0_53] : memref<25x128x128xbf16, #tpu.memory_space<vmem>>, vector<1x128x128xbf16>
    %107 = vector.shape_cast %106 : vector<1x128x128xbf16> to vector<128x128xbf16>
    %cst_54 = arith.constant dense<0.000000e+00> : vector<8x128xf32>
    %108 = tpu.matmul %105, %107, %cst_54 {dimension_numbers = #tpu.dot_dimension_numbers<[1], [0], [0], [1], [0, 0, 1, 1], [], []>} : vector<8x128xbf16>, vector<128x128xbf16>, vector<8x128xf32> -> vector<8x128xf32>
    %109 = arith.addf %103, %108 : vector<8x128xf32>
    %110 = vector.extract_strided_slice %14 {offsets = [128, 0], sizes = [8, 128], strides = [1, 1]} : vector<200x128xf32> to vector<8x128xf32>
    %111 = arith.truncf %110 : vector<8x128xf32> to vector<8x128xbf16>
    %c16 = arith.constant 16 : index
    %c0_55 = arith.constant 0 : index
    %c0_56 = arith.constant 0 : index
    %112 = vector.load %arg3[%c16, %c0_55, %c0_56] : memref<25x128x128xbf16, #tpu.memory_space<vmem>>, vector<1x128x128xbf16>
    %113 = vector.shape_cast %112 : vector<1x128x128xbf16> to vector<128x128xbf16>
    %cst_57 = arith.constant dense<0.000000e+00> : vector<8x128xf32>
    %114 = tpu.matmul %111, %113, %cst_57 {dimension_numbers = #tpu.dot_dimension_numbers<[1], [0], [0], [1], [0, 0, 1, 1], [], []>} : vector<8x128xbf16>, vector<128x128xbf16>, vector<8x128xf32> -> vector<8x128xf32>
    %115 = arith.addf %109, %114 : vector<8x128xf32>
    %116 = vector.extract_strided_slice %14 {offsets = [136, 0], sizes = [8, 128], strides = [1, 1]} : vector<200x128xf32> to vector<8x128xf32>
    %117 = arith.truncf %116 : vector<8x128xf32> to vector<8x128xbf16>
    %c17 = arith.constant 17 : index
    %c0_58 = arith.constant 0 : index
    %c0_59 = arith.constant 0 : index
    %118 = vector.load %arg3[%c17, %c0_58, %c0_59] : memref<25x128x128xbf16, #tpu.memory_space<vmem>>, vector<1x128x128xbf16>
    %119 = vector.shape_cast %118 : vector<1x128x128xbf16> to vector<128x128xbf16>
    %cst_60 = arith.constant dense<0.000000e+00> : vector<8x128xf32>
    %120 = tpu.matmul %117, %119, %cst_60 {dimension_numbers = #tpu.dot_dimension_numbers<[1], [0], [0], [1], [0, 0, 1, 1], [], []>} : vector<8x128xbf16>, vector<128x128xbf16>, vector<8x128xf32> -> vector<8x128xf32>
    %121 = arith.addf %115, %120 : vector<8x128xf32>
    %122 = vector.extract_strided_slice %14 {offsets = [144, 0], sizes = [8, 128], strides = [1, 1]} : vector<200x128xf32> to vector<8x128xf32>
    %123 = arith.truncf %122 : vector<8x128xf32> to vector<8x128xbf16>
    %c18 = arith.constant 18 : index
    %c0_61 = arith.constant 0 : index
    %c0_62 = arith.constant 0 : index
    %124 = vector.load %arg3[%c18, %c0_61, %c0_62] : memref<25x128x128xbf16, #tpu.memory_space<vmem>>, vector<1x128x128xbf16>
    %125 = vector.shape_cast %124 : vector<1x128x128xbf16> to vector<128x128xbf16>
    %cst_63 = arith.constant dense<0.000000e+00> : vector<8x128xf32>
    %126 = tpu.matmul %123, %125, %cst_63 {dimension_numbers = #tpu.dot_dimension_numbers<[1], [0], [0], [1], [0, 0, 1, 1], [], []>} : vector<8x128xbf16>, vector<128x128xbf16>, vector<8x128xf32> -> vector<8x128xf32>
    %127 = arith.addf %121, %126 : vector<8x128xf32>
    %128 = vector.extract_strided_slice %14 {offsets = [152, 0], sizes = [8, 128], strides = [1, 1]} : vector<200x128xf32> to vector<8x128xf32>
    %129 = arith.truncf %128 : vector<8x128xf32> to vector<8x128xbf16>
    %c19 = arith.constant 19 : index
    %c0_64 = arith.constant 0 : index
    %c0_65 = arith.constant 0 : index
    %130 = vector.load %arg3[%c19, %c0_64, %c0_65] : memref<25x128x128xbf16, #tpu.memory_space<vmem>>, vector<1x128x128xbf16>
    %131 = vector.shape_cast %130 : vector<1x128x128xbf16> to vector<128x128xbf16>
    %cst_66 = arith.constant dense<0.000000e+00> : vector<8x128xf32>
    %132 = tpu.matmul %129, %131, %cst_66 {dimension_numbers = #tpu.dot_dimension_numbers<[1], [0], [0], [1], [0, 0, 1, 1], [], []>} : vector<8x128xbf16>, vector<128x128xbf16>, vector<8x128xf32> -> vector<8x128xf32>
    %133 = arith.addf %127, %132 : vector<8x128xf32>
    %134 = vector.extract_strided_slice %14 {offsets = [160, 0], sizes = [8, 128], strides = [1, 1]} : vector<200x128xf32> to vector<8x128xf32>
    %135 = arith.truncf %134 : vector<8x128xf32> to vector<8x128xbf16>
    %c20 = arith.constant 20 : index
    %c0_67 = arith.constant 0 : index
    %c0_68 = arith.constant 0 : index
    %136 = vector.load %arg3[%c20, %c0_67, %c0_68] : memref<25x128x128xbf16, #tpu.memory_space<vmem>>, vector<1x128x128xbf16>
    %137 = vector.shape_cast %136 : vector<1x128x128xbf16> to vector<128x128xbf16>
    %cst_69 = arith.constant dense<0.000000e+00> : vector<8x128xf32>
    %138 = tpu.matmul %135, %137, %cst_69 {dimension_numbers = #tpu.dot_dimension_numbers<[1], [0], [0], [1], [0, 0, 1, 1], [], []>} : vector<8x128xbf16>, vector<128x128xbf16>, vector<8x128xf32> -> vector<8x128xf32>
    %139 = arith.addf %133, %138 : vector<8x128xf32>
    %140 = vector.extract_strided_slice %14 {offsets = [168, 0], sizes = [8, 128], strides = [1, 1]} : vector<200x128xf32> to vector<8x128xf32>
    %141 = arith.truncf %140 : vector<8x128xf32> to vector<8x128xbf16>
    %c21 = arith.constant 21 : index
    %c0_70 = arith.constant 0 : index
    %c0_71 = arith.constant 0 : index
    %142 = vector.load %arg3[%c21, %c0_70, %c0_71] : memref<25x128x128xbf16, #tpu.memory_space<vmem>>, vector<1x128x128xbf16>
    %143 = vector.shape_cast %142 : vector<1x128x128xbf16> to vector<128x128xbf16>
    %cst_72 = arith.constant dense<0.000000e+00> : vector<8x128xf32>
    %144 = tpu.matmul %141, %143, %cst_72 {dimension_numbers = #tpu.dot_dimension_numbers<[1], [0], [0], [1], [0, 0, 1, 1], [], []>} : vector<8x128xbf16>, vector<128x128xbf16>, vector<8x128xf32> -> vector<8x128xf32>
    %145 = arith.addf %139, %144 : vector<8x128xf32>
    %146 = vector.extract_strided_slice %14 {offsets = [176, 0], sizes = [8, 128], strides = [1, 1]} : vector<200x128xf32> to vector<8x128xf32>
    %147 = arith.truncf %146 : vector<8x128xf32> to vector<8x128xbf16>
    %c22 = arith.constant 22 : index
    %c0_73 = arith.constant 0 : index
    %c0_74 = arith.constant 0 : index
    %148 = vector.load %arg3[%c22, %c0_73, %c0_74] : memref<25x128x128xbf16, #tpu.memory_space<vmem>>, vector<1x128x128xbf16>
    %149 = vector.shape_cast %148 : vector<1x128x128xbf16> to vector<128x128xbf16>
    %cst_75 = arith.constant dense<0.000000e+00> : vector<8x128xf32>
    %150 = tpu.matmul %147, %149, %cst_75 {dimension_numbers = #tpu.dot_dimension_numbers<[1], [0], [0], [1], [0, 0, 1, 1], [], []>} : vector<8x128xbf16>, vector<128x128xbf16>, vector<8x128xf32> -> vector<8x128xf32>
    %151 = arith.addf %145, %150 : vector<8x128xf32>
    %152 = vector.extract_strided_slice %14 {offsets = [184, 0], sizes = [8, 128], strides = [1, 1]} : vector<200x128xf32> to vector<8x128xf32>
    %153 = arith.truncf %152 : vector<8x128xf32> to vector<8x128xbf16>
    %c23 = arith.constant 23 : index
    %c0_76 = arith.constant 0 : index
    %c0_77 = arith.constant 0 : index
    %154 = vector.load %arg3[%c23, %c0_76, %c0_77] : memref<25x128x128xbf16, #tpu.memory_space<vmem>>, vector<1x128x128xbf16>
    %155 = vector.shape_cast %154 : vector<1x128x128xbf16> to vector<128x128xbf16>
    %cst_78 = arith.constant dense<0.000000e+00> : vector<8x128xf32>
    %156 = tpu.matmul %153, %155, %cst_78 {dimension_numbers = #tpu.dot_dimension_numbers<[1], [0], [0], [1], [0, 0, 1, 1], [], []>} : vector<8x128xbf16>, vector<128x128xbf16>, vector<8x128xf32> -> vector<8x128xf32>
    %157 = arith.addf %151, %156 : vector<8x128xf32>
    %158 = vector.extract_strided_slice %14 {offsets = [192, 0], sizes = [8, 128], strides = [1, 1]} : vector<200x128xf32> to vector<8x128xf32>
    %159 = arith.truncf %158 : vector<8x128xf32> to vector<8x128xbf16>
    %c24 = arith.constant 24 : index
    %c0_79 = arith.constant 0 : index
    %c0_80 = arith.constant 0 : index
    %160 = vector.load %arg3[%c24, %c0_79, %c0_80] : memref<25x128x128xbf16, #tpu.memory_space<vmem>>, vector<1x128x128xbf16>
    %161 = vector.shape_cast %160 : vector<1x128x128xbf16> to vector<128x128xbf16>
    %cst_81 = arith.constant dense<0.000000e+00> : vector<8x128xf32>
    %162 = tpu.matmul %159, %161, %cst_81 {dimension_numbers = #tpu.dot_dimension_numbers<[1], [0], [0], [1], [0, 0, 1, 1], [], []>} : vector<8x128xbf16>, vector<128x128xbf16>, vector<8x128xf32> -> vector<8x128xf32>
    %163 = arith.addf %157, %162 : vector<8x128xf32>
    %c0_82 = arith.constant 0 : index
    %c0_83 = arith.constant 0 : index
    %164 = vector.load %arg4[%c0_82, %c0_83] : memref<1x128xf32, #tpu.memory_space<vmem>>, vector<1x128xf32>
    %165 = vector.broadcast %164 : vector<1x128xf32> to vector<8x128xf32>
    %166 = arith.addf %163, %165 : vector<8x128xf32>
    %cst_84 = arith.constant 0.000000e+00 : f32
    %167 = vector.broadcast %cst_84 : f32 to vector<8x128xf32>
    %168 = arith.maximumf %166, %167 : vector<8x128xf32>
    %169 = arith.truncf %168 : vector<8x128xf32> to vector<8x128xbf16>
    %c0_85 = arith.constant 0 : index
    %c0_86 = arith.constant 0 : index
    %170 = vector.load %arg5[%c0_85, %c0_86] : memref<128x128xbf16, #tpu.memory_space<vmem>>, vector<128x128xbf16>
    %cst_87 = arith.constant dense<0.000000e+00> : vector<8x128xf32>
    %171 = tpu.matmul %169, %170, %cst_87 {dimension_numbers = #tpu.dot_dimension_numbers<[1], [0], [0], [1], [0, 0, 1, 1], [], []>} : vector<8x128xbf16>, vector<128x128xbf16>, vector<8x128xf32> -> vector<8x128xf32>
    %c0_88 = arith.constant 0 : index
    %c0_89 = arith.constant 0 : index
    %172 = vector.load %arg6[%c0_88, %c0_89] : memref<1x128xf32, #tpu.memory_space<vmem>>, vector<1x128xf32>
    %173 = vector.broadcast %172 : vector<1x128xf32> to vector<8x128xf32>
    %174 = arith.addf %171, %173 : vector<8x128xf32>
    %cst_90 = arith.constant 0.000000e+00 : f32
    %175 = vector.broadcast %cst_90 : f32 to vector<8x128xf32>
    %176 = arith.maximumf %174, %175 : vector<8x128xf32>
    %177 = arith.truncf %176 : vector<8x128xf32> to vector<8x128xbf16>
    %c0_91 = arith.constant 0 : index
    %c0_92 = arith.constant 0 : index
    %178 = vector.load %arg7[%c0_91, %c0_92] : memref<128x10xbf16, #tpu.memory_space<vmem>>, vector<128x10xbf16>
    %cst_93 = arith.constant dense<0.000000e+00> : vector<8x10xf32>
    %179 = tpu.matmul %177, %178, %cst_93 {dimension_numbers = #tpu.dot_dimension_numbers<[1], [0], [0], [1], [0, 0, 1, 1], [], []>} : vector<8x128xbf16>, vector<128x10xbf16>, vector<8x10xf32> -> vector<8x10xf32>
    %c0_94 = arith.constant 0 : index
    %c0_95 = arith.constant 0 : index
    %180 = vector.load %arg8[%c0_94, %c0_95] : memref<1x10xf32, #tpu.memory_space<vmem>>, vector<1x10xf32>
    %181 = vector.broadcast %180 : vector<1x10xf32> to vector<8x10xf32>
    %182 = arith.addf %179, %181 : vector<8x10xf32>
    %183 = vector.extract_strided_slice %182 {offsets = [0, 0], sizes = [2, 10], strides = [1, 1]} : vector<8x10xf32> to vector<2x10xf32>
    %c0_96 = arith.constant 0 : index
    %c0_97 = arith.constant 0 : index
    %184 = vector.load %arg9[%c0_96, %c0_97] : memref<2x10xf32, #tpu.memory_space<vmem>>, vector<2x10xf32>
    tpu.vector_store %arg9[%c0_96, %c0_97], %183 {strides = array<i32>} : memref<2x10xf32, #tpu.memory_space<vmem>>, vector<2x10xf32>,
    return
  }
}

</mosaic_0001>

<llo_original>
// kernel: lenet_forward.2
$region0: #{lenet_forward.2}
  #allocation0 [shape = 'u32[]', space=smem, size = 0x4, offset = 0x4, fixed_abs, tag = 'smem constant byte address 0x4 - core index']
  #allocation1 [shape = 'u32[72,128]{1,0:T(1,128)}', space=vmem, size = 0x9000, scoped, tag = 'internal scratch']
  %s0 = inlined_call_operand.vmem [shape: bf16[1568,128], index: 0, kind: input, shape index: {}]
  %s1 = inlined_call_operand.vmem [shape: bf16[128,128], index: 1, kind: input, shape index: {}]
  %s2 = inlined_call_operand.vmem [shape: f32[1,128], index: 2, kind: input, shape index: {}]
  %s3 = inlined_call_operand.vmem [shape: bf16[392,128], index: 3, kind: output, shape index: {}]
  %s4 = sld [smem:[#allocation0]]
  $region22: #{lenet_forward.2} parent=0
    _
  %s6 = ssub.s32 1, %s4
  %s7 = scalar_select 0, %s6, %s4
  // Predicated region
  $region2: #{lenet_forward.2} parent=0 // pred_check
    _
  $region3: #{lenet_forward.2} parent=0 // pred_check_branch
    %9 = sbr.rel (0) target = $region5
  $region4: #{lenet_forward.2} parent=0 // pred_region
    _
  $region5: #{lenet_forward.2} parent=0 // pred_fallthru
    _
  // Predicated region
  $region6: #{lenet_forward.2} parent=0 // pred_check
    _
  $region7: #{lenet_forward.2} parent=0 // pred_check_branch
    %11 = sbr.rel (0) target = $region9
  $region8: #{lenet_forward.2} parent=0 // pred_region
    _
  $region9: #{lenet_forward.2} parent=0 // pred_fallthru
    _
  // Predicated region
  $region10: #{lenet_forward.2} parent=0 // pred_check
    _
  $region11: #{lenet_forward.2} parent=0 // pred_check_branch
    %13 = sbr.rel (0) target = $region13
  $region12: #{lenet_forward.2} parent=0 // pred_region
    _
  $region13: #{lenet_forward.2} parent=0 // pred_fallthru
    _
  %v14 = vld [vmem:[%s0] sm:$0xf]
  %v15 = vld [vmem:[%s0 + $0x4] sm:$0xf]
  %v16 = vld [vmem:[%s0 + $0x8] sm:$0xf]
  %v17 = vld [vmem:[%s0 + $0xc] sm:$0xf]
  %v18 = vld [vmem:[%s0 + $0x10] sm:$0xf]
  %v19 = vld [vmem:[%s0 + $0x14] sm:$0xf]
  %v20 = vld [vmem:[%s0 + $0x18] sm:$0xf]
  %v21 = vld [vmem:[%s0 + $0x1c] sm:$0xf]
  %v22 = vld [vmem:[%s0 + $0x20] sm:$0xf]
  %v23 = vld [vmem:[%s0 + $0x24] sm:$0xf]
  %v24 = vld [vmem:[%s0 + $0x28] sm:$0xf]
  %v25 = vld [vmem:[%s0 + $0x2c] sm:$0xf]
  %v26 = vld [vmem:[%s0 + $0x30] sm:$0xf]
  %v27 = vld [vmem:[%s0 + $0x34] sm:$0xf]
  %v28 = vld [vmem:[%s0 + $0x38] sm:$0xf]
  %v29 = vld [vmem:[%s0 + $0x3c] sm:$0xf]
  %v30 = vld [vmem:[%s0 + $0x40] sm:$0xf]
  %v31 = vld [vmem:[%s0 + $0x44] sm:$0xf]
  %v32 = vld [vmem:[%s0 + $0x48] sm:$0xf]
  %v33 = vld [vmem:[%s0 + $0x4c] sm:$0xf]
  %v34 = vld [vmem:[%s0 + $0x50] sm:$0xf]
  %v35 = vld [vmem:[%s0 + $0x54] sm:$0xf]
  %v36 = vld [vmem:[%s0 + $0x58] sm:$0xf]
  %v37 = vld [vmem:[%s0 + $0x5c] sm:$0xf]
  %v38 = vld [vmem:[%s0 + $0x60] sm:$0xf]
  %v39 = vld [vmem:[%s0 + $0x64] sm:$0xf]
  %v40 = vld [vmem:[%s0 + $0x68] sm:$0xf]
  %v41 = vld [vmem:[%s0 + $0x6c] sm:$0xf]
  %v42 = vld [vmem:[%s0 + $0x70] sm:$0xf]
  %v43 = vld [vmem:[%s0 + $0x74] sm:$0xf]
  %v44 = vld [vmem:[%s0 + $0x78] sm:$0xf]
  %v45 = vld [vmem:[%s0 + $0x7c] sm:$0xf]
  %v46 = vld [vmem:[%s0 + $0x80] sm:$0xf]
  %v47 = vld [vmem:[%s0 + $0x84] sm:$0xf]
  %v48 = vld [vmem:[%s0 + $0x88] sm:$0xf]
  %v49 = vld [vmem:[%s0 + $0x8c] sm:$0xf]
  %v50 = vld [vmem:[%s0 + $0x90] sm:$0xf]
  %v51 = vld [vmem:[%s0 + $0x94] sm:$0xf]
  %v52 = vld [vmem:[%s0 + $0x98] sm:$0xf]
  %v53 = vld [vmem:[%s0 + $0x9c] sm:$0xf]
  %v54 = vld [vmem:[%s0 + $0xa0] sm:$0xf]
  %v55 = vld [vmem:[%s0 + $0xa4] sm:$0xf]
  %v56 = vld [vmem:[%s0 + $0xa8] sm:$0xf]
  %v57 = vld [vmem:[%s0 + $0xac] sm:$0xf]
  %v58 = vld [vmem:[%s0 + $0xb0] sm:$0xf]
  %v59 = vld [vmem:[%s0 + $0xb4] sm:$0xf]
  %v60 = vld [vmem:[%s0 + $0xb8] sm:$0xf]
  %v61 = vld [vmem:[%s0 + $0xbc] sm:$0xf]
  %v62 = vld [vmem:[%s0 + $0xc0] sm:$0xf]
  %v63 = vld [vmem:[%s0 + $0xc4] sm:$0xf]
  %v64 = vld [vmem:[%s0 + $0xc8] sm:$0xf]
  %v65 = vld [vmem:[%s0 + $0xcc] sm:$0xf]
  %v66 = vld [vmem:[%s0 + $0xd0] sm:$0xf]
  %v67 = vld [vmem:[%s0 + $0xd4] sm:$0xf]
  %v68 = vld [vmem:[%s0 + $0xd8] sm:$0xf]
  %v69 = vld [vmem:[%s0 + $0xdc] sm:$0xf]
  %v70 = vld [vmem:[%s0 + $0xe0] sm:$0xf]
  %v71 = vld [vmem:[%s0 + $0xe4] sm:$0xf]
  %v72 = vld [vmem:[%s0 + $0xe8] sm:$0xf]
  %v73 = vld [vmem:[%s0 + $0xec] sm:$0xf]
  %v74 = vld [vmem:[%s0 + $0xf0] sm:$0xf]
  %v75 = vld [vmem:[%s0 + $0xf4] sm:$0xf]
  %v76 = vld [vmem:[%s0 + $0xf8] sm:$0xf]
  %v77 = vld [vmem:[%s0 + $0xfc] sm:$0xf]
  %v78 = vld [vmem:[%s0 + $0x100] sm:$0xf]
  %v79 = vld [vmem:[%s0 + $0x104] sm:$0xf]
  %v80 = vld [vmem:[%s0 + $0x108] sm:$0xf]
  %v81 = vld [vmem:[%s0 + $0x10c] sm:$0xf]
  %v82 = vld [vmem:[%s0 + $0x110] sm:$0xf]
  %v83 = vld [vmem:[%s0 + $0x114] sm:$0xf]
  %v84 = vld [vmem:[%s0 + $0x118] sm:$0xf]
  %v85 = vld [vmem:[%s0 + $0x11c] sm:$0xf]
  %v86 = vld [vmem:[%s0 + $0x120] sm:$0xf]
  %v87 = vld [vmem:[%s0 + $0x124] sm:$0xf]
  %v88 = vld [vmem:[%s0 + $0x128] sm:$0xf]
  %v89 = vld [vmem:[%s0 + $0x12c] sm:$0xf]
  %v90 = vld [vmem:[%s0 + $0x130] sm:$0xf]
  %v91 = vld [vmem:[%s0 + $0x134] sm:$0xf]
  %v92 = vld [vmem:[%s0 + $0x138] sm:$0xf]
  %v93 = vld [vmem:[%s0 + $0x13c] sm:$0xf]
  %v94 = vld [vmem:[%s0 + $0x140] sm:$0xf]
  %v95 = vld [vmem:[%s0 + $0x144] sm:$0xf]
  %v96 = vld [vmem:[%s0 + $0x148] sm:$0xf]
  %v97 = vld [vmem:[%s0 + $0x14c] sm:$0xf]
  %v98 = vld [vmem:[%s0 + $0x150] sm:$0xf]
  %v99 = vld [vmem:[%s0 + $0x154] sm:$0xf]
  %v100 = vld [vmem:[%s0 + $0x158] sm:$0xf]
  %v101 = vld [vmem:[%s0 + $0x15c] sm:$0xf]
  %v102 = vld [vmem:[%s0 + $0x160] sm:$0xf]
  %v103 = vld [vmem:[%s0 + $0x164] sm:$0xf]
  %v104 = vld [vmem:[%s0 + $0x168] sm:$0xf]
  %v105 = vld [vmem:[%s0 + $0x16c] sm:$0xf]
  %v106 = vld [vmem:[%s0 + $0x170] sm:$0xf]
  %v107 = vld [vmem:[%s0 + $0x174] sm:$0xf]
  %v108 = vld [vmem:[%s0 + $0x178] sm:$0xf]
  %v109 = vld [vmem:[%s0 + $0x17c] sm:$0xf]
  %v110 = vld [vmem:[%s0 + $0x180] sm:$0xf]
  %v111 = vld [vmem:[%s0 + $0x184] sm:$0xf]
  %v112 = vld [vmem:[%s0 + $0x188] sm:$0xf]
  %v113 = vld [vmem:[%s0 + $0x18c] sm:$0xf]
  %v114 = vld [vmem:[%s0 + $0x190] sm:$0xf]
  %v115 = vld [vmem:[%s0 + $0x194] sm:$0xf]
  %v116 = vld [vmem:[%s0 + $0x198] sm:$0xf]
  %v117 = vld [vmem:[%s0 + $0x19c] sm:$0xf]
  %v118 = vld [vmem:[%s0 + $0x1a0] sm:$0xf]
  %v119 = vld [vmem:[%s0 + $0x1a4] sm:$0xf]
  %v120 = vld [vmem:[%s0 + $0x1a8] sm:$0xf]
  %v121 = vld [vmem:[%s0 + $0x1ac] sm:$0xf]
  %v122 = vld [vmem:[%s0 + $0x1b0] sm:$0xf]
  %v123 = vld [vmem:[%s0 + $0x1b4] sm:$0xf]
  %v124 = vld [vmem:[%s0 + $0x1b8] sm:$0xf]
  %v125 = vld [vmem:[%s0 + $0x1bc] sm:$0xf]
  %v126 = vld [vmem:[%s0 + $0x1c0] sm:$0xf]
  %v127 = vld [vmem:[%s0 + $0x1c4] sm:$0xf]
  %v128 = vld [vmem:[%s0 + $0x1c8] sm:$0xf]
  %v129 = vld [vmem:[%s0 + $0x1cc] sm:$0xf]
  %v130 = vld [vmem:[%s0 + $0x1d0] sm:$0xf]
  %v131 = vld [vmem:[%s0 + $0x1d4] sm:$0xf]
  %v132 = vld [vmem:[%s0 + $0x1d8] sm:$0xf]
  %v133 = vld [vmem:[%s0 + $0x1dc] sm:$0xf]
  %v134 = vld [vmem:[%s0 + $0x1e0] sm:$0xf]
  %v135 = vld [vmem:[%s0 + $0x1e4] sm:$0xf]
  %v136 = vld [vmem:[%s0 + $0x1e8] sm:$0xf]
  %v137 = vld [vmem:[%s0 + $0x1ec] sm:$0xf]
  %v138 = vld [vmem:[%s0 + $0x1f0] sm:$0xf]
  %v139 = vld [vmem:[%s0 + $0x1f4] sm:$0xf]
  %v140 = vld [vmem:[%s0 + $0x1f8] sm:$0xf]
  %v141 = vld [vmem:[%s0 + $0x1fc] sm:$0xf]
  %v142 = vld [vmem:[%s0 + $0x200] sm:$0xf]
  %v143 = vld [vmem:[%s0 + $0x204] sm:$0xf]
  %v144 = vld [vmem:[%s0 + $0x208] sm:$0xf]
  %v145 = vld [vmem:[%s0 + $0x20c] sm:$0xf]
  %v146 = vld [vmem:[%s0 + $0x210] sm:$0xf]
  %v147 = vld [vmem:[%s0 + $0x214] sm:$0xf]
  %v148 = vld [vmem:[%s0 + $0x218] sm:$0xf]
  %v149 = vld [vmem:[%s0 + $0x21c] sm:$0xf]
  %v150 = vld [vmem:[%s0 + $0x220] sm:$0xf]
  %v151 = vld [vmem:[%s0 + $0x224] sm:$0xf]
  %v152 = vld [vmem:[%s0 + $0x228] sm:$0xf]
  %v153 = vld [vmem:[%s0 + $0x22c] sm:$0xf]
  %v154 = vld [vmem:[%s0 + $0x230] sm:$0xf]
  %v155 = vld [vmem:[%s0 + $0x234] sm:$0xf]
  %v156 = vld [vmem:[%s0 + $0x238] sm:$0xf]
  %v157 = vld [vmem:[%s0 + $0x23c] sm:$0xf]
  %v158 = vld [vmem:[%s0 + $0x240] sm:$0xf]
  %v159 = vld [vmem:[%s0 + $0x244] sm:$0xf]
  %v160 = vld [vmem:[%s0 + $0x248] sm:$0xf]
  %v161 = vld [vmem:[%s0 + $0x24c] sm:$0xf]
  %v162 = vld [vmem:[%s0 + $0x250] sm:$0xf]
  %v163 = vld [vmem:[%s0 + $0x254] sm:$0xf]
  %v164 = vld [vmem:[%s0 + $0x258] sm:$0xf]
  %v165 = vld [vmem:[%s0 + $0x25c] sm:$0xf]
  %v166 = vld [vmem:[%s0 + $0x260] sm:$0xf]
  %v167 = vld [vmem:[%s0 + $0x264] sm:$0xf]
  %v168 = vld [vmem:[%s0 + $0x268] sm:$0xf]
  %v169 = vld [vmem:[%s0 + $0x26c] sm:$0xf]
  %v170 = vld [vmem:[%s0 + $0x270] sm:$0xf]
  %v171 = vld [vmem:[%s0 + $0x274] sm:$0xf]
  %v172 = vld [vmem:[%s0 + $0x278] sm:$0xf]
  %v173 = vld [vmem:[%s0 + $0x27c] sm:$0xf]
  %v174 = vld [vmem:[%s0 + $0x280] sm:$0xf]
  %v175 = vld [vmem:[%s0 + $0x284] sm:$0xf]
  %v176 = vld [vmem:[%s0 + $0x288] sm:$0xf]
  %v177 = vld [vmem:[%s0 + $0x28c] sm:$0xf]
  %v178 = vld [vmem:[%s0 + $0x290] sm:$0xf]
  %v179 = vld [vmem:[%s0 + $0x294] sm:$0xf]
  %v180 = vld [vmem:[%s0 + $0x298] sm:$0xf]
  %v181 = vld [vmem:[%s0 + $0x29c] sm:$0xf]
  %v182 = vld [vmem:[%s0 + $0x2a0] sm:$0xf]
  %v183 = vld [vmem:[%s0 + $0x2a4] sm:$0xf]
  %v184 = vld [vmem:[%s0 + $0x2a8] sm:$0xf]
  %v185 = vld [vmem:[%s0 + $0x2ac] sm:$0xf]
  %v186 = vld [vmem:[%s0 + $0x2b0] sm:$0xf]
  %v187 = vld [vmem:[%s0 + $0x2b4] sm:$0xf]
  %v188 = vld [vmem:[%s0 + $0x2b8] sm:$0xf]
  %v189 = vld [vmem:[%s0 + $0x2bc] sm:$0xf]
  %v190 = vld [vmem:[%s0 + $0x2c0] sm:$0xf]
  %v191 = vld [vmem:[%s0 + $0x2c4] sm:$0xf]
  %v192 = vld [vmem:[%s0 + $0x2c8] sm:$0xf]
  %v193 = vld [vmem:[%s0 + $0x2cc] sm:$0xf]
  %v194 = vld [vmem:[%s0 + $0x2d0] sm:$0xf]
  %v195 = vld [vmem:[%s0 + $0x2d4] sm:$0xf]
  %v196 = vld [vmem:[%s0 + $0x2d8] sm:$0xf]
  %v197 = vld [vmem:[%s0 + $0x2dc] sm:$0xf]
  %v198 = vld [vmem:[%s0 + $0x2e0] sm:$0xf]
  %v199 = vld [vmem:[%s0 + $0x2e4] sm:$0xf]
  %v200 = vld [vmem:[%s0 + $0x2e8] sm:$0xf]
  %v201 = vld [vmem:[%s0 + $0x2ec] sm:$0xf]
  %v202 = vld [vmem:[%s0 + $0x2f0] sm:$0xf]
  %v203 = vld [vmem:[%s0 + $0x2f4] sm:$0xf]
  %v204 = vld [vmem:[%s0 + $0x2f8] sm:$0xf]
  %v205 = vld [vmem:[%s0 + $0x2fc] sm:$0xf]
  %v206 = vld [vmem:[%s0 + $0x300] sm:$0xf]
  %v207 = vld [vmem:[%s0 + $0x304] sm:$0xf]
  %v208 = vld [vmem:[%s0 + $0x308] sm:$0xf]
  %v209 = vld [vmem:[%s0 + $0x30c] sm:$0xf]
  %v210 = vld [vmem:[%s1] sm:$0xf]
  %v211 = vld [vmem:[%s1 + $0x4] sm:$0xf]
  %v212 = vld [vmem:[%s1 + $0x8] sm:$0xf]
  %v213 = vld [vmem:[%s1 + $0xc] sm:$0xf]
  %v214 = vld [vmem:[%s1 + $0x10] sm:$0xf]
  %v215 = vld [vmem:[%s1 + $0x14] sm:$0xf]
  %v216 = vld [vmem:[%s1 + $0x18] sm:$0xf]
  %v217 = vld [vmem:[%s1 + $0x1c] sm:$0xf]
  %v218 = vld [vmem:[%s1 + $0x20] sm:$0xf]
  %v219 = vld [vmem:[%s1 + $0x24] sm:$0xf]
  %v220 = vld [vmem:[%s1 + $0x28] sm:$0xf]
  %v221 = vld [vmem:[%s1 + $0x2c] sm:$0xf]
  %v222 = vld [vmem:[%s1 + $0x30] sm:$0xf]
  %v223 = vld [vmem:[%s1 + $0x34] sm:$0xf]
  %v224 = vld [vmem:[%s1 + $0x38] sm:$0xf]
  %v225 = vld [vmem:[%s1 + $0x3c] sm:$0xf]
  %v422 = vunpack.c.l.b16 %v14
  %v423 = vunpack.c.l.b16 %v15
  %v424 = vunpack.c.l.b16 %v16
  %v425 = vunpack.c.l.b16 %v17
  %v426 = vunpack.c.l.b16 %v18
  %v427 = vunpack.c.l.b16 %v19
  %v428 = vunpack.c.l.b16 %v20
  %v429 = vunpack.c.l.b16 %v21
  %v430 = vunpack.c.l.b16 %v22
  %v431 = vunpack.c.l.b16 %v23
  %v432 = vunpack.c.l.b16 %v24
  %v433 = vunpack.c.l.b16 %v25
  %v434 = vunpack.c.l.b16 %v26
  %v435 = vunpack.c.l.b16 %v27
  %v436 = vunpack.c.l.b16 %v28
  %v437 = vunpack.c.l.b16 %v29
  %v438 = vunpack.c.l.b16 %v30
  %v439 = vunpack.c.l.b16 %v31
  %v440 = vunpack.c.l.b16 %v32
  %v441 = vunpack.c.l.b16 %v33
  %v442 = vunpack.c.l.b16 %v34
  %v443 = vunpack.c.l.b16 %v35
  %v444 = vunpack.c.l.b16 %v36
  %v445 = vunpack.c.l.b16 %v37
  %v446 = vunpack.c.l.b16 %v38
  %v447 = vunpack.c.l.b16 %v39
  %v448 = vunpack.c.l.b16 %v40
  %v449 = vunpack.c.l.b16 %v41
  %v450 = vunpack.c.l.b16 %v42
  %v451 = vunpack.c.l.b16 %v43
  %v452 = vunpack.c.l.b16 %v44
  %v453 = vunpack.c.l.b16 %v45
  %v454 = vunpack.c.l.b16 %v46
  %v455 = vunpack.c.l.b16 %v47
  %v456 = vunpack.c.l.b16 %v48
  %v457 = vunpack.c.l.b16 %v49
  %v458 = vunpack.c.l.b16 %v50
  %v459 = vunpack.c.l.b16 %v51
  %v460 = vunpack.c.l.b16 %v52
  %v461 = vunpack.c.l.b16 %v53
  %v462 = vunpack.c.l.b16 %v54
  %v463 = vunpack.c.l.b16 %v55
  %v464 = vunpack.c.l.b16 %v56
  %v465 = vunpack.c.l.b16 %v57
  %v466 = vunpack.c.l.b16 %v58
  %v467 = vunpack.c.l.b16 %v59
  %v468 = vunpack.c.l.b16 %v60
  %v469 = vunpack.c.l.b16 %v61
  %v470 = vunpack.c.l.b16 %v62
  %v471 = vunpack.c.l.b16 %v63
  %v472 = vunpack.c.l.b16 %v64
  %v473 = vunpack.c.l.b16 %v65
  %v474 = vunpack.c.l.b16 %v66
  %v475 = vunpack.c.l.b16 %v67
  %v476 = vunpack.c.l.b16 %v68
  %v477 = vunpack.c.l.b16 %v69
  %v478 = vunpack.c.l.b16 %v70
  %v479 = vunpack.c.l.b16 %v71
  %v480 = vunpack.c.l.b16 %v72
  %v481 = vunpack.c.l.b16 %v73
  %v482 = vunpack.c.l.b16 %v74
  %v483 = vunpack.c.l.b16 %v75
  %v484 = vunpack.c.l.b16 %v76
  %v485 = vunpack.c.l.b16 %v77
  %v486 = vunpack.c.l.b16 %v78
  %v487 = vunpack.c.l.b16 %v79
  %v488 = vunpack.c.l.b16 %v80
  %v489 = vunpack.c.l.b16 %v81
  %v490 = vunpack.c.l.b16 %v82
  %v491 = vunpack.c.l.b16 %v83
  %v492 = vunpack.c.l.b16 %v84
  %v493 = vunpack.c.l.b16 %v85
  %v494 = vunpack.c.l.b16 %v86
  %v495 = vunpack.c.l.b16 %v87
  %v496 = vunpack.c.l.b16 %v88
  %v497 = vunpack.c.l.b16 %v89
  %v498 = vunpack.c.l.b16 %v90
  %v499 = vunpack.c.l.b16 %v91
  %v500 = vunpack.c.l.b16 %v92
  %v501 = vunpack.c.l.b16 %v93
  %v502 = vunpack.c.l.b16 %v94
  %v503 = vunpack.c.l.b16 %v95
  %v504 = vunpack.c.l.b16 %v96
  %v505 = vunpack.c.l.b16 %v97
  %v506 = vunpack.c.l.b16 %v98
  %v507 = vunpack.c.l.b16 %v99
  %v508 = vunpack.c.l.b16 %v100
  %v509 = vunpack.c.l.b16 %v101
  %v510 = vunpack.c.l.b16 %v102
  %v511 = vunpack.c.l.b16 %v103
  %v512 = vunpack.c.l.b16 %v104
  %v513 = vunpack.c.l.b16 %v105
  %v514 = vunpack.c.l.b16 %v106
  %v515 = vunpack.c.l.b16 %v107
  %v516 = vunpack.c.l.b16 %v108
  %v517 = vunpack.c.l.b16 %v109
  %v518 = vunpack.c.l.b16 %v110
  %v519 = vunpack.c.l.b16 %v111
  %v520 = vunpack.c.l.b16 %v112
  %v521 = vunpack.c.l.b16 %v113
  %v522 = vunpack.c.l.b16 %v114
  %v523 = vunpack.c.l.b16 %v115
  %v524 = vunpack.c.l.b16 %v116
  %v525 = vunpack.c.l.b16 %v117
  %v526 = vunpack.c.l.b16 %v118
  %v527 = vunpack.c.l.b16 %v119
  %v528 = vunpack.c.l.b16 %v120
  %v529 = vunpack.c.l.b16 %v121
  %v530 = vunpack.c.l.b16 %v122
  %v531 = vunpack.c.l.b16 %v123
  %v532 = vunpack.c.l.b16 %v124
  %v533 = vunpack.c.l.b16 %v125
  %v534 = vunpack.c.l.b16 %v126
  %v535 = vunpack.c.l.b16 %v127
  %v536 = vunpack.c.l.b16 %v128
  %v537 = vunpack.c.l.b16 %v129
  %v538 = vunpack.c.l.b16 %v130
  %v539 = vunpack.c.l.b16 %v131
  %v540 = vunpack.c.l.b16 %v132
  %v541 = vunpack.c.l.b16 %v133
  %v542 = vunpack.c.l.b16 %v134
  %v543 = vunpack.c.l.b16 %v135
  %v544 = vunpack.c.l.b16 %v136
  %v545 = vunpack.c.l.b16 %v137
  %v546 = vunpack.c.l.b16 %v138
  %v547 = vunpack.c.l.b16 %v139
  %v548 = vunpack.c.l.b16 %v140
  %v549 = vunpack.c.l.b16 %v141
  %v550 = vunpack.c.l.b16 %v142
  %v551 = vunpack.c.l.b16 %v143
  %v552 = vunpack.c.l.b16 %v144
  %v553 = vunpack.c.l.b16 %v145
  %v554 = vunpack.c.l.b16 %v146
  %v555 = vunpack.c.l.b16 %v147
  %v556 = vunpack.c.l.b16 %v148
  %v557 = vunpack.c.l.b16 %v149
  %v558 = vunpack.c.l.b16 %v150
  %v559 = vunpack.c.l.b16 %v151
  %v560 = vunpack.c.l.b16 %v152
  %v561 = vunpack.c.l.b16 %v153
  %v562 = vunpack.c.l.b16 %v154
  %v563 = vunpack.c.l.b16 %v155
  %v564 = vunpack.c.l.b16 %v156
  %v565 = vunpack.c.l.b16 %v157
  %v566 = vunpack.c.l.b16 %v158
  %v567 = vunpack.c.l.b16 %v159
  %v568 = vunpack.c.l.b16 %v160
  %v569 = vunpack.c.l.b16 %v161
  %v570 = vunpack.c.l.b16 %v162
  %v571 = vunpack.c.l.b16 %v163
  %v572 = vunpack.c.l.b16 %v164
  %v573 = vunpack.c.l.b16 %v165
  %v574 = vunpack.c.l.b16 %v166
  %v575 = vunpack.c.l.b16 %v167
  %v576 = vunpack.c.l.b16 %v168
  %v577 = vunpack.c.l.b16 %v169
  %v578 = vunpack.c.l.b16 %v170
  %v579 = vunpack.c.l.b16 %v171
  %v580 = vunpack.c.l.b16 %v172
  %v581 = vunpack.c.l.b16 %v173
  %v582 = vunpack.c.l.b16 %v174
  %v583 = vunpack.c.l.b16 %v175
  %v584 = vunpack.c.l.b16 %v176
  %v585 = vunpack.c.l.b16 %v177
  %v586 = vunpack.c.l.b16 %v178
  %v587 = vunpack.c.l.b16 %v179
  %v588 = vunpack.c.l.b16 %v180
  %v589 = vunpack.c.l.b16 %v181
  %v590 = vunpack.c.l.b16 %v182
  %v591 = vunpack.c.l.b16 %v183
  %v592 = vunpack.c.l.b16 %v184
  %v593 = vunpack.c.l.b16 %v185
  %v594 = vunpack.c.l.b16 %v186
  %v595 = vunpack.c.l.b16 %v187
  %v596 = vunpack.c.l.b16 %v188
  %v597 = vunpack.c.l.b16 %v189
  %v598 = vunpack.c.l.b16 %v190
  %v599 = vunpack.c.l.b16 %v191
  %v600 = vunpack.c.l.b16 %v192
  %v601 = vunpack.c.l.b16 %v193
  %v602 = vunpack.c.l.b16 %v194
  %v603 = vunpack.c.l.b16 %v195
  %v604 = vunpack.c.l.b16 %v196
  %v605 = vunpack.c.l.b16 %v197
  %v606 = vunpack.c.l.b16 %v198
  %v607 = vunpack.c.l.b16 %v199
  %v608 = vunpack.c.l.b16 %v200
  %v609 = vunpack.c.l.b16 %v201
  %v610 = vunpack.c.l.b16 %v202
  %v611 = vunpack.c.l.b16 %v203
  %v612 = vunpack.c.l.b16 %v204
  %v613 = vunpack.c.l.b16 %v205
  %v614 = vunpack.c.l.b16 %v206
  %v615 = vunpack.c.l.b16 %v207
  %v616 = vunpack.c.l.b16 %v208
  %v617 = vunpack.c.l.b16 %v209
  %v618 = vpack.c.b16 %v423, %v422
  %v619 = vpack.c.b16 %v425, %v424
  %v620 = vpack.c.b16 %v427, %v426
  %v621 = vpack.c.b16 %v429, %v428
  %v622 = vpack.c.b16 %v431, %v430
  %v623 = vpack.c.b16 %v433, %v432
  %v624 = vpack.c.b16 %v435, %v434
  %v625 = vpack.c.b16 %v437, %v436
  %v626 = vpack.c.b16 %v439, %v438
  %v627 = vpack.c.b16 %v441, %v440
  %v628 = vpack.c.b16 %v443, %v442
  %v629 = vpack.c.b16 %v445, %v444
  %v630 = vpack.c.b16 %v447, %v446
  %v631 = vpack.c.b16 %v449, %v448
  %v632 = vpack.c.b16 %v451, %v450
  %v633 = vpack.c.b16 %v453, %v452
  %v634 = vpack.c.b16 %v455, %v454
  %v635 = vpack.c.b16 %v457, %v456
  %v636 = vpack.c.b16 %v459, %v458
  %v637 = vpack.c.b16 %v461, %v460
  %v638 = vpack.c.b16 %v463, %v462
  %v639 = vpack.c.b16 %v465, %v464
  %v640 = vpack.c.b16 %v467, %v466
  %v641 = vpack.c.b16 %v469, %v468
  %v642 = vpack.c.b16 %v471, %v470
  %v643 = vpack.c.b16 %v473, %v472
  %v644 = vpack.c.b16 %v475, %v474
  %v645 = vpack.c.b16 %v477, %v476
  %v646 = vpack.c.b16 %v479, %v478
  %v647 = vpack.c.b16 %v481, %v480
  %v648 = vpack.c.b16 %v483, %v482
  %v649 = vpack.c.b16 %v485, %v484
  %v650 = vpack.c.b16 %v487, %v486
  %v651 = vpack.c.b16 %v489, %v488
  %v652 = vpack.c.b16 %v491, %v490
  %v653 = vpack.c.b16 %v493, %v492
  %v654 = vpack.c.b16 %v495, %v494
  %v655 = vpack.c.b16 %v497, %v496
  %v656 = vpack.c.b16 %v499, %v498
  %v657 = vpack.c.b16 %v501, %v500
  %v658 = vpack.c.b16 %v503, %v502
  %v659 = vpack.c.b16 %v505, %v504
  %v660 = vpack.c.b16 %v507, %v506
  %v661 = vpack.c.b16 %v509, %v508
  %v662 = vpack.c.b16 %v511, %v510
  %v663 = vpack.c.b16 %v513, %v512
  %v664 = vpack.c.b16 %v515, %v514
  %v665 = vpack.c.b16 %v517, %v516
  %v666 = vpack.c.b16 %v519, %v518
  %v667 = vpack.c.b16 %v521, %v520
  %v668 = vpack.c.b16 %v523, %v522
  %v669 = vpack.c.b16 %v525, %v524
  %v670 = vpack.c.b16 %v527, %v526
  %v671 = vpack.c.b16 %v529, %v528
  %v672 = vpack.c.b16 %v531, %v530
  %v673 = vpack.c.b16 %v533, %v532
  %v674 = vpack.c.b16 %v535, %v534
  %v675 = vpack.c.b16 %v537, %v536
  %v676 = vpack.c.b16 %v539, %v538
  %v677 = vpack.c.b16 %v541, %v540
  %v678 = vpack.c.b16 %v543, %v542
  %v679 = vpack.c.b16 %v545, %v544
  %v680 = vpack.c.b16 %v547, %v546
  %v681 = vpack.c.b16 %v549, %v548
  %v682 = vpack.c.b16 %v551, %v550
  %v683 = vpack.c.b16 %v553, %v552
  %v684 = vpack.c.b16 %v555, %v554
  %v685 = vpack.c.b16 %v557, %v556
  %v686 = vpack.c.b16 %v559, %v558
  %v687 = vpack.c.b16 %v561, %v560
  %v688 = vpack.c.b16 %v563, %v562
  %v689 = vpack.c.b16 %v565, %v564
  %v690 = vpack.c.b16 %v567, %v566
  %v691 = vpack.c.b16 %v569, %v568
  %v692 = vpack.c.b16 %v571, %v570
  %v693 = vpack.c.b16 %v573, %v572
  %v694 = vpack.c.b16 %v575, %v574
  %v695 = vpack.c.b16 %v577, %v576
  %v696 = vpack.c.b16 %v579, %v578
  %v697 = vpack.c.b16 %v581, %v580
  %v698 = vpack.c.b16 %v583, %v582
  %v699 = vpack.c.b16 %v585, %v584
  %v700 = vpack.c.b16 %v587, %v586
  %v701 = vpack.c.b16 %v589, %v588
  %v702 = vpack.c.b16 %v591, %v590
  %v703 = vpack.c.b16 %v593, %v592
  %v704 = vpack.c.b16 %v595, %v594
  %v705 = vpack.c.b16 %v597, %v596
  %v706 = vpack.c.b16 %v599, %v598
  %v707 = vpack.c.b16 %v601, %v600
  %v708 = vpack.c.b16 %v603, %v602
  %v709 = vpack.c.b16 %v605, %v604
  %v710 = vpack.c.b16 %v607, %v606
  %v711 = vpack.c.b16 %v609, %v608
  %v712 = vpack.c.b16 %v611, %v610
  %v713 = vpack.c.b16 %v613, %v612
  %v714 = vpack.c.b16 %v615, %v614
  %v715 = vpack.c.b16 %v617, %v616
  %v830 = vunpack.c.l.b16 %v210
  %v831 = vunpack.c.l.b16 %v211
  %v832 = vunpack.c.l.b16 %v212
  %v833 = vunpack.c.l.b16 %v213
  %v834 = vunpack.c.l.b16 %v214
  %v835 = vunpack.c.l.b16 %v215
  %v836 = vunpack.c.l.b16 %v216
  %v837 = vunpack.c.l.b16 %v217
  %v838 = vunpack.c.l.b16 %v218
  %v839 = vunpack.c.l.b16 %v219
  %v840 = vunpack.c.l.b16 %v220
  %v841 = vunpack.c.l.b16 %v221
  %v842 = vunpack.c.l.b16 %v222
  %v843 = vunpack.c.l.b16 %v223
  %v844 = vunpack.c.l.b16 %v224
  %v845 = vunpack.c.l.b16 %v225
  %v846 = vpack.c.b16 %v831, %v830
  %v847 = vpack.c.b16 %v833, %v832
  %v848 = vpack.c.b16 %v835, %v834
  %v849 = vpack.c.b16 %v837, %v836
  %v850 = vpack.c.b16 %v839, %v838
  %v851 = vpack.c.b16 %v841, %v840
  %v852 = vpack.c.b16 %v843, %v842
  %v853 = vpack.c.b16 %v845, %v844
  %862 = vmatpush.bf16.msra.mxu0 %v853
  %863 = vmatpush.bf16.msra.mxu0 %v852
  %864 = vmatpush.bf16.msra.mxu0 %v851
  %865 = vmatpush.bf16.msra.mxu0 %v850
  %866 = vmatpush.bf16.msra.mxu0 %v849
  %867 = vmatpush.bf16.msra.mxu0 %v848
  %868 = vmatpush.bf16.msra.mxu0 %v847
  %869 = vmatpush.bf16.msra.mxu0 %v846
  %870 = vmatmul.bf16.gmra.mxu0 %v618
  %v871 = vpop.f32.mrf.mxu0
  %v872 = vadd.f32 0.0, %v871
  %v873 = vpop.f32.mrf.mxu0
  %v874 = vadd.f32 0.0, %v873
  %875 = vmatmul.bf16.gmra.mxu0 %v619
  %v876 = vpop.f32.mrf.mxu0
  %v877 = vadd.f32 0.0, %v876
  %v878 = vpop.f32.mrf.mxu0
  %v879 = vadd.f32 0.0, %v878
  %880 = vmatmul.bf16.gmra.mxu0 %v620
  %v881 = vpop.f32.mrf.mxu0
  %v882 = vadd.f32 0.0, %v881
  %v883 = vpop.f32.mrf.mxu0
  %v884 = vadd.f32 0.0, %v883
  %885 = vmatmul.bf16.gmra.mxu0 %v621
  %v886 = vpop.f32.mrf.mxu0
  %v887 = vadd.f32 0.0, %v886
  %v888 = vpop.f32.mrf.mxu0
  %v889 = vadd.f32 0.0, %v888
  %890 = vmatmul.bf16.gmra.mxu0 %v622
  %v891 = vpop.f32.mrf.mxu0
  %v892 = vadd.f32 0.0, %v891
  %v893 = vpop.f32.mrf.mxu0
  %v894 = vadd.f32 0.0, %v893
  %895 = vmatmul.bf16.gmra.mxu0 %v623
  %v896 = vpop.f32.mrf.mxu0
  %v897 = vadd.f32 0.0, %v896
  %v898 = vpop.f32.mrf.mxu0
  %v899 = vadd.f32 0.0, %v898
  %900 = vmatmul.bf16.gmra.mxu0 %v624
  %v901 = vpop.f32.mrf.mxu0
  %v902 = vadd.f32 0.0, %v901
  %v903 = vpop.f32.mrf.mxu0
  %v904 = vadd.f32 0.0, %v903
  %905 = vmatmul.bf16.gmra.mxu0 %v625
  %v906 = vpop.f32.mrf.mxu0
  %v907 = vadd.f32 0.0, %v906
  %v908 = vpop.f32.mrf.mxu0
  %v909 = vadd.f32 0.0, %v908
  %910 = vmatmul.bf16.gmra.mxu0 %v626
  %v911 = vpop.f32.mrf.mxu0
  %v912 = vadd.f32 0.0, %v911
  %v913 = vpop.f32.mrf.mxu0
  %v914 = vadd.f32 0.0, %v913
  %915 = vmatmul.bf16.gmra.mxu0 %v627
  %v916 = vpop.f32.mrf.mxu0
  %v917 = vadd.f32 0.0, %v916
  %v918 = vpop.f32.mrf.mxu0
  %v919 = vadd.f32 0.0, %v918
  %920 = vmatmul.bf16.gmra.mxu0 %v628
  %v921 = vpop.f32.mrf.mxu0
  %v922 = vadd.f32 0.0, %v921
  %v923 = vpop.f32.mrf.mxu0
  %v924 = vadd.f32 0.0, %v923
  %925 = vmatmul.bf16.gmra.mxu0 %v629
  %v926 = vpop.f32.mrf.mxu0
  %v927 = vadd.f32 0.0, %v926
  %v928 = vpop.f32.mrf.mxu0
  %v929 = vadd.f32 0.0, %v928
  %930 = vmatmul.bf16.gmra.mxu0 %v630
  %v931 = vpop.f32.mrf.mxu0
  %v932 = vadd.f32 0.0, %v931
  %v933 = vpop.f32.mrf.mxu0
  %v934 = vadd.f32 0.0, %v933
  %935 = vmatmul.bf16.gmra.mxu0 %v631
  %v936 = vpop.f32.mrf.mxu0
  %v937 = vadd.f32 0.0, %v936
  %v938 = vpop.f32.mrf.mxu0
  %v939 = vadd.f32 0.0, %v938
  %940 = vmatmul.bf16.gmra.mxu0 %v632
  %v941 = vpop.f32.mrf.mxu0
  %v942 = vadd.f32 0.0, %v941
  %v943 = vpop.f32.mrf.mxu0
  %v944 = vadd.f32 0.0, %v943
  %945 = vmatmul.bf16.gmra.mxu0 %v633
  %v946 = vpop.f32.mrf.mxu0
  %v947 = vadd.f32 0.0, %v946
  %v948 = vpop.f32.mrf.mxu0
  %v949 = vadd.f32 0.0, %v948
  %950 = vmatmul.bf16.gmra.mxu0 %v634
  %v951 = vpop.f32.mrf.mxu0
  %v952 = vadd.f32 0.0, %v951
  %v953 = vpop.f32.mrf.mxu0
  %v954 = vadd.f32 0.0, %v953
  %955 = vmatmul.bf16.gmra.mxu0 %v635
  %v956 = vpop.f32.mrf.mxu0
  %v957 = vadd.f32 0.0, %v956
  %v958 = vpop.f32.mrf.mxu0
  %v959 = vadd.f32 0.0, %v958
  %960 = vmatmul.bf16.gmra.mxu0 %v636
  %v961 = vpop.f32.mrf.mxu0
  %v962 = vadd.f32 0.0, %v961
  %v963 = vpop.f32.mrf.mxu0
  %v964 = vadd.f32 0.0, %v963
  %965 = vmatmul.bf16.gmra.mxu0 %v637
  %v966 = vpop.f32.mrf.mxu0
  %v967 = vadd.f32 0.0, %v966
  %v968 = vpop.f32.mrf.mxu0
  %v969 = vadd.f32 0.0, %v968
  %970 = vmatmul.bf16.gmra.mxu0 %v638
  %v971 = vpop.f32.mrf.mxu0
  %v972 = vadd.f32 0.0, %v971
  %v973 = vpop.f32.mrf.mxu0
  %v974 = vadd.f32 0.0, %v973
  %975 = vmatmul.bf16.gmra.mxu0 %v639
  %v976 = vpop.f32.mrf.mxu0
  %v977 = vadd.f32 0.0, %v976
  %v978 = vpop.f32.mrf.mxu0
  %v979 = vadd.f32 0.0, %v978
  %980 = vmatmul.bf16.gmra.mxu0 %v640
  %v981 = vpop.f32.mrf.mxu0
  %v982 = vadd.f32 0.0, %v981
  %v983 = vpop.f32.mrf.mxu0
  %v984 = vadd.f32 0.0, %v983
  %985 = vmatmul.bf16.gmra.mxu0 %v641
  %v986 = vpop.f32.mrf.mxu0
  %v987 = vadd.f32 0.0, %v986
  %v988 = vpop.f32.mrf.mxu0
  %v989 = vadd.f32 0.0, %v988
  %990 = vmatmul.bf16.gmra.mxu0 %v642
  %v991 = vpop.f32.mrf.mxu0
  %v992 = vadd.f32 0.0, %v991
  %v993 = vpop.f32.mrf.mxu0
  %v994 = vadd.f32 0.0, %v993
  %995 = vmatmul.bf16.gmra.mxu0 %v643
  %v996 = vpop.f32.mrf.mxu0
  %v997 = vadd.f32 0.0, %v996
  %v998 = vpop.f32.mrf.mxu0
  %v999 = vadd.f32 0.0, %v998
  %1000 = vmatmul.bf16.gmra.mxu0 %v644
  %v1001 = vpop.f32.mrf.mxu0
  %v1002 = vadd.f32 0.0, %v1001
  %v1003 = vpop.f32.mrf.mxu0
  %v1004 = vadd.f32 0.0, %v1003
  %1005 = vmatmul.bf16.gmra.mxu0 %v645
  %v1006 = vpop.f32.mrf.mxu0
  %v1007 = vadd.f32 0.0, %v1006
  %v1008 = vpop.f32.mrf.mxu0
  %v1009 = vadd.f32 0.0, %v1008
  %1010 = vmatmul.bf16.gmra.mxu0 %v646
  %v1011 = vpop.f32.mrf.mxu0
  %v1012 = vadd.f32 0.0, %v1011
  %v1013 = vpop.f32.mrf.mxu0
  %v1014 = vadd.f32 0.0, %v1013
  %1015 = vmatmul.bf16.gmra.mxu0 %v647
  %v1016 = vpop.f32.mrf.mxu0
  %v1017 = vadd.f32 0.0, %v1016
  %v1018 = vpop.f32.mrf.mxu0
  %v1019 = vadd.f32 0.0, %v1018
  %1020 = vmatmul.bf16.gmra.mxu0 %v648
  %v1021 = vpop.f32.mrf.mxu0
  %v1022 = vadd.f32 0.0, %v1021
  %v1023 = vpop.f32.mrf.mxu0
  %v1024 = vadd.f32 0.0, %v1023
  %1025 = vmatmul.bf16.gmra.mxu0 %v649
  %v1026 = vpop.f32.mrf.mxu0
  %v1027 = vadd.f32 0.0, %v1026
  %v1028 = vpop.f32.mrf.mxu0
  %v1029 = vadd.f32 0.0, %v1028
  %1030 = vmatmul.bf16.gmra.mxu0 %v650
  %v1031 = vpop.f32.mrf.mxu0
  %v1032 = vadd.f32 0.0, %v1031
  %v1033 = vpop.f32.mrf.mxu0
  %v1034 = vadd.f32 0.0, %v1033
  %1035 = vmatmul.bf16.gmra.mxu0 %v651
  %v1036 = vpop.f32.mrf.mxu0
  %v1037 = vadd.f32 0.0, %v1036
  %v1038 = vpop.f32.mrf.mxu0
  %v1039 = vadd.f32 0.0, %v1038
  %1040 = vmatmul.bf16.gmra.mxu0 %v652
  %v1041 = vpop.f32.mrf.mxu0
  %v1042 = vadd.f32 0.0, %v1041
  %v1043 = vpop.f32.mrf.mxu0
  %v1044 = vadd.f32 0.0, %v1043
  %1045 = vmatmul.bf16.gmra.mxu0 %v653
  %v1046 = vpop.f32.mrf.mxu0
  %v1047 = vadd.f32 0.0, %v1046
  %v1048 = vpop.f32.mrf.mxu0
  %v1049 = vadd.f32 0.0, %v1048
  %1050 = vmatmul.bf16.gmra.mxu0 %v654
  %v1051 = vpop.f32.mrf.mxu0
  %v1052 = vadd.f32 0.0, %v1051
  %v1053 = vpop.f32.mrf.mxu0
  %v1054 = vadd.f32 0.0, %v1053
  %1055 = vmatmul.bf16.gmra.mxu0 %v655
  %v1056 = vpop.f32.mrf.mxu0
  %v1057 = vadd.f32 0.0, %v1056
  %v1058 = vpop.f32.mrf.mxu0
  %v1059 = vadd.f32 0.0, %v1058
  %1060 = vmatmul.bf16.gmra.mxu0 %v656
  %v1061 = vpop.f32.mrf.mxu0
  %v1062 = vadd.f32 0.0, %v1061
  %v1063 = vpop.f32.mrf.mxu0
  %v1064 = vadd.f32 0.0, %v1063
  %1065 = vmatmul.bf16.gmra.mxu0 %v657
  %v1066 = vpop.f32.mrf.mxu0
  %v1067 = vadd.f32 0.0, %v1066
  %v1068 = vpop.f32.mrf.mxu0
  %v1069 = vadd.f32 0.0, %v1068
  %1070 = vmatmul.bf16.gmra.mxu0 %v658
  %v1071 = vpop.f32.mrf.mxu0
  %v1072 = vadd.f32 0.0, %v1071
  %v1073 = vpop.f32.mrf.mxu0
  %v1074 = vadd.f32 0.0, %v1073
  %1075 = vmatmul.bf16.gmra.mxu0 %v659
  %v1076 = vpop.f32.mrf.mxu0
  %v1077 = vadd.f32 0.0, %v1076
  %v1078 = vpop.f32.mrf.mxu0
  %v1079 = vadd.f32 0.0, %v1078
  %1080 = vmatmul.bf16.gmra.mxu0 %v660
  %v1081 = vpop.f32.mrf.mxu0
  %v1082 = vadd.f32 0.0, %v1081
  %v1083 = vpop.f32.mrf.mxu0
  %v1084 = vadd.f32 0.0, %v1083
  %1085 = vmatmul.bf16.gmra.mxu0 %v661
  %v1086 = vpop.f32.mrf.mxu0
  %v1087 = vadd.f32 0.0, %v1086
  %v1088 = vpop.f32.mrf.mxu0
  %v1089 = vadd.f32 0.0, %v1088
  %1090 = vmatmul.bf16.gmra.mxu0 %v662
  %v1091 = vpop.f32.mrf.mxu0
  %v1092 = vadd.f32 0.0, %v1091
  %v1093 = vpop.f32.mrf.mxu0
  %v1094 = vadd.f32 0.0, %v1093
  %1095 = vmatmul.bf16.gmra.mxu0 %v663
  %v1096 = vpop.f32.mrf.mxu0
  %v1097 = vadd.f32 0.0, %v1096
  %v1098 = vpop.f32.mrf.mxu0
  %v1099 = vadd.f32 0.0, %v1098
  %1100 = vmatmul.bf16.gmra.mxu0 %v664
  %v1101 = vpop.f32.mrf.mxu0
  %v1102 = vadd.f32 0.0, %v1101
  %v1103 = vpop.f32.mrf.mxu0
  %v1104 = vadd.f32 0.0, %v1103
  %1105 = vmatmul.bf16.gmra.mxu0 %v665
  %v1106 = vpop.f32.mrf.mxu0
  %v1107 = vadd.f32 0.0, %v1106
  %v1108 = vpop.f32.mrf.mxu0
  %v1109 = vadd.f32 0.0, %v1108
  %1110 = vmatmul.bf16.gmra.mxu0 %v666
  %v1111 = vpop.f32.mrf.mxu0
  %v1112 = vadd.f32 0.0, %v1111
  %v1113 = vpop.f32.mrf.mxu0
  %v1114 = vadd.f32 0.0, %v1113
  %1115 = vmatmul.bf16.gmra.mxu0 %v667
  %v1116 = vpop.f32.mrf.mxu0
  %v1117 = vadd.f32 0.0, %v1116
  %v1118 = vpop.f32.mrf.mxu0
  %v1119 = vadd.f32 0.0, %v1118
  %1120 = vmatmul.bf16.gmra.mxu0 %v668
  %v1121 = vpop.f32.mrf.mxu0
  %v1122 = vadd.f32 0.0, %v1121
  %v1123 = vpop.f32.mrf.mxu0
  %v1124 = vadd.f32 0.0, %v1123
  %1125 = vmatmul.bf16.gmra.mxu0 %v669
  %v1126 = vpop.f32.mrf.mxu0
  %v1127 = vadd.f32 0.0, %v1126
  %v1128 = vpop.f32.mrf.mxu0
  %v1129 = vadd.f32 0.0, %v1128
  %1130 = vmatmul.bf16.gmra.mxu0 %v670
  %v1131 = vpop.f32.mrf.mxu0
  %v1132 = vadd.f32 0.0, %v1131
  %v1133 = vpop.f32.mrf.mxu0
  %v1134 = vadd.f32 0.0, %v1133
  %1135 = vmatmul.bf16.gmra.mxu0 %v671
  %v1136 = vpop.f32.mrf.mxu0
  %v1137 = vadd.f32 0.0, %v1136
  %v1138 = vpop.f32.mrf.mxu0
  %v1139 = vadd.f32 0.0, %v1138
  %1140 = vmatmul.bf16.gmra.mxu0 %v672
  %v1141 = vpop.f32.mrf.mxu0
  %v1142 = vadd.f32 0.0, %v1141
  %v1143 = vpop.f32.mrf.mxu0
  %v1144 = vadd.f32 0.0, %v1143
  %1145 = vmatmul.bf16.gmra.mxu0 %v673
  %v1146 = vpop.f32.mrf.mxu0
  %v1147 = vadd.f32 0.0, %v1146
  %v1148 = vpop.f32.mrf.mxu0
  %v1149 = vadd.f32 0.0, %v1148
  %1150 = vmatmul.bf16.gmra.mxu0 %v674
  %v1151 = vpop.f32.mrf.mxu0
  %v1152 = vadd.f32 0.0, %v1151
  %v1153 = vpop.f32.mrf.mxu0
  %v1154 = vadd.f32 0.0, %v1153
  %1155 = vmatmul.bf16.gmra.mxu0 %v675
  %v1156 = vpop.f32.mrf.mxu0
  %v1157 = vadd.f32 0.0, %v1156
  %v1158 = vpop.f32.mrf.mxu0
  %v1159 = vadd.f32 0.0, %v1158
  %1160 = vmatmul.bf16.gmra.mxu0 %v676
  %v1161 = vpop.f32.mrf.mxu0
  %v1162 = vadd.f32 0.0, %v1161
  %v1163 = vpop.f32.mrf.mxu0
  %v1164 = vadd.f32 0.0, %v1163
  %1165 = vmatmul.bf16.gmra.mxu0 %v677
  %v1166 = vpop.f32.mrf.mxu0
  %v1167 = vadd.f32 0.0, %v1166
  %v1168 = vpop.f32.mrf.mxu0
  %v1169 = vadd.f32 0.0, %v1168
  %1170 = vmatmul.bf16.gmra.mxu0 %v678
  %v1171 = vpop.f32.mrf.mxu0
  %v1172 = vadd.f32 0.0, %v1171
  %v1173 = vpop.f32.mrf.mxu0
  %v1174 = vadd.f32 0.0, %v1173
  %1175 = vmatmul.bf16.gmra.mxu0 %v679
  %v1176 = vpop.f32.mrf.mxu0
  %v1177 = vadd.f32 0.0, %v1176
  %v1178 = vpop.f32.mrf.mxu0
  %v1179 = vadd.f32 0.0, %v1178
  %1180 = vmatmul.bf16.gmra.mxu0 %v680
  %v1181 = vpop.f32.mrf.mxu0
  %v1182 = vadd.f32 0.0, %v1181
  %v1183 = vpop.f32.mrf.mxu0
  %v1184 = vadd.f32 0.0, %v1183
  %1185 = vmatmul.bf16.gmra.mxu0 %v681
  %v1186 = vpop.f32.mrf.mxu0
  %v1187 = vadd.f32 0.0, %v1186
  %v1188 = vpop.f32.mrf.mxu0
  %v1189 = vadd.f32 0.0, %v1188
  %1190 = vmatmul.bf16.gmra.mxu0 %v682
  %v1191 = vpop.f32.mrf.mxu0
  %v1192 = vadd.f32 0.0, %v1191
  %v1193 = vpop.f32.mrf.mxu0
  %v1194 = vadd.f32 0.0, %v1193
  %1195 = vmatmul.bf16.gmra.mxu0 %v683
  %v1196 = vpop.f32.mrf.mxu0
  %v1197 = vadd.f32 0.0, %v1196
  %v1198 = vpop.f32.mrf.mxu0
  %v1199 = vadd.f32 0.0, %v1198
  %1200 = vmatmul.bf16.gmra.mxu0 %v684
  %v1201 = vpop.f32.mrf.mxu0
  %v1202 = vadd.f32 0.0, %v1201
  %v1203 = vpop.f32.mrf.mxu0
  %v1204 = vadd.f32 0.0, %v1203
  %1205 = vmatmul.bf16.gmra.mxu0 %v685
  %v1206 = vpop.f32.mrf.mxu0
  %v1207 = vadd.f32 0.0, %v1206
  %v1208 = vpop.f32.mrf.mxu0
  %v1209 = vadd.f32 0.0, %v1208
  %1210 = vmatmul.bf16.gmra.mxu0 %v686
  %v1211 = vpop.f32.mrf.mxu0
  %v1212 = vadd.f32 0.0, %v1211
  %v1213 = vpop.f32.mrf.mxu0
  %v1214 = vadd.f32 0.0, %v1213
  %1215 = vmatmul.bf16.gmra.mxu0 %v687
  %v1216 = vpop.f32.mrf.mxu0
  %v1217 = vadd.f32 0.0, %v1216
  %v1218 = vpop.f32.mrf.mxu0
  %v1219 = vadd.f32 0.0, %v1218
  %1220 = vmatmul.bf16.gmra.mxu0 %v688
  %v1221 = vpop.f32.mrf.mxu0
  %v1222 = vadd.f32 0.0, %v1221
  %v1223 = vpop.f32.mrf.mxu0
  %v1224 = vadd.f32 0.0, %v1223
  %1225 = vmatmul.bf16.gmra.mxu0 %v689
  %v1226 = vpop.f32.mrf.mxu0
  %v1227 = vadd.f32 0.0, %v1226
  %v1228 = vpop.f32.mrf.mxu0
  %v1229 = vadd.f32 0.0, %v1228
  %1230 = vmatmul.bf16.gmra.mxu0 %v690
  %v1231 = vpop.f32.mrf.mxu0
  %v1232 = vadd.f32 0.0, %v1231
  %v1233 = vpop.f32.mrf.mxu0
  %v1234 = vadd.f32 0.0, %v1233
  %1235 = vmatmul.bf16.gmra.mxu0 %v691
  %v1236 = vpop.f32.mrf.mxu0
  %v1237 = vadd.f32 0.0, %v1236
  %v1238 = vpop.f32.mrf.mxu0
  %v1239 = vadd.f32 0.0, %v1238
  %1240 = vmatmul.bf16.gmra.mxu0 %v692
  %v1241 = vpop.f32.mrf.mxu0
  %v1242 = vadd.f32 0.0, %v1241
  %v1243 = vpop.f32.mrf.mxu0
  %v1244 = vadd.f32 0.0, %v1243
  %1245 = vmatmul.bf16.gmra.mxu0 %v693
  %v1246 = vpop.f32.mrf.mxu0
  %v1247 = vadd.f32 0.0, %v1246
  %v1248 = vpop.f32.mrf.mxu0
  %v1249 = vadd.f32 0.0, %v1248
  %1250 = vmatmul.bf16.gmra.mxu0 %v694
  %v1251 = vpop.f32.mrf.mxu0
  %v1252 = vadd.f32 0.0, %v1251
  %v1253 = vpop.f32.mrf.mxu0
  %v1254 = vadd.f32 0.0, %v1253
  %1255 = vmatmul.bf16.gmra.mxu0 %v695
  %v1256 = vpop.f32.mrf.mxu0
  %v1257 = vadd.f32 0.0, %v1256
  %v1258 = vpop.f32.mrf.mxu0
  %v1259 = vadd.f32 0.0, %v1258
  %1260 = vmatmul.bf16.gmra.mxu0 %v696
  %v1261 = vpop.f32.mrf.mxu0
  %v1262 = vadd.f32 0.0, %v1261
  %v1263 = vpop.f32.mrf.mxu0
  %v1264 = vadd.f32 0.0, %v1263
  %1265 = vmatmul.bf16.gmra.mxu0 %v697
  %v1266 = vpop.f32.mrf.mxu0
  %v1267 = vadd.f32 0.0, %v1266
  %v1268 = vpop.f32.mrf.mxu0
  %v1269 = vadd.f32 0.0, %v1268
  %1270 = vmatmul.bf16.gmra.mxu0 %v698
  %v1271 = vpop.f32.mrf.mxu0
  %v1272 = vadd.f32 0.0, %v1271
  %v1273 = vpop.f32.mrf.mxu0
  %v1274 = vadd.f32 0.0, %v1273
  %1275 = vmatmul.bf16.gmra.mxu0 %v699
  %v1276 = vpop.f32.mrf.mxu0
  %v1277 = vadd.f32 0.0, %v1276
  %v1278 = vpop.f32.mrf.mxu0
  %v1279 = vadd.f32 0.0, %v1278
  %1280 = vmatmul.bf16.gmra.mxu0 %v700
  %v1281 = vpop.f32.mrf.mxu0
  %v1282 = vadd.f32 0.0, %v1281
  %v1283 = vpop.f32.mrf.mxu0
  %v1284 = vadd.f32 0.0, %v1283
  %1285 = vmatmul.bf16.gmra.mxu0 %v701
  %v1286 = vpop.f32.mrf.mxu0
  %v1287 = vadd.f32 0.0, %v1286
  %v1288 = vpop.f32.mrf.mxu0
  %v1289 = vadd.f32 0.0, %v1288
  %1290 = vmatmul.bf16.gmra.mxu0 %v702
  %v1291 = vpop.f32.mrf.mxu0
  %v1292 = vadd.f32 0.0, %v1291
  %v1293 = vpop.f32.mrf.mxu0
  %v1294 = vadd.f32 0.0, %v1293
  %1295 = vmatmul.bf16.gmra.mxu0 %v703
  %v1296 = vpop.f32.mrf.mxu0
  %v1297 = vadd.f32 0.0, %v1296
  %v1298 = vpop.f32.mrf.mxu0
  %v1299 = vadd.f32 0.0, %v1298
  %1300 = vmatmul.bf16.gmra.mxu0 %v704
  %v1301 = vpop.f32.mrf.mxu0
  %v1302 = vadd.f32 0.0, %v1301
  %v1303 = vpop.f32.mrf.mxu0
  %v1304 = vadd.f32 0.0, %v1303
  %1305 = vmatmul.bf16.gmra.mxu0 %v705
  %v1306 = vpop.f32.mrf.mxu0
  %v1307 = vadd.f32 0.0, %v1306
  %v1308 = vpop.f32.mrf.mxu0
  %v1309 = vadd.f32 0.0, %v1308
  %1310 = vmatmul.bf16.gmra.mxu0 %v706
  %v1311 = vpop.f32.mrf.mxu0
  %v1312 = vadd.f32 0.0, %v1311
  %v1313 = vpop.f32.mrf.mxu0
  %v1314 = vadd.f32 0.0, %v1313
  %1315 = vmatmul.bf16.gmra.mxu0 %v707
  %v1316 = vpop.f32.mrf.mxu0
  %v1317 = vadd.f32 0.0, %v1316
  %v1318 = vpop.f32.mrf.mxu0
  %v1319 = vadd.f32 0.0, %v1318
  %1320 = vmatmul.bf16.gmra.mxu0 %v708
  %v1321 = vpop.f32.mrf.mxu0
  %v1322 = vadd.f32 0.0, %v1321
  %v1323 = vpop.f32.mrf.mxu0
  %v1324 = vadd.f32 0.0, %v1323
  %1325 = vmatmul.bf16.gmra.mxu0 %v709
  %v1326 = vpop.f32.mrf.mxu0
  %v1327 = vadd.f32 0.0, %v1326
  %v1328 = vpop.f32.mrf.mxu0
  %v1329 = vadd.f32 0.0, %v1328
  %1330 = vmatmul.bf16.gmra.mxu0 %v710
  %v1331 = vpop.f32.mrf.mxu0
  %v1332 = vadd.f32 0.0, %v1331
  %v1333 = vpop.f32.mrf.mxu0
  %v1334 = vadd.f32 0.0, %v1333
  %1335 = vmatmul.bf16.gmra.mxu0 %v711
  %v1336 = vpop.f32.mrf.mxu0
  %v1337 = vadd.f32 0.0, %v1336
  %v1338 = vpop.f32.mrf.mxu0
  %v1339 = vadd.f32 0.0, %v1338
  %1340 = vmatmul.bf16.gmra.mxu0 %v712
  %v1341 = vpop.f32.mrf.mxu0
  %v1342 = vadd.f32 0.0, %v1341
  %v1343 = vpop.f32.mrf.mxu0
  %v1344 = vadd.f32 0.0, %v1343
  %1345 = vmatmul.bf16.gmra.mxu0 %v713
  %v1346 = vpop.f32.mrf.mxu0
  %v1347 = vadd.f32 0.0, %v1346
  %v1348 = vpop.f32.mrf.mxu0
  %v1349 = vadd.f32 0.0, %v1348
  %1350 = vmatmul.bf16.gmra.mxu0 %v714
  %v1351 = vpop.f32.mrf.mxu0
  %v1352 = vadd.f32 0.0, %v1351
  %v1353 = vpop.f32.mrf.mxu0
  %v1354 = vadd.f32 0.0, %v1353
  %1355 = vmatmul.bf16.gmra.mxu0 %v715
  %v1356 = vpop.f32.mrf.mxu0
  %v1357 = vadd.f32 0.0, %v1356
  %v1358 = vpop.f32.mrf.mxu0
  %v1359 = vadd.f32 0.0, %v1358
  %1360 = vdwg.mxu0
  %v1361 = vmax.f32 %v872, %v994
  %v1362 = vmax.f32 %v874, %v997
  %v1363 = vmax.f32 %v877, %v999
  %v1364 = vmax.f32 %v879, %v1002
  %v1365 = vmax.f32 %v882, %v1004
  %v1366 = vmax.f32 %v884, %v1007
  %v1367 = vmax.f32 %v887, %v1009
  %v1368 = vmax.f32 %v889, %v1012
  %v1369 = vmax.f32 %v892, %v1014
  %v1370 = vmax.f32 %v894, %v1017
  %v1371 = vmax.f32 %v897, %v1019
  %v1372 = vmax.f32 %v899, %v1022
  %v1373 = vmax.f32 %v902, %v1024
  %v1374 = vmax.f32 %v904, %v1027
  %v1375 = vmax.f32 %v907, %v1029
  %v1376 = vmax.f32 %v909, %v1032
  %v1377 = vmax.f32 %v912, %v1034
  %v1378 = vmax.f32 %v914, %v1037
  %v1379 = vmax.f32 %v917, %v1039
  %v1380 = vmax.f32 %v919, %v1042
  %v1381 = vmax.f32 %v922, %v1044
  %v1382 = vmax.f32 %v924, %v1047
  %v1383 = vmax.f32 %v927, %v1049
  %v1384 = vmax.f32 %v929, %v1052
  %v1385 = vmax.f32 %v932, %v1054
  %v1386 = vmax.f32 %v934, %v1057
  %v1387 = vmax.f32 %v937, %v1059
  %v1388 = vmax.f32 %v939, %v1062
  %v1389 = vmax.f32 %v942, %v1064
  %v1390 = vmax.f32 %v944, %v1067
  %v1391 = vmax.f32 %v947, %v1069
  %v1392 = vmax.f32 %v949, %v1072
  %v1393 = vmax.f32 %v952, %v1074
  %v1394 = vmax.f32 %v954, %v1077
  %v1395 = vmax.f32 %v957, %v1079
  %v1396 = vmax.f32 %v959, %v1082
  %v1397 = vmax.f32 %v962, %v1084
  %v1398 = vmax.f32 %v964, %v1087
  %v1399 = vmax.f32 %v967, %v1089
  %v1400 = vmax.f32 %v969, %v1092
  %v1401 = vmax.f32 %v972, %v1094
  %v1402 = vmax.f32 %v974, %v1097
  %v1403 = vmax.f32 %v977, %v1099
  %v1404 = vmax.f32 %v979, %v1102
  %v1405 = vmax.f32 %v982, %v1104
  %v1406 = vmax.f32 %v984, %v1107
  %v1407 = vmax.f32 %v987, %v1109
  %v1408 = vmax.f32 %v989, %v1112
  %v1409 = vmax.f32 %v992, %v1114
  %v1410 = vmax.f32 %v1117, %v1239
  %v1411 = vmax.f32 %v1119, %v1242
  %v1412 = vmax.f32 %v1122, %v1244
  %v1413 = vmax.f32 %v1124, %v1247
  %v1414 = vmax.f32 %v1127, %v1249
  %v1415 = vmax.f32 %v1129, %v1252
  %v1416 = vmax.f32 %v1132, %v1254
  %v1417 = vmax.f32 %v1134, %v1257
  %v1418 = vmax.f32 %v1137, %v1259
  %v1419 = vmax.f32 %v1139, %v1262
  %v1420 = vmax.f32 %v1142, %v1264
  %v1421 = vmax.f32 %v1144, %v1267
  %v1422 = vmax.f32 %v1147, %v1269
  %v1423 = vmax.f32 %v1149, %v1272
  %v1424 = vmax.f32 %v1152, %v1274
  %v1425 = vmax.f32 %v1154, %v1277
  %v1426 = vmax.f32 %v1157, %v1279
  %v1427 = vmax.f32 %v1159, %v1282
  %v1428 = vmax.f32 %v1162, %v1284
  %v1429 = vmax.f32 %v1164, %v1287
  %v1430 = vmax.f32 %v1167, %v1289
  %v1431 = vmax.f32 %v1169, %v1292
  %v1432 = vmax.f32 %v1172, %v1294
  %v1433 = vmax.f32 %v1174, %v1297
  %v1434 = vmax.f32 %v1177, %v1299
  %v1435 = vmax.f32 %v1179, %v1302
  %v1436 = vmax.f32 %v1182, %v1304
  %v1437 = vmax.f32 %v1184, %v1307
  %v1438 = vmax.f32 %v1187, %v1309
  %v1439 = vmax.f32 %v1189, %v1312
  %v1440 = vmax.f32 %v1192, %v1314
  %v1441 = vmax.f32 %v1194, %v1317
  %v1442 = vmax.f32 %v1197, %v1319
  %v1443 = vmax.f32 %v1199, %v1322
  %v1444 = vmax.f32 %v1202, %v1324
  %v1445 = vmax.f32 %v1204, %v1327
  %v1446 = vmax.f32 %v1207, %v1329
  %v1447 = vmax.f32 %v1209, %v1332
  %v1448 = vmax.f32 %v1212, %v1334
  %v1449 = vmax.f32 %v1214, %v1337
  %v1450 = vmax.f32 %v1217, %v1339
  %v1451 = vmax.f32 %v1219, %v1342
  %v1452 = vmax.f32 %v1222, %v1344
  %v1453 = vmax.f32 %v1224, %v1347
  %v1454 = vmax.f32 %v1227, %v1349
  %v1455 = vmax.f32 %v1229, %v1352
  %v1456 = vmax.f32 %v1232, %v1354
  %v1457 = vmax.f32 %v1234, %v1357
  %v1458 = vmax.f32 %v1237, %v1359
  %v1459 = vmax.f32 %v1361, %v1410
  %v1460 = vmax.f32 %v1362, %v1411
  %v1461 = vmax.f32 %v1363, %v1412
  %v1462 = vmax.f32 %v1364, %v1413
  %v1463 = vmax.f32 %v1365, %v1414
  %v1464 = vmax.f32 %v1366, %v1415
  %v1465 = vmax.f32 %v1367, %v1416
  %v1466 = vmax.f32 %v1368, %v1417
  %v1467 = vmax.f32 %v1369, %v1418
  %v1468 = vmax.f32 %v1370, %v1419
  %v1469 = vmax.f32 %v1371, %v1420
  %v1470 = vmax.f32 %v1372, %v1421
  %v1471 = vmax.f32 %v1373, %v1422
  %v1472 = vmax.f32 %v1374, %v1423
  %v1473 = vmax.f32 %v1375, %v1424
  %v1474 = vmax.f32 %v1376, %v1425
  %v1475 = vmax.f32 %v1377, %v1426
  %v1476 = vmax.f32 %v1378, %v1427
  %v1477 = vmax.f32 %v1379, %v1428
  %v1478 = vmax.f32 %v1380, %v1429
  %v1479 = vmax.f32 %v1381, %v1430
  %v1480 = vmax.f32 %v1382, %v1431
  %v1481 = vmax.f32 %v1383, %v1432
  %v1482 = vmax.f32 %v1384, %v1433
  %v1483 = vmax.f32 %v1385, %v1434
  %v1484 = vmax.f32 %v1386, %v1435
  %v1485 = vmax.f32 %v1387, %v1436
  %v1486 = vmax.f32 %v1388, %v1437
  %v1487 = vmax.f32 %v1389, %v1438
  %v1488 = vmax.f32 %v1390, %v1439
  %v1489 = vmax.f32 %v1391, %v1440
  %v1490 = vmax.f32 %v1392, %v1441
  %v1491 = vmax.f32 %v1393, %v1442
  %v1492 = vmax.f32 %v1394, %v1443
  %v1493 = vmax.f32 %v1395, %v1444
  %v1494 = vmax.f32 %v1396, %v1445
  %v1495 = vmax.f32 %v1397, %v1446
  %v1496 = vmax.f32 %v1398, %v1447
  %v1497 = vmax.f32 %v1399, %v1448
  %v1498 = vmax.f32 %v1400, %v1449
  %v1499 = vmax.f32 %v1401, %v1450
  %v1500 = vmax.f32 %v1402, %v1451
  %v1501 = vmax.f32 %v1403, %v1452
  %v1502 = vmax.f32 %v1404, %v1453
  %v1503 = vmax.f32 %v1405, %v1454
  %v1504 = vmax.f32 %v1406, %v1455
  %v1505 = vmax.f32 %v1407, %v1456
  %v1506 = vmax.f32 %v1408, %v1457
  %v1507 = vmax.f32 %v1409, %v1458
  %v1508 = vld [vmem:[%s2] sm:$0x1]
  %v1510 = vperm.slane %v1508, 0
  %v1512 = vadd.f32 %v1459, %v1510
  %v1513 = vadd.f32 %v1460, %v1510
  %v1514 = vadd.f32 %v1461, %v1510
  %v1515 = vadd.f32 %v1462, %v1510
  %v1516 = vadd.f32 %v1463, %v1510
  %v1517 = vadd.f32 %v1464, %v1510
  %v1518 = vadd.f32 %v1465, %v1510
  %v1519 = vadd.f32 %v1466, %v1510
  %v1520 = vadd.f32 %v1467, %v1510
  %v1521 = vadd.f32 %v1468, %v1510
  %v1522 = vadd.f32 %v1469, %v1510
  %v1523 = vadd.f32 %v1470, %v1510
  %v1524 = vadd.f32 %v1471, %v1510
  %v1525 = vadd.f32 %v1472, %v1510
  %v1526 = vadd.f32 %v1473, %v1510
  %v1527 = vadd.f32 %v1474, %v1510
  %v1528 = vadd.f32 %v1475, %v1510
  %v1529 = vadd.f32 %v1476, %v1510
  %v1530 = vadd.f32 %v1477, %v1510
  %v1531 = vadd.f32 %v1478, %v1510
  %v1532 = vadd.f32 %v1479, %v1510
  %v1533 = vadd.f32 %v1480, %v1510
  %v1534 = vadd.f32 %v1481, %v1510
  %v1535 = vadd.f32 %v1482, %v1510
  %v1536 = vadd.f32 %v1483, %v1510
  %v1537 = vadd.f32 %v1484, %v1510
  %v1538 = vadd.f32 %v1485, %v1510
  %v1539 = vadd.f32 %v1486, %v1510
  %v1540 = vadd.f32 %v1487, %v1510
  %v1541 = vadd.f32 %v1488, %v1510
  %v1542 = vadd.f32 %v1489, %v1510
  %v1543 = vadd.f32 %v1490, %v1510
  %v1544 = vadd.f32 %v1491, %v1510
  %v1545 = vadd.f32 %v1492, %v1510
  %v1546 = vadd.f32 %v1493, %v1510
  %v1547 = vadd.f32 %v1494, %v1510
  %v1548 = vadd.f32 %v1495, %v1510
  %v1549 = vadd.f32 %v1496, %v1510
  %v1550 = vadd.f32 %v1497, %v1510
  %v1551 = vadd.f32 %v1498, %v1510
  %v1552 = vadd.f32 %v1499, %v1510
  %v1553 = vadd.f32 %v1500, %v1510
  %v1554 = vadd.f32 %v1501, %v1510
  %v1555 = vadd.f32 %v1502, %v1510
  %v1556 = vadd.f32 %v1503, %v1510
  %v1557 = vadd.f32 %v1504, %v1510
  %v1558 = vadd.f32 %v1505, %v1510
  %v1559 = vadd.f32 %v1506, %v1510
  %v1560 = vadd.f32 %v1507, %v1510
  %v1561 = vmax.f32 %v1512, 0.0
  %v1562 = vmax.f32 %v1513, 0.0
  %v1563 = vmax.f32 %v1514, 0.0
  %v1564 = vmax.f32 %v1515, 0.0
  %v1565 = vmax.f32 %v1516, 0.0
  %v1566 = vmax.f32 %v1517, 0.0
  %v1567 = vmax.f32 %v1518, 0.0
  %v1568 = vmax.f32 %v1519, 0.0
  %v1569 = vmax.f32 %v1520, 0.0
  %v1570 = vmax.f32 %v1521, 0.0
  %v1571 = vmax.f32 %v1522, 0.0
  %v1572 = vmax.f32 %v1523, 0.0
  %v1573 = vmax.f32 %v1524, 0.0
  %v1574 = vmax.f32 %v1525, 0.0
  %v1575 = vmax.f32 %v1526, 0.0
  %v1576 = vmax.f32 %v1527, 0.0
  %v1577 = vmax.f32 %v1528, 0.0
  %v1578 = vmax.f32 %v1529, 0.0
  %v1579 = vmax.f32 %v1530, 0.0
  %v1580 = vmax.f32 %v1531, 0.0
  %v1581 = vmax.f32 %v1532, 0.0
  %v1582 = vmax.f32 %v1533, 0.0
  %v1583 = vmax.f32 %v1534, 0.0
  %v1584 = vmax.f32 %v1535, 0.0
  %v1585 = vmax.f32 %v1536, 0.0
  %v1586 = vmax.f32 %v1537, 0.0
  %v1587 = vmax.f32 %v1538, 0.0
  %v1588 = vmax.f32 %v1539, 0.0
  %v1589 = vmax.f32 %v1540, 0.0
  %v1590 = vmax.f32 %v1541, 0.0
  %v1591 = vmax.f32 %v1542, 0.0
  %v1592 = vmax.f32 %v1543, 0.0
  %v1593 = vmax.f32 %v1544, 0.0
  %v1594 = vmax.f32 %v1545, 0.0
  %v1595 = vmax.f32 %v1546, 0.0
  %v1596 = vmax.f32 %v1547, 0.0
  %v1597 = vmax.f32 %v1548, 0.0
  %v1598 = vmax.f32 %v1549, 0.0
  %v1599 = vmax.f32 %v1550, 0.0
  %v1600 = vmax.f32 %v1551, 0.0
  %v1601 = vmax.f32 %v1552, 0.0
  %v1602 = vmax.f32 %v1553, 0.0
  %v1603 = vmax.f32 %v1554, 0.0
  %v1604 = vmax.f32 %v1555, 0.0
  %v1605 = vmax.f32 %v1556, 0.0
  %v1606 = vmax.f32 %v1557, 0.0
  %v1607 = vmax.f32 %v1558, 0.0
  %v1608 = vmax.f32 %v1559, 0.0
  %v1609 = vmax.f32 %v1560, 0.0
  %v1610 = vpack.c.bf16 %v1561, %v1561
  %v1611 = vpack.c.bf16 %v1562, %v1562
  %v1612 = vpack.c.bf16 %v1563, %v1563
  %v1613 = vpack.c.bf16 %v1564, %v1564
  %v1614 = vpack.c.bf16 %v1565, %v1565
  %v1615 = vpack.c.bf16 %v1566, %v1566
  %v1616 = vpack.c.bf16 %v1567, %v1567
  %v1617 = vpack.c.bf16 %v1568, %v1568
  %v1618 = vpack.c.bf16 %v1569, %v1569
  %v1619 = vpack.c.bf16 %v1570, %v1570
  %v1620 = vpack.c.bf16 %v1571, %v1571
  %v1621 = vpack.c.bf16 %v1572, %v1572
  %v1622 = vpack.c.bf16 %v1573, %v1573
  %v1623 = vpack.c.bf16 %v1574, %v1574
  %v1624 = vpack.c.bf16 %v1575, %v1575
  %v1625 = vpack.c.bf16 %v1576, %v1576
  %v1626 = vpack.c.bf16 %v1577, %v1577
  %v1627 = vpack.c.bf16 %v1578, %v1578
  %v1628 = vpack.c.bf16 %v1579, %v1579
  %v1629 = vpack.c.bf16 %v1580, %v1580
  %v1630 = vpack.c.bf16 %v1581, %v1581
  %v1631 = vpack.c.bf16 %v1582, %v1582
  %v1632 = vpack.c.bf16 %v1583, %v1583
  %v1633 = vpack.c.bf16 %v1584, %v1584
  %v1634 = vpack.c.bf16 %v1585, %v1585
  %v1635 = vpack.c.bf16 %v1586, %v1586
  %v1636 = vpack.c.bf16 %v1587, %v1587
  %v1637 = vpack.c.bf16 %v1588, %v1588
  %v1638 = vpack.c.bf16 %v1589, %v1589
  %v1639 = vpack.c.bf16 %v1590, %v1590
  %v1640 = vpack.c.bf16 %v1591, %v1591
  %v1641 = vpack.c.bf16 %v1592, %v1592
  %v1642 = vpack.c.bf16 %v1593, %v1593
  %v1643 = vpack.c.bf16 %v1594, %v1594
  %v1644 = vpack.c.bf16 %v1595, %v1595
  %v1645 = vpack.c.bf16 %v1596, %v1596
  %v1646 = vpack.c.bf16 %v1597, %v1597
  %v1647 = vpack.c.bf16 %v1598, %v1598
  %v1648 = vpack.c.bf16 %v1599, %v1599
  %v1649 = vpack.c.bf16 %v1600, %v1600
  %v1650 = vpack.c.bf16 %v1601, %v1601
  %v1651 = vpack.c.bf16 %v1602, %v1602
  %v1652 = vpack.c.bf16 %v1603, %v1603
  %v1653 = vpack.c.bf16 %v1604, %v1604
  %v1654 = vpack.c.bf16 %v1605, %v1605
  %v1655 = vpack.c.bf16 %v1606, %v1606
  %v1656 = vpack.c.bf16 %v1607, %v1607
  %v1657 = vpack.c.bf16 %v1608, %v1608
  %v1658 = vpack.c.bf16 %v1609, %v1609
  %1659 = vst [vmem:[%s3] sm:$0xf] %v1610
  %1660 = vst [vmem:[%s3 + $0x4] sm:$0xf] %v1611
  %1661 = vst [vmem:[%s3 + $0x8] sm:$0xf] %v1612
  %1662 = vst [vmem:[%s3 + $0xc] sm:$0xf] %v1613
  %1663 = vst [vmem:[%s3 + $0x10] sm:$0xf] %v1614
  %1664 = vst [vmem:[%s3 + $0x14] sm:$0xf] %v1615
  %1665 = vst [vmem:[%s3 + $0x18] sm:$0xf] %v1616
  %1666 = vst [vmem:[%s3 + $0x1c] sm:$0xf] %v1617
  %1667 = vst [vmem:[%s3 + $0x20] sm:$0xf] %v1618
  %1668 = vst [vmem:[%s3 + $0x24] sm:$0xf] %v1619
  %1669 = vst [vmem:[%s3 + $0x28] sm:$0xf] %v1620
  %1670 = vst [vmem:[%s3 + $0x2c] sm:$0xf] %v1621
  %1671 = vst [vmem:[%s3 + $0x30] sm:$0xf] %v1622
  %1672 = vst [vmem:[%s3 + $0x34] sm:$0xf] %v1623
  %1673 = vst [vmem:[%s3 + $0x38] sm:$0xf] %v1624
  %1674 = vst [vmem:[%s3 + $0x3c] sm:$0xf] %v1625
  %1675 = vst [vmem:[%s3 + $0x40] sm:$0xf] %v1626
  %1676 = vst [vmem:[%s3 + $0x44] sm:$0xf] %v1627
  %1677 = vst [vmem:[%s3 + $0x48] sm:$0xf] %v1628
  %1678 = vst [vmem:[%s3 + $0x4c] sm:$0xf] %v1629
  %1679 = vst [vmem:[%s3 + $0x50] sm:$0xf] %v1630
  %1680 = vst [vmem:[%s3 + $0x54] sm:$0xf] %v1631
  %1681 = vst [vmem:[%s3 + $0x58] sm:$0xf] %v1632
  %1682 = vst [vmem:[%s3 + $0x5c] sm:$0xf] %v1633
  %1683 = vst [vmem:[%s3 + $0x60] sm:$0xf] %v1634
  %1684 = vst [vmem:[%s3 + $0x64] sm:$0xf] %v1635
  %1685 = vst [vmem:[%s3 + $0x68] sm:$0xf] %v1636
  %1686 = vst [vmem:[%s3 + $0x6c] sm:$0xf] %v1637
  %1687 = vst [vmem:[%s3 + $0x70] sm:$0xf] %v1638
  %1688 = vst [vmem:[%s3 + $0x74] sm:$0xf] %v1639
  %1689 = vst [vmem:[%s3 + $0x78] sm:$0xf] %v1640
  %1690 = vst [vmem:[%s3 + $0x7c] sm:$0xf] %v1641
  %1691 = vst [vmem:[%s3 + $0x80] sm:$0xf] %v1642
  %1692 = vst [vmem:[%s3 + $0x84] sm:$0xf] %v1643
  %1693 = vst [vmem:[%s3 + $0x88] sm:$0xf] %v1644
  %1694 = vst [vmem:[%s3 + $0x8c] sm:$0xf] %v1645
  %1695 = vst [vmem:[%s3 + $0x90] sm:$0xf] %v1646
  %1696 = vst [vmem:[%s3 + $0x94] sm:$0xf] %v1647
  %1697 = vst [vmem:[%s3 + $0x98] sm:$0xf] %v1648
  %1698 = vst [vmem:[%s3 + $0x9c] sm:$0xf] %v1649
  %1699 = vst [vmem:[%s3 + $0xa0] sm:$0xf] %v1650
  %1700 = vst [vmem:[%s3 + $0xa4] sm:$0xf] %v1651
  %1701 = vst [vmem:[%s3 + $0xa8] sm:$0xf] %v1652
  %1702 = vst [vmem:[%s3 + $0xac] sm:$0xf] %v1653
  %1703 = vst [vmem:[%s3 + $0xb0] sm:$0xf] %v1654
  %1704 = vst [vmem:[%s3 + $0xb4] sm:$0xf] %v1655
  %1705 = vst [vmem:[%s3 + $0xb8] sm:$0xf] %v1656
  %1706 = vst [vmem:[%s3 + $0xbc] sm:$0xf] %v1657
  %1707 = vst [vmem:[%s3 + $0xc0] sm:$0xf] %v1658
  // Predicated region
  $region14: #{lenet_forward.2} parent=0 // pred_check
    _
  $region15: #{lenet_forward.2} parent=0 // pred_check_branch
    %1709 = sbr.rel (0) target = $region17
  $region16: #{lenet_forward.2} parent=0 // pred_region
    _
  $region17: #{lenet_forward.2} parent=0 // pred_fallthru
    _
  // Predicated region
  $region18: #{lenet_forward.2} parent=0 // pred_check
    _
  $region19: #{lenet_forward.2} parent=0 // pred_check_branch
    %1711 = sbr.rel (0) target = $region21
  $region20: #{lenet_forward.2} parent=0 // pred_region
    _
  $region21: #{lenet_forward.2} parent=0 // pred_fallthru
    _

// kernel: lenet_forward.3
$region0: #{lenet_forward.3}
  #allocation0 [shape = 'u32[]', space=smem, size = 0x4, offset = 0x4, fixed_abs, tag = 'smem constant byte address 0x4 - core index']
  #allocation1 [shape = 'u32[72,128]{1,0:T(1,128)}', space=vmem, size = 0x9000, scoped, tag = 'internal scratch']
  %s0 = inlined_call_operand.vmem [shape: bf16[800,256], index: 0, kind: input, shape index: {}]
  %s1 = inlined_call_operand.vmem [shape: bf16[256,128], index: 1, kind: input, shape index: {}]
  %s2 = inlined_call_operand.vmem [shape: f32[1,128], index: 2, kind: input, shape index: {}]
  %s3 = inlined_call_operand.vmem [shape: bf16[25,128,128], index: 3, kind: input, shape index: {}]
  %s4 = inlined_call_operand.vmem [shape: f32[1,128], index: 4, kind: input, shape index: {}]
  %s5 = inlined_call_operand.vmem [shape: bf16[128,128], index: 5, kind: input, shape index: {}]
  %s6 = inlined_call_operand.vmem [shape: f32[1,128], index: 6, kind: input, shape index: {}]
  %s7 = inlined_call_operand.vmem [shape: bf16[128,10], index: 7, kind: input, shape index: {}]
  %s8 = inlined_call_operand.vmem [shape: f32[1,10], index: 8, kind: input, shape index: {}]
  %s9 = inlined_call_operand.hbm [shape: f32[2,10], index: 9, kind: output, shape index: {}]
  %s10 = sld [smem:[#allocation0]]
  $region46: #{lenet_forward.3} parent=0
    _
  %s12 = ssub.s32 1, %s10
  %s13 = scalar_select 0, %s12, %s10
  $region1: #{lenet_forward.3} parent=0
    #allocation2 [shape = 'u8[1024]{0}', space=vmem, size = 0x400, scoped, tag = 'output window, operand 0, single buffered']
    #allocation3 [shape = 's32[1]{0}', space=sflag, size = 0x4, scoped, tag = 'scoped memory for lenet_forward.3']
    %14 = vsyncpa [#allocation3], 0
    // Predicated region
    $region2: #{lenet_forward.3} parent=1 // pred_check
      _
    $region3: #{lenet_forward.3} parent=1 // pred_check_branch
      %16 = sbr.rel (0) target = $region5
    $region4: #{lenet_forward.3} parent=1 // pred_region
      _
    $region5: #{lenet_forward.3} parent=1 // pred_fallthru
      _
    // Predicated region
    $region6: #{lenet_forward.3} parent=1 // pred_check
      _
    $region7: #{lenet_forward.3} parent=1 // pred_check_branch
      %18 = sbr.rel (0) target = $region9
    $region8: #{lenet_forward.3} parent=1 // pred_region
      _
    $region9: #{lenet_forward.3} parent=1 // pred_fallthru
      _
    // Predicated region
    $region10: #{lenet_forward.3} parent=1 // pred_check
      _
    $region11: #{lenet_forward.3} parent=1 // pred_check_branch
      %20 = sbr.rel (0) target = $region13
    $region12: #{lenet_forward.3} parent=1 // pred_region
      _
    $region13: #{lenet_forward.3} parent=1 // pred_fallthru
      _
    // Predicated region
    $region14: #{lenet_forward.3} parent=1 // pred_check
      _
    $region15: #{lenet_forward.3} parent=1 // pred_check_branch
      %22 = sbr.rel (0) target = $region17
    $region16: #{lenet_forward.3} parent=1 // pred_region
      _
    $region17: #{lenet_forward.3} parent=1 // pred_fallthru
      _
    // Predicated region
    $region18: #{lenet_forward.3} parent=1 // pred_check
      _
    $region19: #{lenet_forward.3} parent=1 // pred_check_branch
      %24 = sbr.rel (0) target = $region21
    $region20: #{lenet_forward.3} parent=1 // pred_region
      _
    $region21: #{lenet_forward.3} parent=1 // pred_fallthru
      _
    // Predicated region
    $region22: #{lenet_forward.3} parent=1 // pred_check
      _
    $region23: #{lenet_forward.3} parent=1 // pred_check_branch
      %26 = sbr.rel (0) target = $region25
    $region24: #{lenet_forward.3} parent=1 // pred_region
      _
    $region25: #{lenet_forward.3} parent=1 // pred_fallthru
      _
    // Predicated region
    $region26: #{lenet_forward.3} parent=1 // pred_check
      _
    $region27: #{lenet_forward.3} parent=1 // pred_check_branch
      %28 = sbr.rel (0) target = $region29
    $region28: #{lenet_forward.3} parent=1 // pred_region
      _
    $region29: #{lenet_forward.3} parent=1 // pred_fallthru
      _
    // Predicated region
    $region30: #{lenet_forward.3} parent=1 // pred_check
      _
    $region31: #{lenet_forward.3} parent=1 // pred_check_branch
      %30 = sbr.rel (0) target = $region33
    $region32: #{lenet_forward.3} parent=1 // pred_region
      _
    $region33: #{lenet_forward.3} parent=1 // pred_fallthru
      _
    // Predicated region
    $region34: #{lenet_forward.3} parent=1 // pred_check
      _
    $region35: #{lenet_forward.3} parent=1 // pred_check_branch
      %32 = sbr.rel (0) target = $region37
    $region36: #{lenet_forward.3} parent=1 // pred_region
      _
    $region37: #{lenet_forward.3} parent=1 // pred_fallthru
      _
    %v33 = vld [vmem:[%s0] sm:$0xff]
    %v34 = vld [vmem:[%s0 + $0x8] sm:$0xff]
    %v35 = vld [vmem:[%s0 + $0x10] sm:$0xff]
    %v36 = vld [vmem:[%s0 + $0x18] sm:$0xff]
    %v37 = vld [vmem:[%s0 + $0x20] sm:$0xff]
    %v38 = vld [vmem:[%s0 + $0x28] sm:$0xff]
    %v39 = vld [vmem:[%s0 + $0x30] sm:$0xff]
    %v40 = vld [vmem:[%s0 + $0x38] sm:$0xff]
    %v41 = vld [vmem:[%s0 + $0x40] sm:$0xff]
    %v42 = vld [vmem:[%s0 + $0x48] sm:$0xff]
    %v43 = vld [vmem:[%s0 + $0x50] sm:$0xff]
    %v44 = vld [vmem:[%s0 + $0x58] sm:$0xff]
    %v45 = vld [vmem:[%s0 + $0x60] sm:$0xff]
    %v46 = vld [vmem:[%s0 + $0x68] sm:$0xff]
    %v47 = vld [vmem:[%s0 + $0x70] sm:$0xff]
    %v48 = vld [vmem:[%s0 + $0x78] sm:$0xff]
    %v49 = vld [vmem:[%s0 + $0x80] sm:$0xff]
    %v50 = vld [vmem:[%s0 + $0x88] sm:$0xff]
    %v51 = vld [vmem:[%s0 + $0x90] sm:$0xff]
    %v52 = vld [vmem:[%s0 + $0x98] sm:$0xff]
    %v53 = vld [vmem:[%s0 + $0xa0] sm:$0xff]
    %v54 = vld [vmem:[%s0 + $0xa8] sm:$0xff]
    %v55 = vld [vmem:[%s0 + $0xb0] sm:$0xff]
    %v56 = vld [vmem:[%s0 + $0xb8] sm:$0xff]
    %v57 = vld [vmem:[%s0 + $0xc0] sm:$0xff]
    %v58 = vld [vmem:[%s0 + $0xc8] sm:$0xff]
    %v59 = vld [vmem:[%s0 + $0xd0] sm:$0xff]
    %v60 = vld [vmem:[%s0 + $0xd8] sm:$0xff]
    %v61 = vld [vmem:[%s0 + $0xe0] sm:$0xff]
    %v62 = vld [vmem:[%s0 + $0xe8] sm:$0xff]
    %v63 = vld [vmem:[%s0 + $0xf0] sm:$0xff]
    %v64 = vld [vmem:[%s0 + $0xf8] sm:$0xff]
    %v65 = vld [vmem:[%s0 + $0x100] sm:$0xff]
    %v66 = vld [vmem:[%s0 + $0x108] sm:$0xff]
    %v67 = vld [vmem:[%s0 + $0x110] sm:$0xff]
    %v68 = vld [vmem:[%s0 + $0x118] sm:$0xff]
    %v69 = vld [vmem:[%s0 + $0x120] sm:$0xff]
    %v70 = vld [vmem:[%s0 + $0x128] sm:$0xff]
    %v71 = vld [vmem:[%s0 + $0x130] sm:$0xff]
    %v72 = vld [vmem:[%s0 + $0x138] sm:$0xff]
    %v73 = vld [vmem:[%s0 + $0x140] sm:$0xff]
    %v74 = vld [vmem:[%s0 + $0x148] sm:$0xff]
    %v75 = vld [vmem:[%s0 + $0x150] sm:$0xff]
    %v76 = vld [vmem:[%s0 + $0x158] sm:$0xff]
    %v77 = vld [vmem:[%s0 + $0x160] sm:$0xff]
    %v78 = vld [vmem:[%s0 + $0x168] sm:$0xff]
    %v79 = vld [vmem:[%s0 + $0x170] sm:$0xff]
    %v80 = vld [vmem:[%s0 + $0x178] sm:$0xff]
    %v81 = vld [vmem:[%s0 + $0x180] sm:$0xff]
    %v82 = vld [vmem:[%s0 + $0x188] sm:$0xff]
    %v83 = vld [vmem:[%s0 + $0x190] sm:$0xff]
    %v84 = vld [vmem:[%s0 + $0x198] sm:$0xff]
    %v85 = vld [vmem:[%s0 + $0x1a0] sm:$0xff]
    %v86 = vld [vmem:[%s0 + $0x1a8] sm:$0xff]
    %v87 = vld [vmem:[%s0 + $0x1b0] sm:$0xff]
    %v88 = vld [vmem:[%s0 + $0x1b8] sm:$0xff]
    %v89 = vld [vmem:[%s0 + $0x1c0] sm:$0xff]
    %v90 = vld [vmem:[%s0 + $0x1c8] sm:$0xff]
    %v91 = vld [vmem:[%s0 + $0x1d0] sm:$0xff]
    %v92 = vld [vmem:[%s0 + $0x1d8] sm:$0xff]
    %v93 = vld [vmem:[%s0 + $0x1e0] sm:$0xff]
    %v94 = vld [vmem:[%s0 + $0x1e8] sm:$0xff]
    %v95 = vld [vmem:[%s0 + $0x1f0] sm:$0xff]
    %v96 = vld [vmem:[%s0 + $0x1f8] sm:$0xff]
    %v97 = vld [vmem:[%s0 + $0x200] sm:$0xff]
    %v98 = vld [vmem:[%s0 + $0x208] sm:$0xff]
    %v99 = vld [vmem:[%s0 + $0x210] sm:$0xff]
    %v100 = vld [vmem:[%s0 + $0x218] sm:$0xff]
    %v101 = vld [vmem:[%s0 + $0x220] sm:$0xff]
    %v102 = vld [vmem:[%s0 + $0x228] sm:$0xff]
    %v103 = vld [vmem:[%s0 + $0x230] sm:$0xff]
    %v104 = vld [vmem:[%s0 + $0x238] sm:$0xff]
    %v105 = vld [vmem:[%s0 + $0x240] sm:$0xff]
    %v106 = vld [vmem:[%s0 + $0x248] sm:$0xff]
    %v107 = vld [vmem:[%s0 + $0x250] sm:$0xff]
    %v108 = vld [vmem:[%s0 + $0x258] sm:$0xff]
    %v109 = vld [vmem:[%s0 + $0x260] sm:$0xff]
    %v110 = vld [vmem:[%s0 + $0x268] sm:$0xff]
    %v111 = vld [vmem:[%s0 + $0x270] sm:$0xff]
    %v112 = vld [vmem:[%s0 + $0x278] sm:$0xff]
    %v113 = vld [vmem:[%s0 + $0x280] sm:$0xff]
    %v114 = vld [vmem:[%s0 + $0x288] sm:$0xff]
    %v115 = vld [vmem:[%s0 + $0x290] sm:$0xff]
    %v116 = vld [vmem:[%s0 + $0x298] sm:$0xff]
    %v117 = vld [vmem:[%s0 + $0x2a0] sm:$0xff]
    %v118 = vld [vmem:[%s0 + $0x2a8] sm:$0xff]
    %v119 = vld [vmem:[%s0 + $0x2b0] sm:$0xff]
    %v120 = vld [vmem:[%s0 + $0x2b8] sm:$0xff]
    %v121 = vld [vmem:[%s0 + $0x2c0] sm:$0xff]
    %v122 = vld [vmem:[%s0 + $0x2c8] sm:$0xff]
    %v123 = vld [vmem:[%s0 + $0x2d0] sm:$0xff]
    %v124 = vld [vmem:[%s0 + $0x2d8] sm:$0xff]
    %v125 = vld [vmem:[%s0 + $0x2e0] sm:$0xff]
    %v126 = vld [vmem:[%s0 + $0x2e8] sm:$0xff]
    %v127 = vld [vmem:[%s0 + $0x2f0] sm:$0xff]
    %v128 = vld [vmem:[%s0 + $0x2f8] sm:$0xff]
    %v129 = vld [vmem:[%s0 + $0x300] sm:$0xff]
    %v130 = vld [vmem:[%s0 + $0x308] sm:$0xff]
    %v131 = vld [vmem:[%s0 + $0x310] sm:$0xff]
    %v132 = vld [vmem:[%s0 + $0x318] sm:$0xff]
    %v133 = vld [vmem:[%s1] sm:$0xf]
    %v134 = vld [vmem:[%s1 + $0x4] sm:$0xf]
    %v135 = vld [vmem:[%s1 + $0x8] sm:$0xf]
    %v136 = vld [vmem:[%s1 + $0xc] sm:$0xf]
    %v137 = vld [vmem:[%s1 + $0x10] sm:$0xf]
    %v138 = vld [vmem:[%s1 + $0x14] sm:$0xf]
    %v139 = vld [vmem:[%s1 + $0x18] sm:$0xf]
    %v140 = vld [vmem:[%s1 + $0x1c] sm:$0xf]
    %v141 = vld [vmem:[%s1 + $0x20] sm:$0xf]
    %v142 = vld [vmem:[%s1 + $0x24] sm:$0xf]
    %v143 = vld [vmem:[%s1 + $0x28] sm:$0xf]
    %v144 = vld [vmem:[%s1 + $0x2c] sm:$0xf]
    %v145 = vld [vmem:[%s1 + $0x30] sm:$0xf]
    %v146 = vld [vmem:[%s1 + $0x34] sm:$0xf]
    %v147 = vld [vmem:[%s1 + $0x38] sm:$0xf]
    %v148 = vld [vmem:[%s1 + $0x3c] sm:$0xf]
    %v149 = vld [vmem:[%s1 + $0x40] sm:$0xf]
    %v150 = vld [vmem:[%s1 + $0x44] sm:$0xf]
    %v151 = vld [vmem:[%s1 + $0x48] sm:$0xf]
    %v152 = vld [vmem:[%s1 + $0x4c] sm:$0xf]
    %v153 = vld [vmem:[%s1 + $0x50] sm:$0xf]
    %v154 = vld [vmem:[%s1 + $0x54] sm:$0xf]
    %v155 = vld [vmem:[%s1 + $0x58] sm:$0xf]
    %v156 = vld [vmem:[%s1 + $0x5c] sm:$0xf]
    %v157 = vld [vmem:[%s1 + $0x60] sm:$0xf]
    %v158 = vld [vmem:[%s1 + $0x64] sm:$0xf]
    %v159 = vld [vmem:[%s1 + $0x68] sm:$0xf]
    %v160 = vld [vmem:[%s1 + $0x6c] sm:$0xf]
    %v161 = vld [vmem:[%s1 + $0x70] sm:$0xf]
    %v162 = vld [vmem:[%s1 + $0x74] sm:$0xf]
    %v163 = vld [vmem:[%s1 + $0x78] sm:$0xf]
    %v164 = vld [vmem:[%s1 + $0x7c] sm:$0xf]
    %v265 = vunpack.c.l.b16 %v33
    %v266 = vunpack.c.h.b16 %v33
    %v267 = vunpack.c.l.b16 %v34
    %v268 = vunpack.c.h.b16 %v34
    %v269 = vunpack.c.l.b16 %v35
    %v270 = vunpack.c.h.b16 %v35
    %v271 = vunpack.c.l.b16 %v36
    %v272 = vunpack.c.h.b16 %v36
    %v273 = vunpack.c.l.b16 %v37
    %v274 = vunpack.c.h.b16 %v37
    %v275 = vunpack.c.l.b16 %v38
    %v276 = vunpack.c.h.b16 %v38
    %v277 = vunpack.c.l.b16 %v39
    %v278 = vunpack.c.h.b16 %v39
    %v279 = vunpack.c.l.b16 %v40
    %v280 = vunpack.c.h.b16 %v40
    %v281 = vunpack.c.l.b16 %v41
    %v282 = vunpack.c.h.b16 %v41
    %v283 = vunpack.c.l.b16 %v42
    %v284 = vunpack.c.h.b16 %v42
    %v285 = vunpack.c.l.b16 %v43
    %v286 = vunpack.c.h.b16 %v43
    %v287 = vunpack.c.l.b16 %v44
    %v288 = vunpack.c.h.b16 %v44
    %v289 = vunpack.c.l.b16 %v45
    %v290 = vunpack.c.h.b16 %v45
    %v291 = vunpack.c.l.b16 %v46
    %v292 = vunpack.c.h.b16 %v46
    %v293 = vunpack.c.l.b16 %v47
    %v294 = vunpack.c.h.b16 %v47
    %v295 = vunpack.c.l.b16 %v48
    %v296 = vunpack.c.h.b16 %v48
    %v297 = vunpack.c.l.b16 %v49
    %v298 = vunpack.c.h.b16 %v49
    %v299 = vunpack.c.l.b16 %v50
    %v300 = vunpack.c.h.b16 %v50
    %v301 = vunpack.c.l.b16 %v51
    %v302 = vunpack.c.h.b16 %v51
    %v303 = vunpack.c.l.b16 %v52
    %v304 = vunpack.c.h.b16 %v52
    %v305 = vunpack.c.l.b16 %v53
    %v306 = vunpack.c.h.b16 %v53
    %v307 = vunpack.c.l.b16 %v54
    %v308 = vunpack.c.h.b16 %v54
    %v309 = vunpack.c.l.b16 %v55
    %v310 = vunpack.c.h.b16 %v55
    %v311 = vunpack.c.l.b16 %v56
    %v312 = vunpack.c.h.b16 %v56
    %v313 = vunpack.c.l.b16 %v57
    %v314 = vunpack.c.h.b16 %v57
    %v315 = vunpack.c.l.b16 %v58
    %v316 = vunpack.c.h.b16 %v58
    %v317 = vunpack.c.l.b16 %v59
    %v318 = vunpack.c.h.b16 %v59
    %v319 = vunpack.c.l.b16 %v60
    %v320 = vunpack.c.h.b16 %v60
    %v321 = vunpack.c.l.b16 %v61
    %v322 = vunpack.c.h.b16 %v61
    %v323 = vunpack.c.l.b16 %v62
    %v324 = vunpack.c.h.b16 %v62
    %v325 = vunpack.c.l.b16 %v63
    %v326 = vunpack.c.h.b16 %v63
    %v327 = vunpack.c.l.b16 %v64
    %v328 = vunpack.c.h.b16 %v64
    %v329 = vunpack.c.l.b16 %v65
    %v330 = vunpack.c.h.b16 %v65
    %v331 = vunpack.c.l.b16 %v66
    %v332 = vunpack.c.h.b16 %v66
    %v333 = vunpack.c.l.b16 %v67
    %v334 = vunpack.c.h.b16 %v67
    %v335 = vunpack.c.l.b16 %v68
    %v336 = vunpack.c.h.b16 %v68
    %v337 = vunpack.c.l.b16 %v69
    %v338 = vunpack.c.h.b16 %v69
    %v339 = vunpack.c.l.b16 %v70
    %v340 = vunpack.c.h.b16 %v70
    %v341 = vunpack.c.l.b16 %v71
    %v342 = vunpack.c.h.b16 %v71
    %v343 = vunpack.c.l.b16 %v72
    %v344 = vunpack.c.h.b16 %v72
    %v345 = vunpack.c.l.b16 %v73
    %v346 = vunpack.c.h.b16 %v73
    %v347 = vunpack.c.l.b16 %v74
    %v348 = vunpack.c.h.b16 %v74
    %v349 = vunpack.c.l.b16 %v75
    %v350 = vunpack.c.h.b16 %v75
    %v351 = vunpack.c.l.b16 %v76
    %v352 = vunpack.c.h.b16 %v76
    %v353 = vunpack.c.l.b16 %v77
    %v354 = vunpack.c.h.b16 %v77
    %v355 = vunpack.c.l.b16 %v78
    %v356 = vunpack.c.h.b16 %v78
    %v357 = vunpack.c.l.b16 %v79
    %v358 = vunpack.c.h.b16 %v79
    %v359 = vunpack.c.l.b16 %v80
    %v360 = vunpack.c.h.b16 %v80
    %v361 = vunpack.c.l.b16 %v81
    %v362 = vunpack.c.h.b16 %v81
    %v363 = vunpack.c.l.b16 %v82
    %v364 = vunpack.c.h.b16 %v82
    %v365 = vunpack.c.l.b16 %v83
    %v366 = vunpack.c.h.b16 %v83
    %v367 = vunpack.c.l.b16 %v84
    %v368 = vunpack.c.h.b16 %v84
    %v369 = vunpack.c.l.b16 %v85
    %v370 = vunpack.c.h.b16 %v85
    %v371 = vunpack.c.l.b16 %v86
    %v372 = vunpack.c.h.b16 %v86
    %v373 = vunpack.c.l.b16 %v87
    %v374 = vunpack.c.h.b16 %v87
    %v375 = vunpack.c.l.b16 %v88
    %v376 = vunpack.c.h.b16 %v88
    %v377 = vunpack.c.l.b16 %v89
    %v378 = vunpack.c.h.b16 %v89
    %v379 = vunpack.c.l.b16 %v90
    %v380 = vunpack.c.h.b16 %v90
    %v381 = vunpack.c.l.b16 %v91
    %v382 = vunpack.c.h.b16 %v91
    %v383 = vunpack.c.l.b16 %v92
    %v384 = vunpack.c.h.b16 %v92
    %v385 = vunpack.c.l.b16 %v93
    %v386 = vunpack.c.h.b16 %v93
    %v387 = vunpack.c.l.b16 %v94
    %v388 = vunpack.c.h.b16 %v94
    %v389 = vunpack.c.l.b16 %v95
    %v390 = vunpack.c.h.b16 %v95
    %v391 = vunpack.c.l.b16 %v96
    %v392 = vunpack.c.h.b16 %v96
    %v393 = vunpack.c.l.b16 %v97
    %v394 = vunpack.c.h.b16 %v97
    %v395 = vunpack.c.l.b16 %v98
    %v396 = vunpack.c.h.b16 %v98
    %v397 = vunpack.c.l.b16 %v99
    %v398 = vunpack.c.h.b16 %v99
    %v399 = vunpack.c.l.b16 %v100
    %v400 = vunpack.c.h.b16 %v100
    %v401 = vunpack.c.l.b16 %v101
    %v402 = vunpack.c.h.b16 %v101
    %v403 = vunpack.c.l.b16 %v102
    %v404 = vunpack.c.h.b16 %v102
    %v405 = vunpack.c.l.b16 %v103
    %v406 = vunpack.c.h.b16 %v103
    %v407 = vunpack.c.l.b16 %v104
    %v408 = vunpack.c.h.b16 %v104
    %v409 = vunpack.c.l.b16 %v105
    %v410 = vunpack.c.h.b16 %v105
    %v411 = vunpack.c.l.b16 %v106
    %v412 = vunpack.c.h.b16 %v106
    %v413 = vunpack.c.l.b16 %v107
    %v414 = vunpack.c.h.b16 %v107
    %v415 = vunpack.c.l.b16 %v108
    %v416 = vunpack.c.h.b16 %v108
    %v417 = vunpack.c.l.b16 %v109
    %v418 = vunpack.c.h.b16 %v109
    %v419 = vunpack.c.l.b16 %v110
    %v420 = vunpack.c.h.b16 %v110
    %v421 = vunpack.c.l.b16 %v111
    %v422 = vunpack.c.h.b16 %v111
    %v423 = vunpack.c.l.b16 %v112
    %v424 = vunpack.c.h.b16 %v112
    %v425 = vunpack.c.l.b16 %v113
    %v426 = vunpack.c.h.b16 %v113
    %v427 = vunpack.c.l.b16 %v114
    %v428 = vunpack.c.h.b16 %v114
    %v429 = vunpack.c.l.b16 %v115
    %v430 = vunpack.c.h.b16 %v115
    %v431 = vunpack.c.l.b16 %v116
    %v432 = vunpack.c.h.b16 %v116
    %v433 = vunpack.c.l.b16 %v117
    %v434 = vunpack.c.h.b16 %v117
    %v435 = vunpack.c.l.b16 %v118
    %v436 = vunpack.c.h.b16 %v118
    %v437 = vunpack.c.l.b16 %v119
    %v438 = vunpack.c.h.b16 %v119
    %v439 = vunpack.c.l.b16 %v120
    %v440 = vunpack.c.h.b16 %v120
    %v441 = vunpack.c.l.b16 %v121
    %v442 = vunpack.c.h.b16 %v121
    %v443 = vunpack.c.l.b16 %v122
    %v444 = vunpack.c.h.b16 %v122
    %v445 = vunpack.c.l.b16 %v123
    %v446 = vunpack.c.h.b16 %v123
    %v447 = vunpack.c.l.b16 %v124
    %v448 = vunpack.c.h.b16 %v124
    %v449 = vunpack.c.l.b16 %v125
    %v450 = vunpack.c.h.b16 %v125
    %v451 = vunpack.c.l.b16 %v126
    %v452 = vunpack.c.h.b16 %v126
    %v453 = vunpack.c.l.b16 %v127
    %v454 = vunpack.c.h.b16 %v127
    %v455 = vunpack.c.l.b16 %v128
    %v456 = vunpack.c.h.b16 %v128
    %v457 = vunpack.c.l.b16 %v129
    %v458 = vunpack.c.h.b16 %v129
    %v459 = vunpack.c.l.b16 %v130
    %v460 = vunpack.c.h.b16 %v130
    %v461 = vunpack.c.l.b16 %v131
    %v462 = vunpack.c.h.b16 %v131
    %v463 = vunpack.c.l.b16 %v132
    %v464 = vunpack.c.h.b16 %v132
    %v465 = vpack.c.b16 %v267, %v265
    %v466 = vpack.c.b16 %v268, %v266
    %v467 = vpack.c.b16 %v271, %v269
    %v468 = vpack.c.b16 %v272, %v270
    %v469 = vpack.c.b16 %v275, %v273
    %v470 = vpack.c.b16 %v276, %v274
    %v471 = vpack.c.b16 %v279, %v277
    %v472 = vpack.c.b16 %v280, %v278
    %v473 = vpack.c.b16 %v283, %v281
    %v474 = vpack.c.b16 %v284, %v282
    %v475 = vpack.c.b16 %v287, %v285
    %v476 = vpack.c.b16 %v288, %v286
    %v477 = vpack.c.b16 %v291, %v289
    %v478 = vpack.c.b16 %v292, %v290
    %v479 = vpack.c.b16 %v295, %v293
    %v480 = vpack.c.b16 %v296, %v294
    %v481 = vpack.c.b16 %v299, %v297
    %v482 = vpack.c.b16 %v300, %v298
    %v483 = vpack.c.b16 %v303, %v301
    %v484 = vpack.c.b16 %v304, %v302
    %v485 = vpack.c.b16 %v307, %v305
    %v486 = vpack.c.b16 %v308, %v306
    %v487 = vpack.c.b16 %v311, %v309
    %v488 = vpack.c.b16 %v312, %v310
    %v489 = vpack.c.b16 %v315, %v313
    %v490 = vpack.c.b16 %v316, %v314
    %v491 = vpack.c.b16 %v319, %v317
    %v492 = vpack.c.b16 %v320, %v318
    %v493 = vpack.c.b16 %v323, %v321
    %v494 = vpack.c.b16 %v324, %v322
    %v495 = vpack.c.b16 %v327, %v325
    %v496 = vpack.c.b16 %v328, %v326
    %v497 = vpack.c.b16 %v331, %v329
    %v498 = vpack.c.b16 %v332, %v330
    %v499 = vpack.c.b16 %v335, %v333
    %v500 = vpack.c.b16 %v336, %v334
    %v501 = vpack.c.b16 %v339, %v337
    %v502 = vpack.c.b16 %v340, %v338
    %v503 = vpack.c.b16 %v343, %v341
    %v504 = vpack.c.b16 %v344, %v342
    %v505 = vpack.c.b16 %v347, %v345
    %v506 = vpack.c.b16 %v348, %v346
    %v507 = vpack.c.b16 %v351, %v349
    %v508 = vpack.c.b16 %v352, %v350
    %v509 = vpack.c.b16 %v355, %v353
    %v510 = vpack.c.b16 %v356, %v354
    %v511 = vpack.c.b16 %v359, %v357
    %v512 = vpack.c.b16 %v360, %v358
    %v513 = vpack.c.b16 %v363, %v361
    %v514 = vpack.c.b16 %v364, %v362
    %v515 = vpack.c.b16 %v367, %v365
    %v516 = vpack.c.b16 %v368, %v366
    %v517 = vpack.c.b16 %v371, %v369
    %v518 = vpack.c.b16 %v372, %v370
    %v519 = vpack.c.b16 %v375, %v373
    %v520 = vpack.c.b16 %v376, %v374
    %v521 = vpack.c.b16 %v379, %v377
    %v522 = vpack.c.b16 %v380, %v378
    %v523 = vpack.c.b16 %v383, %v381
    %v524 = vpack.c.b16 %v384, %v382
    %v525 = vpack.c.b16 %v387, %v385
    %v526 = vpack.c.b16 %v388, %v386
    %v527 = vpack.c.b16 %v391, %v389
    %v528 = vpack.c.b16 %v392, %v390
    %v529 = vpack.c.b16 %v395, %v393
    %v530 = vpack.c.b16 %v396, %v394
    %v531 = vpack.c.b16 %v399, %v397
    %v532 = vpack.c.b16 %v400, %v398
    %v533 = vpack.c.b16 %v403, %v401
    %v534 = vpack.c.b16 %v404, %v402
    %v535 = vpack.c.b16 %v407, %v405
    %v536 = vpack.c.b16 %v408, %v406
    %v537 = vpack.c.b16 %v411, %v409
    %v538 = vpack.c.b16 %v412, %v410
    %v539 = vpack.c.b16 %v415, %v413
    %v540 = vpack.c.b16 %v416, %v414
    %v541 = vpack.c.b16 %v419, %v417
    %v542 = vpack.c.b16 %v420, %v418
    %v543 = vpack.c.b16 %v423, %v421
    %v544 = vpack.c.b16 %v424, %v422
    %v545 = vpack.c.b16 %v427, %v425
    %v546 = vpack.c.b16 %v428, %v426
    %v547 = vpack.c.b16 %v431, %v429
    %v548 = vpack.c.b16 %v432, %v430
    %v549 = vpack.c.b16 %v435, %v433
    %v550 = vpack.c.b16 %v436, %v434
    %v551 = vpack.c.b16 %v439, %v437
    %v552 = vpack.c.b16 %v440, %v438
    %v553 = vpack.c.b16 %v443, %v441
    %v554 = vpack.c.b16 %v444, %v442
    %v555 = vpack.c.b16 %v447, %v445
    %v556 = vpack.c.b16 %v448, %v446
    %v557 = vpack.c.b16 %v451, %v449
    %v558 = vpack.c.b16 %v452, %v450
    %v559 = vpack.c.b16 %v455, %v453
    %v560 = vpack.c.b16 %v456, %v454
    %v561 = vpack.c.b16 %v459, %v457
    %v562 = vpack.c.b16 %v460, %v458
    %v563 = vpack.c.b16 %v463, %v461
    %v564 = vpack.c.b16 %v464, %v462
    %v697 = vunpack.c.l.b16 %v133
    %v698 = vunpack.c.l.b16 %v134
    %v699 = vunpack.c.l.b16 %v135
    %v700 = vunpack.c.l.b16 %v136
    %v701 = vunpack.c.l.b16 %v137
    %v702 = vunpack.c.l.b16 %v138
    %v703 = vunpack.c.l.b16 %v139
    %v704 = vunpack.c.l.b16 %v140
    %v705 = vunpack.c.l.b16 %v141
    %v706 = vunpack.c.l.b16 %v142
    %v707 = vunpack.c.l.b16 %v143
    %v708 = vunpack.c.l.b16 %v144
    %v709 = vunpack.c.l.b16 %v145
    %v710 = vunpack.c.l.b16 %v146
    %v711 = vunpack.c.l.b16 %v147
    %v712 = vunpack.c.l.b16 %v148
    %v713 = vunpack.c.l.b16 %v149
    %v714 = vunpack.c.l.b16 %v150
    %v715 = vunpack.c.l.b16 %v151
    %v716 = vunpack.c.l.b16 %v152
    %v717 = vunpack.c.l.b16 %v153
    %v718 = vunpack.c.l.b16 %v154
    %v719 = vunpack.c.l.b16 %v155
    %v720 = vunpack.c.l.b16 %v156
    %v721 = vunpack.c.l.b16 %v157
    %v722 = vunpack.c.l.b16 %v158
    %v723 = vunpack.c.l.b16 %v159
    %v724 = vunpack.c.l.b16 %v160
    %v725 = vunpack.c.l.b16 %v161
    %v726 = vunpack.c.l.b16 %v162
    %v727 = vunpack.c.l.b16 %v163
    %v728 = vunpack.c.l.b16 %v164
    %v729 = vpack.c.b16 %v698, %v697
    %v730 = vpack.c.b16 %v700, %v699
    %v731 = vpack.c.b16 %v702, %v701
    %v732 = vpack.c.b16 %v704, %v703
    %v733 = vpack.c.b16 %v706, %v705
    %v734 = vpack.c.b16 %v708, %v707
    %v735 = vpack.c.b16 %v710, %v709
    %v736 = vpack.c.b16 %v712, %v711
    %v737 = vpack.c.b16 %v714, %v713
    %v738 = vpack.c.b16 %v716, %v715
    %v739 = vpack.c.b16 %v718, %v717
    %v740 = vpack.c.b16 %v720, %v719
    %v741 = vpack.c.b16 %v722, %v721
    %v742 = vpack.c.b16 %v724, %v723
    %v743 = vpack.c.b16 %v726, %v725
    %v744 = vpack.c.b16 %v728, %v727
    %761 = vmatpush.bf16.msra.mxu0 %v736
    %762 = vmatpush.bf16.msra.mxu0 %v735
    %763 = vmatpush.bf16.msra.mxu0 %v734
    %764 = vmatpush.bf16.msra.mxu0 %v733
    %765 = vmatpush.bf16.msra.mxu0 %v732
    %766 = vmatpush.bf16.msra.mxu0 %v731
    %767 = vmatpush.bf16.msra.mxu0 %v730
    %768 = vmatpush.bf16.msra.mxu0 %v729
    %769 = vmatmul.bf16.gmra.mxu0 %v465
    %v770 = vpop.f32.mrf.mxu0
    %v771 = vadd.f32 0.0, %v770
    %v772 = vpop.f32.mrf.mxu0
    %v773 = vadd.f32 0.0, %v772
    %774 = vmatmul.bf16.gmra.mxu0 %v467
    %v775 = vpop.f32.mrf.mxu0
    %v776 = vadd.f32 0.0, %v775
    %v777 = vpop.f32.mrf.mxu0
    %v778 = vadd.f32 0.0, %v777
    %779 = vmatmul.bf16.gmra.mxu0 %v469
    %v780 = vpop.f32.mrf.mxu0
    %v781 = vadd.f32 0.0, %v780
    %v782 = vpop.f32.mrf.mxu0
    %v783 = vadd.f32 0.0, %v782
    %784 = vmatmul.bf16.gmra.mxu0 %v471
    %v785 = vpop.f32.mrf.mxu0
    %v786 = vadd.f32 0.0, %v785
    %v787 = vpop.f32.mrf.mxu0
    %v788 = vadd.f32 0.0, %v787
    %789 = vmatmul.bf16.gmra.mxu0 %v473
    %v790 = vpop.f32.mrf.mxu0
    %v791 = vadd.f32 0.0, %v790
    %v792 = vpop.f32.mrf.mxu0
    %v793 = vadd.f32 0.0, %v792
    %794 = vmatmul.bf16.gmra.mxu0 %v475
    %v795 = vpop.f32.mrf.mxu0
    %v796 = vadd.f32 0.0, %v795
    %v797 = vpop.f32.mrf.mxu0
    %v798 = vadd.f32 0.0, %v797
    %799 = vmatmul.bf16.gmra.mxu0 %v477
    %v800 = vpop.f32.mrf.mxu0
    %v801 = vadd.f32 0.0, %v800
    %v802 = vpop.f32.mrf.mxu0
    %v803 = vadd.f32 0.0, %v802
    %804 = vmatmul.bf16.gmra.mxu0 %v479
    %v805 = vpop.f32.mrf.mxu0
    %v806 = vadd.f32 0.0, %v805
    %v807 = vpop.f32.mrf.mxu0
    %v808 = vadd.f32 0.0, %v807
    %809 = vmatmul.bf16.gmra.mxu0 %v481
    %v810 = vpop.f32.mrf.mxu0
    %v811 = vadd.f32 0.0, %v810
    %v812 = vpop.f32.mrf.mxu0
    %v813 = vadd.f32 0.0, %v812
    %814 = vmatmul.bf16.gmra.mxu0 %v483
    %v815 = vpop.f32.mrf.mxu0
    %v816 = vadd.f32 0.0, %v815
    %v817 = vpop.f32.mrf.mxu0
    %v818 = vadd.f32 0.0, %v817
    %819 = vmatmul.bf16.gmra.mxu0 %v485
    %v820 = vpop.f32.mrf.mxu0
    %v821 = vadd.f32 0.0, %v820
    %v822 = vpop.f32.mrf.mxu0
    %v823 = vadd.f32 0.0, %v822
    %824 = vmatmul.bf16.gmra.mxu0 %v487
    %v825 = vpop.f32.mrf.mxu0
    %v826 = vadd.f32 0.0, %v825
    %v827 = vpop.f32.mrf.mxu0
    %v828 = vadd.f32 0.0, %v827
    %829 = vmatmul.bf16.gmra.mxu0 %v489
    %v830 = vpop.f32.mrf.mxu0
    %v831 = vadd.f32 0.0, %v830
    %v832 = vpop.f32.mrf.mxu0
    %v833 = vadd.f32 0.0, %v832
    %834 = vmatmul.bf16.gmra.mxu0 %v491
    %v835 = vpop.f32.mrf.mxu0
    %v836 = vadd.f32 0.0, %v835
    %v837 = vpop.f32.mrf.mxu0
    %v838 = vadd.f32 0.0, %v837
    %839 = vmatmul.bf16.gmra.mxu0 %v493
    %v840 = vpop.f32.mrf.mxu0
    %v841 = vadd.f32 0.0, %v840
    %v842 = vpop.f32.mrf.mxu0
    %v843 = vadd.f32 0.0, %v842
    %844 = vmatmul.bf16.gmra.mxu0 %v495
    %v845 = vpop.f32.mrf.mxu0
    %v846 = vadd.f32 0.0, %v845
    %v847 = vpop.f32.mrf.mxu0
    %v848 = vadd.f32 0.0, %v847
    %849 = vmatmul.bf16.gmra.mxu0 %v497
    %v850 = vpop.f32.mrf.mxu0
    %v851 = vadd.f32 0.0, %v850
    %v852 = vpop.f32.mrf.mxu0
    %v853 = vadd.f32 0.0, %v852
    %854 = vmatmul.bf16.gmra.mxu0 %v499
    %v855 = vpop.f32.mrf.mxu0
    %v856 = vadd.f32 0.0, %v855
    %v857 = vpop.f32.mrf.mxu0
    %v858 = vadd.f32 0.0, %v857
    %859 = vmatmul.bf16.gmra.mxu0 %v501
    %v860 = vpop.f32.mrf.mxu0
    %v861 = vadd.f32 0.0, %v860
    %v862 = vpop.f32.mrf.mxu0
    %v863 = vadd.f32 0.0, %v862
    %864 = vmatmul.bf16.gmra.mxu0 %v503
    %v865 = vpop.f32.mrf.mxu0
    %v866 = vadd.f32 0.0, %v865
    %v867 = vpop.f32.mrf.mxu0
    %v868 = vadd.f32 0.0, %v867
    %869 = vmatmul.bf16.gmra.mxu0 %v505
    %v870 = vpop.f32.mrf.mxu0
    %v871 = vadd.f32 0.0, %v870
    %v872 = vpop.f32.mrf.mxu0
    %v873 = vadd.f32 0.0, %v872
    %874 = vmatmul.bf16.gmra.mxu0 %v507
    %v875 = vpop.f32.mrf.mxu0
    %v876 = vadd.f32 0.0, %v875
    %v877 = vpop.f32.mrf.mxu0
    %v878 = vadd.f32 0.0, %v877
    %879 = vmatmul.bf16.gmra.mxu0 %v509
    %v880 = vpop.f32.mrf.mxu0
    %v881 = vadd.f32 0.0, %v880
    %v882 = vpop.f32.mrf.mxu0
    %v883 = vadd.f32 0.0, %v882
    %884 = vmatmul.bf16.gmra.mxu0 %v511
    %v885 = vpop.f32.mrf.mxu0
    %v886 = vadd.f32 0.0, %v885
    %v887 = vpop.f32.mrf.mxu0
    %v888 = vadd.f32 0.0, %v887
    %889 = vmatmul.bf16.gmra.mxu0 %v513
    %v890 = vpop.f32.mrf.mxu0
    %v891 = vadd.f32 0.0, %v890
    %v892 = vpop.f32.mrf.mxu0
    %v893 = vadd.f32 0.0, %v892
    %894 = vmatmul.bf16.gmra.mxu0 %v515
    %v895 = vpop.f32.mrf.mxu0
    %v896 = vadd.f32 0.0, %v895
    %v897 = vpop.f32.mrf.mxu0
    %v898 = vadd.f32 0.0, %v897
    %899 = vmatmul.bf16.gmra.mxu0 %v517
    %v900 = vpop.f32.mrf.mxu0
    %v901 = vadd.f32 0.0, %v900
    %v902 = vpop.f32.mrf.mxu0
    %v903 = vadd.f32 0.0, %v902
    %904 = vmatmul.bf16.gmra.mxu0 %v519
    %v905 = vpop.f32.mrf.mxu0
    %v906 = vadd.f32 0.0, %v905
    %v907 = vpop.f32.mrf.mxu0
    %v908 = vadd.f32 0.0, %v907
    %909 = vmatmul.bf16.gmra.mxu0 %v521
    %v910 = vpop.f32.mrf.mxu0
    %v911 = vadd.f32 0.0, %v910
    %v912 = vpop.f32.mrf.mxu0
    %v913 = vadd.f32 0.0, %v912
    %914 = vmatmul.bf16.gmra.mxu0 %v523
    %v915 = vpop.f32.mrf.mxu0
    %v916 = vadd.f32 0.0, %v915
    %v917 = vpop.f32.mrf.mxu0
    %v918 = vadd.f32 0.0, %v917
    %919 = vmatmul.bf16.gmra.mxu0 %v525
    %v920 = vpop.f32.mrf.mxu0
    %v921 = vadd.f32 0.0, %v920
    %v922 = vpop.f32.mrf.mxu0
    %v923 = vadd.f32 0.0, %v922
    %924 = vmatmul.bf16.gmra.mxu0 %v527
    %v925 = vpop.f32.mrf.mxu0
    %v926 = vadd.f32 0.0, %v925
    %v927 = vpop.f32.mrf.mxu0
    %v928 = vadd.f32 0.0, %v927
    %929 = vmatmul.bf16.gmra.mxu0 %v529
    %v930 = vpop.f32.mrf.mxu0
    %v931 = vadd.f32 0.0, %v930
    %v932 = vpop.f32.mrf.mxu0
    %v933 = vadd.f32 0.0, %v932
    %934 = vmatmul.bf16.gmra.mxu0 %v531
    %v935 = vpop.f32.mrf.mxu0
    %v936 = vadd.f32 0.0, %v935
    %v937 = vpop.f32.mrf.mxu0
    %v938 = vadd.f32 0.0, %v937
    %939 = vmatmul.bf16.gmra.mxu0 %v533
    %v940 = vpop.f32.mrf.mxu0
    %v941 = vadd.f32 0.0, %v940
    %v942 = vpop.f32.mrf.mxu0
    %v943 = vadd.f32 0.0, %v942
    %944 = vmatmul.bf16.gmra.mxu0 %v535
    %v945 = vpop.f32.mrf.mxu0
    %v946 = vadd.f32 0.0, %v945
    %v947 = vpop.f32.mrf.mxu0
    %v948 = vadd.f32 0.0, %v947
    %949 = vmatmul.bf16.gmra.mxu0 %v537
    %v950 = vpop.f32.mrf.mxu0
    %v951 = vadd.f32 0.0, %v950
    %v952 = vpop.f32.mrf.mxu0
    %v953 = vadd.f32 0.0, %v952
    %954 = vmatmul.bf16.gmra.mxu0 %v539
    %v955 = vpop.f32.mrf.mxu0
    %v956 = vadd.f32 0.0, %v955
    %v957 = vpop.f32.mrf.mxu0
    %v958 = vadd.f32 0.0, %v957
    %959 = vmatmul.bf16.gmra.mxu0 %v541
    %v960 = vpop.f32.mrf.mxu0
    %v961 = vadd.f32 0.0, %v960
    %v962 = vpop.f32.mrf.mxu0
    %v963 = vadd.f32 0.0, %v962
    %964 = vmatmul.bf16.gmra.mxu0 %v543
    %v965 = vpop.f32.mrf.mxu0
    %v966 = vadd.f32 0.0, %v965
    %v967 = vpop.f32.mrf.mxu0
    %v968 = vadd.f32 0.0, %v967
    %969 = vmatmul.bf16.gmra.mxu0 %v545
    %v970 = vpop.f32.mrf.mxu0
    %v971 = vadd.f32 0.0, %v970
    %v972 = vpop.f32.mrf.mxu0
    %v973 = vadd.f32 0.0, %v972
    %974 = vmatmul.bf16.gmra.mxu0 %v547
    %v975 = vpop.f32.mrf.mxu0
    %v976 = vadd.f32 0.0, %v975
    %v977 = vpop.f32.mrf.mxu0
    %v978 = vadd.f32 0.0, %v977
    %979 = vmatmul.bf16.gmra.mxu0 %v549
    %v980 = vpop.f32.mrf.mxu0
    %v981 = vadd.f32 0.0, %v980
    %v982 = vpop.f32.mrf.mxu0
    %v983 = vadd.f32 0.0, %v982
    %984 = vmatmul.bf16.gmra.mxu0 %v551
    %v985 = vpop.f32.mrf.mxu0
    %v986 = vadd.f32 0.0, %v985
    %v987 = vpop.f32.mrf.mxu0
    %v988 = vadd.f32 0.0, %v987
    %989 = vmatmul.bf16.gmra.mxu0 %v553
    %v990 = vpop.f32.mrf.mxu0
    %v991 = vadd.f32 0.0, %v990
    %v992 = vpop.f32.mrf.mxu0
    %v993 = vadd.f32 0.0, %v992
    %994 = vmatmul.bf16.gmra.mxu0 %v555
    %v995 = vpop.f32.mrf.mxu0
    %v996 = vadd.f32 0.0, %v995
    %v997 = vpop.f32.mrf.mxu0
    %v998 = vadd.f32 0.0, %v997
    %999 = vmatmul.bf16.gmra.mxu0 %v557
    %v1000 = vpop.f32.mrf.mxu0
    %v1001 = vadd.f32 0.0, %v1000
    %v1002 = vpop.f32.mrf.mxu0
    %v1003 = vadd.f32 0.0, %v1002
    %1004 = vmatmul.bf16.gmra.mxu0 %v559
    %v1005 = vpop.f32.mrf.mxu0
    %v1006 = vadd.f32 0.0, %v1005
    %v1007 = vpop.f32.mrf.mxu0
    %v1008 = vadd.f32 0.0, %v1007
    %1009 = vmatmul.bf16.gmra.mxu0 %v561
    %v1010 = vpop.f32.mrf.mxu0
    %v1011 = vadd.f32 0.0, %v1010
    %v1012 = vpop.f32.mrf.mxu0
    %v1013 = vadd.f32 0.0, %v1012
    %1014 = vmatmul.bf16.gmra.mxu0 %v563
    %v1015 = vpop.f32.mrf.mxu0
    %v1016 = vadd.f32 0.0, %v1015
    %v1017 = vpop.f32.mrf.mxu0
    %v1018 = vadd.f32 0.0, %v1017
    %1019 = vdwg.mxu0
    %1020 = vmatpush.bf16.msra.mxu0 %v744
    %1021 = vmatpush.bf16.msra.mxu0 %v743
    %1022 = vmatpush.bf16.msra.mxu0 %v742
    %1023 = vmatpush.bf16.msra.mxu0 %v741
    %1024 = vmatpush.bf16.msra.mxu0 %v740
    %1025 = vmatpush.bf16.msra.mxu0 %v739
    %1026 = vmatpush.bf16.msra.mxu0 %v738
    %1027 = vmatpush.bf16.msra.mxu0 %v737
    %1028 = vmatmul.bf16.gmra.mxu0 %v466
    %v1029 = vpop.f32.mrf.mxu0
    %v1030 = vadd.f32 %v771, %v1029
    %v1031 = vpop.f32.mrf.mxu0
    %v1032 = vadd.f32 %v773, %v1031
    %1033 = vmatmul.bf16.gmra.mxu0 %v468
    %v1034 = vpop.f32.mrf.mxu0
    %v1035 = vadd.f32 %v776, %v1034
    %v1036 = vpop.f32.mrf.mxu0
    %v1037 = vadd.f32 %v778, %v1036
    %1038 = vmatmul.bf16.gmra.mxu0 %v470
    %v1039 = vpop.f32.mrf.mxu0
    %v1040 = vadd.f32 %v781, %v1039
    %v1041 = vpop.f32.mrf.mxu0
    %v1042 = vadd.f32 %v783, %v1041
    %1043 = vmatmul.bf16.gmra.mxu0 %v472
    %v1044 = vpop.f32.mrf.mxu0
    %v1045 = vadd.f32 %v786, %v1044
    %v1046 = vpop.f32.mrf.mxu0
    %v1047 = vadd.f32 %v788, %v1046
    %1048 = vmatmul.bf16.gmra.mxu0 %v474
    %v1049 = vpop.f32.mrf.mxu0
    %v1050 = vadd.f32 %v791, %v1049
    %v1051 = vpop.f32.mrf.mxu0
    %v1052 = vadd.f32 %v793, %v1051
    %1053 = vmatmul.bf16.gmra.mxu0 %v476
    %v1054 = vpop.f32.mrf.mxu0
    %v1055 = vadd.f32 %v796, %v1054
    %v1056 = vpop.f32.mrf.mxu0
    %v1057 = vadd.f32 %v798, %v1056
    %1058 = vmatmul.bf16.gmra.mxu0 %v478
    %v1059 = vpop.f32.mrf.mxu0
    %v1060 = vadd.f32 %v801, %v1059
    %v1061 = vpop.f32.mrf.mxu0
    %v1062 = vadd.f32 %v803, %v1061
    %1063 = vmatmul.bf16.gmra.mxu0 %v480
    %v1064 = vpop.f32.mrf.mxu0
    %v1065 = vadd.f32 %v806, %v1064
    %v1066 = vpop.f32.mrf.mxu0
    %v1067 = vadd.f32 %v808, %v1066
    %1068 = vmatmul.bf16.gmra.mxu0 %v482
    %v1069 = vpop.f32.mrf.mxu0
    %v1070 = vadd.f32 %v811, %v1069
    %v1071 = vpop.f32.mrf.mxu0
    %v1072 = vadd.f32 %v813, %v1071
    %1073 = vmatmul.bf16.gmra.mxu0 %v484
    %v1074 = vpop.f32.mrf.mxu0
    %v1075 = vadd.f32 %v816, %v1074
    %v1076 = vpop.f32.mrf.mxu0
    %v1077 = vadd.f32 %v818, %v1076
    %1078 = vmatmul.bf16.gmra.mxu0 %v486
    %v1079 = vpop.f32.mrf.mxu0
    %v1080 = vadd.f32 %v821, %v1079
    %v1081 = vpop.f32.mrf.mxu0
    %v1082 = vadd.f32 %v823, %v1081
    %1083 = vmatmul.bf16.gmra.mxu0 %v488
    %v1084 = vpop.f32.mrf.mxu0
    %v1085 = vadd.f32 %v826, %v1084
    %v1086 = vpop.f32.mrf.mxu0
    %v1087 = vadd.f32 %v828, %v1086
    %1088 = vmatmul.bf16.gmra.mxu0 %v490
    %v1089 = vpop.f32.mrf.mxu0
    %v1090 = vadd.f32 %v831, %v1089
    %v1091 = vpop.f32.mrf.mxu0
    %v1092 = vadd.f32 %v833, %v1091
    %1093 = vmatmul.bf16.gmra.mxu0 %v492
    %v1094 = vpop.f32.mrf.mxu0
    %v1095 = vadd.f32 %v836, %v1094
    %v1096 = vpop.f32.mrf.mxu0
    %v1097 = vadd.f32 %v838, %v1096
    %1098 = vmatmul.bf16.gmra.mxu0 %v494
    %v1099 = vpop.f32.mrf.mxu0
    %v1100 = vadd.f32 %v841, %v1099
    %v1101 = vpop.f32.mrf.mxu0
    %v1102 = vadd.f32 %v843, %v1101
    %1103 = vmatmul.bf16.gmra.mxu0 %v496
    %v1104 = vpop.f32.mrf.mxu0
    %v1105 = vadd.f32 %v846, %v1104
    %v1106 = vpop.f32.mrf.mxu0
    %v1107 = vadd.f32 %v848, %v1106
    %1108 = vmatmul.bf16.gmra.mxu0 %v498
    %v1109 = vpop.f32.mrf.mxu0
    %v1110 = vadd.f32 %v851, %v1109
    %v1111 = vpop.f32.mrf.mxu0
    %v1112 = vadd.f32 %v853, %v1111
    %1113 = vmatmul.bf16.gmra.mxu0 %v500
    %v1114 = vpop.f32.mrf.mxu0
    %v1115 = vadd.f32 %v856, %v1114
    %v1116 = vpop.f32.mrf.mxu0
    %v1117 = vadd.f32 %v858, %v1116
    %1118 = vmatmul.bf16.gmra.mxu0 %v502
    %v1119 = vpop.f32.mrf.mxu0
    %v1120 = vadd.f32 %v861, %v1119
    %v1121 = vpop.f32.mrf.mxu0
    %v1122 = vadd.f32 %v863, %v1121
    %1123 = vmatmul.bf16.gmra.mxu0 %v504
    %v1124 = vpop.f32.mrf.mxu0
    %v1125 = vadd.f32 %v866, %v1124
    %v1126 = vpop.f32.mrf.mxu0
    %v1127 = vadd.f32 %v868, %v1126
    %1128 = vmatmul.bf16.gmra.mxu0 %v506
    %v1129 = vpop.f32.mrf.mxu0
    %v1130 = vadd.f32 %v871, %v1129
    %v1131 = vpop.f32.mrf.mxu0
    %v1132 = vadd.f32 %v873, %v1131
    %1133 = vmatmul.bf16.gmra.mxu0 %v508
    %v1134 = vpop.f32.mrf.mxu0
    %v1135 = vadd.f32 %v876, %v1134
    %v1136 = vpop.f32.mrf.mxu0
    %v1137 = vadd.f32 %v878, %v1136
    %1138 = vmatmul.bf16.gmra.mxu0 %v510
    %v1139 = vpop.f32.mrf.mxu0
    %v1140 = vadd.f32 %v881, %v1139
    %v1141 = vpop.f32.mrf.mxu0
    %v1142 = vadd.f32 %v883, %v1141
    %1143 = vmatmul.bf16.gmra.mxu0 %v512
    %v1144 = vpop.f32.mrf.mxu0
    %v1145 = vadd.f32 %v886, %v1144
    %v1146 = vpop.f32.mrf.mxu0
    %v1147 = vadd.f32 %v888, %v1146
    %1148 = vmatmul.bf16.gmra.mxu0 %v514
    %v1149 = vpop.f32.mrf.mxu0
    %v1150 = vadd.f32 %v891, %v1149
    %v1151 = vpop.f32.mrf.mxu0
    %v1152 = vadd.f32 %v893, %v1151
    %1153 = vmatmul.bf16.gmra.mxu0 %v516
    %v1154 = vpop.f32.mrf.mxu0
    %v1155 = vadd.f32 %v896, %v1154
    %v1156 = vpop.f32.mrf.mxu0
    %v1157 = vadd.f32 %v898, %v1156
    %1158 = vmatmul.bf16.gmra.mxu0 %v518
    %v1159 = vpop.f32.mrf.mxu0
    %v1160 = vadd.f32 %v901, %v1159
    %v1161 = vpop.f32.mrf.mxu0
    %v1162 = vadd.f32 %v903, %v1161
    %1163 = vmatmul.bf16.gmra.mxu0 %v520
    %v1164 = vpop.f32.mrf.mxu0
    %v1165 = vadd.f32 %v906, %v1164
    %v1166 = vpop.f32.mrf.mxu0
    %v1167 = vadd.f32 %v908, %v1166
    %1168 = vmatmul.bf16.gmra.mxu0 %v522
    %v1169 = vpop.f32.mrf.mxu0
    %v1170 = vadd.f32 %v911, %v1169
    %v1171 = vpop.f32.mrf.mxu0
    %v1172 = vadd.f32 %v913, %v1171
    %1173 = vmatmul.bf16.gmra.mxu0 %v524
    %v1174 = vpop.f32.mrf.mxu0
    %v1175 = vadd.f32 %v916, %v1174
    %v1176 = vpop.f32.mrf.mxu0
    %v1177 = vadd.f32 %v918, %v1176
    %1178 = vmatmul.bf16.gmra.mxu0 %v526
    %v1179 = vpop.f32.mrf.mxu0
    %v1180 = vadd.f32 %v921, %v1179
    %v1181 = vpop.f32.mrf.mxu0
    %v1182 = vadd.f32 %v923, %v1181
    %1183 = vmatmul.bf16.gmra.mxu0 %v528
    %v1184 = vpop.f32.mrf.mxu0
    %v1185 = vadd.f32 %v926, %v1184
    %v1186 = vpop.f32.mrf.mxu0
    %v1187 = vadd.f32 %v928, %v1186
    %1188 = vmatmul.bf16.gmra.mxu0 %v530
    %v1189 = vpop.f32.mrf.mxu0
    %v1190 = vadd.f32 %v931, %v1189
    %v1191 = vpop.f32.mrf.mxu0
    %v1192 = vadd.f32 %v933, %v1191
    %1193 = vmatmul.bf16.gmra.mxu0 %v532
    %v1194 = vpop.f32.mrf.mxu0
    %v1195 = vadd.f32 %v936, %v1194
    %v1196 = vpop.f32.mrf.mxu0
    %v1197 = vadd.f32 %v938, %v1196
    %1198 = vmatmul.bf16.gmra.mxu0 %v534
    %v1199 = vpop.f32.mrf.mxu0
    %v1200 = vadd.f32 %v941, %v1199
    %v1201 = vpop.f32.mrf.mxu0
    %v1202 = vadd.f32 %v943, %v1201
    %1203 = vmatmul.bf16.gmra.mxu0 %v536
    %v1204 = vpop.f32.mrf.mxu0
    %v1205 = vadd.f32 %v946, %v1204
    %v1206 = vpop.f32.mrf.mxu0
    %v1207 = vadd.f32 %v948, %v1206
    %1208 = vmatmul.bf16.gmra.mxu0 %v538
    %v1209 = vpop.f32.mrf.mxu0
    %v1210 = vadd.f32 %v951, %v1209
    %v1211 = vpop.f32.mrf.mxu0
    %v1212 = vadd.f32 %v953, %v1211
    %1213 = vmatmul.bf16.gmra.mxu0 %v540
    %v1214 = vpop.f32.mrf.mxu0
    %v1215 = vadd.f32 %v956, %v1214
    %v1216 = vpop.f32.mrf.mxu0
    %v1217 = vadd.f32 %v958, %v1216
    %1218 = vmatmul.bf16.gmra.mxu0 %v542
    %v1219 = vpop.f32.mrf.mxu0
    %v1220 = vadd.f32 %v961, %v1219
    %v1221 = vpop.f32.mrf.mxu0
    %v1222 = vadd.f32 %v963, %v1221
    %1223 = vmatmul.bf16.gmra.mxu0 %v544
    %v1224 = vpop.f32.mrf.mxu0
    %v1225 = vadd.f32 %v966, %v1224
    %v1226 = vpop.f32.mrf.mxu0
    %v1227 = vadd.f32 %v968, %v1226
    %1228 = vmatmul.bf16.gmra.mxu0 %v546
    %v1229 = vpop.f32.mrf.mxu0
    %v1230 = vadd.f32 %v971, %v1229
    %v1231 = vpop.f32.mrf.mxu0
    %v1232 = vadd.f32 %v973, %v1231
    %1233 = vmatmul.bf16.gmra.mxu0 %v548
    %v1234 = vpop.f32.mrf.mxu0
    %v1235 = vadd.f32 %v976, %v1234
    %v1236 = vpop.f32.mrf.mxu0
    %v1237 = vadd.f32 %v978, %v1236
    %1238 = vmatmul.bf16.gmra.mxu0 %v550
    %v1239 = vpop.f32.mrf.mxu0
    %v1240 = vadd.f32 %v981, %v1239
    %v1241 = vpop.f32.mrf.mxu0
    %v1242 = vadd.f32 %v983, %v1241
    %1243 = vmatmul.bf16.gmra.mxu0 %v552
    %v1244 = vpop.f32.mrf.mxu0
    %v1245 = vadd.f32 %v986, %v1244
    %v1246 = vpop.f32.mrf.mxu0
    %v1247 = vadd.f32 %v988, %v1246
    %1248 = vmatmul.bf16.gmra.mxu0 %v554
    %v1249 = vpop.f32.mrf.mxu0
    %v1250 = vadd.f32 %v991, %v1249
    %v1251 = vpop.f32.mrf.mxu0
    %v1252 = vadd.f32 %v993, %v1251
    %1253 = vmatmul.bf16.gmra.mxu0 %v556
    %v1254 = vpop.f32.mrf.mxu0
    %v1255 = vadd.f32 %v996, %v1254
    %v1256 = vpop.f32.mrf.mxu0
    %v1257 = vadd.f32 %v998, %v1256
    %1258 = vmatmul.bf16.gmra.mxu0 %v558
    %v1259 = vpop.f32.mrf.mxu0
    %v1260 = vadd.f32 %v1001, %v1259
    %v1261 = vpop.f32.mrf.mxu0
    %v1262 = vadd.f32 %v1003, %v1261
    %1263 = vmatmul.bf16.gmra.mxu0 %v560
    %v1264 = vpop.f32.mrf.mxu0
    %v1265 = vadd.f32 %v1006, %v1264
    %v1266 = vpop.f32.mrf.mxu0
    %v1267 = vadd.f32 %v1008, %v1266
    %1268 = vmatmul.bf16.gmra.mxu0 %v562
    %v1269 = vpop.f32.mrf.mxu0
    %v1270 = vadd.f32 %v1011, %v1269
    %v1271 = vpop.f32.mrf.mxu0
    %v1272 = vadd.f32 %v1013, %v1271
    %1273 = vmatmul.bf16.gmra.mxu0 %v564
    %v1274 = vpop.f32.mrf.mxu0
    %v1275 = vadd.f32 %v1016, %v1274
    %v1276 = vpop.f32.mrf.mxu0
    %v1277 = vadd.f32 %v1018, %v1276
    %1278 = vdwg.mxu0
    %v1279 = vmax.f32 %v1030, %v1092
    %v1280 = vmax.f32 %v1032, %v1095
    %v1281 = vmax.f32 %v1035, %v1097
    %v1282 = vmax.f32 %v1037, %v1100
    %v1283 = vmax.f32 %v1040, %v1102
    %v1284 = vmax.f32 %v1042, %v1105
    %v1285 = vmax.f32 %v1045, %v1107
    %v1286 = vmax.f32 %v1047, %v1110
    %v1287 = vmax.f32 %v1050, %v1112
    %v1288 = vmax.f32 %v1052, %v1115
    %v1289 = vmax.f32 %v1055, %v1117
    %v1290 = vmax.f32 %v1057, %v1120
    %v1291 = vmax.f32 %v1060, %v1122
    %v1292 = vmax.f32 %v1062, %v1125
    %v1293 = vmax.f32 %v1065, %v1127
    %v1294 = vmax.f32 %v1067, %v1130
    %v1295 = vmax.f32 %v1070, %v1132
    %v1296 = vmax.f32 %v1072, %v1135
    %v1297 = vmax.f32 %v1075, %v1137
    %v1298 = vmax.f32 %v1077, %v1140
    %v1299 = vmax.f32 %v1080, %v1142
    %v1300 = vmax.f32 %v1082, %v1145
    %v1301 = vmax.f32 %v1085, %v1147
    %v1302 = vmax.f32 %v1087, %v1150
    %v1303 = vmax.f32 %v1090, %v1152
    %v1304 = vmax.f32 %v1155, %v1217
    %v1305 = vmax.f32 %v1157, %v1220
    %v1306 = vmax.f32 %v1160, %v1222
    %v1307 = vmax.f32 %v1162, %v1225
    %v1308 = vmax.f32 %v1165, %v1227
    %v1309 = vmax.f32 %v1167, %v1230
    %v1310 = vmax.f32 %v1170, %v1232
    %v1311 = vmax.f32 %v1172, %v1235
    %v1312 = vmax.f32 %v1175, %v1237
    %v1313 = vmax.f32 %v1177, %v1240
    %v1314 = vmax.f32 %v1180, %v1242
    %v1315 = vmax.f32 %v1182, %v1245
    %v1316 = vmax.f32 %v1185, %v1247
    %v1317 = vmax.f32 %v1187, %v1250
    %v1318 = vmax.f32 %v1190, %v1252
    %v1319 = vmax.f32 %v1192, %v1255
    %v1320 = vmax.f32 %v1195, %v1257
    %v1321 = vmax.f32 %v1197, %v1260
    %v1322 = vmax.f32 %v1200, %v1262
    %v1323 = vmax.f32 %v1202, %v1265
    %v1324 = vmax.f32 %v1205, %v1267
    %v1325 = vmax.f32 %v1207, %v1270
    %v1326 = vmax.f32 %v1210, %v1272
    %v1327 = vmax.f32 %v1212, %v1275
    %v1328 = vmax.f32 %v1215, %v1277
    %v1329 = vmax.f32 %v1279, %v1304
    %v1330 = vmax.f32 %v1280, %v1305
    %v1331 = vmax.f32 %v1281, %v1306
    %v1332 = vmax.f32 %v1282, %v1307
    %v1333 = vmax.f32 %v1283, %v1308
    %v1334 = vmax.f32 %v1284, %v1309
    %v1335 = vmax.f32 %v1285, %v1310
    %v1336 = vmax.f32 %v1286, %v1311
    %v1337 = vmax.f32 %v1287, %v1312
    %v1338 = vmax.f32 %v1288, %v1313
    %v1339 = vmax.f32 %v1289, %v1314
    %v1340 = vmax.f32 %v1290, %v1315
    %v1341 = vmax.f32 %v1291, %v1316
    %v1342 = vmax.f32 %v1292, %v1317
    %v1343 = vmax.f32 %v1293, %v1318
    %v1344 = vmax.f32 %v1294, %v1319
    %v1345 = vmax.f32 %v1295, %v1320
    %v1346 = vmax.f32 %v1296, %v1321
    %v1347 = vmax.f32 %v1297, %v1322
    %v1348 = vmax.f32 %v1298, %v1323
    %v1349 = vmax.f32 %v1299, %v1324
    %v1350 = vmax.f32 %v1300, %v1325
    %v1351 = vmax.f32 %v1301, %v1326
    %v1352 = vmax.f32 %v1302, %v1327
    %v1353 = vmax.f32 %v1303, %v1328
    %v1354 = vld [vmem:[%s2] sm:$0x1]
    %v1356 = vperm.slane %v1354, 0
    %v1358 = vadd.f32 %v1329, %v1356
    %v1359 = vadd.f32 %v1330, %v1356
    %v1360 = vadd.f32 %v1331, %v1356
    %v1361 = vadd.f32 %v1332, %v1356
    %v1362 = vadd.f32 %v1333, %v1356
    %v1363 = vadd.f32 %v1334, %v1356
    %v1364 = vadd.f32 %v1335, %v1356
    %v1365 = vadd.f32 %v1336, %v1356
    %v1366 = vadd.f32 %v1337, %v1356
    %v1367 = vadd.f32 %v1338, %v1356
    %v1368 = vadd.f32 %v1339, %v1356
    %v1369 = vadd.f32 %v1340, %v1356
    %v1370 = vadd.f32 %v1341, %v1356
    %v1371 = vadd.f32 %v1342, %v1356
    %v1372 = vadd.f32 %v1343, %v1356
    %v1373 = vadd.f32 %v1344, %v1356
    %v1374 = vadd.f32 %v1345, %v1356
    %v1375 = vadd.f32 %v1346, %v1356
    %v1376 = vadd.f32 %v1347, %v1356
    %v1377 = vadd.f32 %v1348, %v1356
    %v1378 = vadd.f32 %v1349, %v1356
    %v1379 = vadd.f32 %v1350, %v1356
    %v1380 = vadd.f32 %v1351, %v1356
    %v1381 = vadd.f32 %v1352, %v1356
    %v1382 = vadd.f32 %v1353, %v1356
    %v1383 = vmax.f32 %v1358, 0.0
    %v1384 = vmax.f32 %v1359, 0.0
    %v1385 = vmax.f32 %v1360, 0.0
    %v1386 = vmax.f32 %v1361, 0.0
    %v1387 = vmax.f32 %v1362, 0.0
    %v1388 = vmax.f32 %v1363, 0.0
    %v1389 = vmax.f32 %v1364, 0.0
    %v1390 = vmax.f32 %v1365, 0.0
    %v1391 = vmax.f32 %v1366, 0.0
    %v1392 = vmax.f32 %v1367, 0.0
    %v1393 = vmax.f32 %v1368, 0.0
    %v1394 = vmax.f32 %v1369, 0.0
    %v1395 = vmax.f32 %v1370, 0.0
    %v1396 = vmax.f32 %v1371, 0.0
    %v1397 = vmax.f32 %v1372, 0.0
    %v1398 = vmax.f32 %v1373, 0.0
    %v1399 = vmax.f32 %v1374, 0.0
    %v1400 = vmax.f32 %v1375, 0.0
    %v1401 = vmax.f32 %v1376, 0.0
    %v1402 = vmax.f32 %v1377, 0.0
    %v1403 = vmax.f32 %v1378, 0.0
    %v1404 = vmax.f32 %v1379, 0.0
    %v1405 = vmax.f32 %v1380, 0.0
    %v1406 = vmax.f32 %v1381, 0.0
    %v1407 = vmax.f32 %v1382, 0.0
    %v1408 = vpack.c.bf16 %v1383, %v1383
    %v1409 = vld [vmem:[%s3] sm:$0xf]
    %v1410 = vld [vmem:[%s3 + $0x4] sm:$0xf]
    %v1411 = vld [vmem:[%s3 + $0x8] sm:$0xf]
    %v1412 = vld [vmem:[%s3 + $0xc] sm:$0xf]
    %v1413 = vld [vmem:[%s3 + $0x10] sm:$0xf]
    %v1414 = vld [vmem:[%s3 + $0x14] sm:$0xf]
    %v1415 = vld [vmem:[%s3 + $0x18] sm:$0xf]
    %v1416 = vld [vmem:[%s3 + $0x1c] sm:$0xf]
    %v1417 = vld [vmem:[%s3 + $0x20] sm:$0xf]
    %v1418 = vld [vmem:[%s3 + $0x24] sm:$0xf]
    %v1419 = vld [vmem:[%s3 + $0x28] sm:$0xf]
    %v1420 = vld [vmem:[%s3 + $0x2c] sm:$0xf]
    %v1421 = vld [vmem:[%s3 + $0x30] sm:$0xf]
    %v1422 = vld [vmem:[%s3 + $0x34] sm:$0xf]
    %v1423 = vld [vmem:[%s3 + $0x38] sm:$0xf]
    %v1424 = vld [vmem:[%s3 + $0x3c] sm:$0xf]
    %v1425 = vpack.c.bf16 %v1384, %v1384
    %s1426 = scalar_lea.vmem %s3, 64
    %v1427 = vld [vmem:[%s1426] sm:$0xf]
    %v1428 = vld [vmem:[%s1426 + $0x4] sm:$0xf]
    %v1429 = vld [vmem:[%s1426 + $0x8] sm:$0xf]
    %v1430 = vld [vmem:[%s1426 + $0xc] sm:$0xf]
    %v1431 = vld [vmem:[%s1426 + $0x10] sm:$0xf]
    %v1432 = vld [vmem:[%s1426 + $0x14] sm:$0xf]
    %v1433 = vld [vmem:[%s1426 + $0x18] sm:$0xf]
    %v1434 = vld [vmem:[%s1426 + $0x1c] sm:$0xf]
    %v1435 = vld [vmem:[%s1426 + $0x20] sm:$0xf]
    %v1436 = vld [vmem:[%s1426 + $0x24] sm:$0xf]
    %v1437 = vld [vmem:[%s1426 + $0x28] sm:$0xf]
    %v1438 = vld [vmem:[%s1426 + $0x2c] sm:$0xf]
    %v1439 = vld [vmem:[%s1426 + $0x30] sm:$0xf]
    %v1440 = vld [vmem:[%s1426 + $0x34] sm:$0xf]
    %v1441 = vld [vmem:[%s1426 + $0x38] sm:$0xf]
    %v1442 = vld [vmem:[%s1426 + $0x3c] sm:$0xf]
    %v1459 = vunpack.c.l.b16 %v1427
    %v1460 = vunpack.c.l.b16 %v1428
    %v1461 = vunpack.c.l.b16 %v1429
    %v1462 = vunpack.c.l.b16 %v1430
    %v1463 = vunpack.c.l.b16 %v1431
    %v1464 = vunpack.c.l.b16 %v1432
    %v1465 = vunpack.c.l.b16 %v1433
    %v1466 = vunpack.c.l.b16 %v1434
    %v1467 = vunpack.c.l.b16 %v1435
    %v1468 = vunpack.c.l.b16 %v1436
    %v1469 = vunpack.c.l.b16 %v1437
    %v1470 = vunpack.c.l.b16 %v1438
    %v1471 = vunpack.c.l.b16 %v1439
    %v1472 = vunpack.c.l.b16 %v1440
    %v1473 = vunpack.c.l.b16 %v1441
    %v1474 = vunpack.c.l.b16 %v1442
    %v1475 = vpack.c.b16 %v1460, %v1459
    %v1476 = vpack.c.b16 %v1462, %v1461
    %v1477 = vpack.c.b16 %v1464, %v1463
    %v1478 = vpack.c.b16 %v1466, %v1465
    %v1479 = vpack.c.b16 %v1468, %v1467
    %v1480 = vpack.c.b16 %v1470, %v1469
    %v1481 = vpack.c.b16 %v1472, %v1471
    %v1482 = vpack.c.b16 %v1474, %v1473
    %1491 = vmatpush.bf16.msra.mxu0 %v1482
    %1492 = vmatpush.bf16.msra.mxu0 %v1481
    %1493 = vmatpush.bf16.msra.mxu0 %v1480
    %1494 = vmatpush.bf16.msra.mxu0 %v1479
    %1495 = vmatpush.bf16.msra.mxu0 %v1478
    %1496 = vmatpush.bf16.msra.mxu0 %v1477
    %1497 = vmatpush.bf16.msra.mxu0 %v1476
    %1498 = vmatpush.bf16.msra.mxu0 %v1475
    %1499 = vmatmul.bf16.gmra.mxu0 %v1425
    %v1500 = vpop.f32.mrf.mxu0
    %v1501 = vadd.f32 0.0, %v1500
    %v1502 = vpop.f32.mrf.mxu0
    %1503 = vdwg.mxu0
    %v1520 = vunpack.c.l.b16 %v1409
    %v1521 = vunpack.c.l.b16 %v1410
    %v1522 = vunpack.c.l.b16 %v1411
    %v1523 = vunpack.c.l.b16 %v1412
    %v1524 = vunpack.c.l.b16 %v1413
    %v1525 = vunpack.c.l.b16 %v1414
    %v1526 = vunpack.c.l.b16 %v1415
    %v1527 = vunpack.c.l.b16 %v1416
    %v1528 = vunpack.c.l.b16 %v1417
    %v1529 = vunpack.c.l.b16 %v1418
    %v1530 = vunpack.c.l.b16 %v1419
    %v1531 = vunpack.c.l.b16 %v1420
    %v1532 = vunpack.c.l.b16 %v1421
    %v1533 = vunpack.c.l.b16 %v1422
    %v1534 = vunpack.c.l.b16 %v1423
    %v1535 = vunpack.c.l.b16 %v1424
    %v1536 = vpack.c.b16 %v1521, %v1520
    %v1537 = vpack.c.b16 %v1523, %v1522
    %v1538 = vpack.c.b16 %v1525, %v1524
    %v1539 = vpack.c.b16 %v1527, %v1526
    %v1540 = vpack.c.b16 %v1529, %v1528
    %v1541 = vpack.c.b16 %v1531, %v1530
    %v1542 = vpack.c.b16 %v1533, %v1532
    %v1543 = vpack.c.b16 %v1535, %v1534
    %1552 = vmatpush.bf16.msra.mxu0 %v1543
    %1553 = vmatpush.bf16.msra.mxu0 %v1542
    %1554 = vmatpush.bf16.msra.mxu0 %v1541
    %1555 = vmatpush.bf16.msra.mxu0 %v1540
    %1556 = vmatpush.bf16.msra.mxu0 %v1539
    %1557 = vmatpush.bf16.msra.mxu0 %v1538
    %1558 = vmatpush.bf16.msra.mxu0 %v1537
    %1559 = vmatpush.bf16.msra.mxu0 %v1536
    %1560 = vmatmul.bf16.gmra.mxu0 %v1408
    %v1561 = vpop.f32.mrf.mxu0
    %v1562 = vadd.f32 %v1501, %v1561
    %v1563 = vpop.f32.mrf.mxu0
    %1564 = vdwg.mxu0
    %v1565 = vpack.c.bf16 %v1385, %v1385
    %s1566 = scalar_lea.vmem %s3, 128
    %v1567 = vld [vmem:[%s1566] sm:$0xf]
    %v1568 = vld [vmem:[%s1566 + $0x4] sm:$0xf]
    %v1569 = vld [vmem:[%s1566 + $0x8] sm:$0xf]
    %v1570 = vld [vmem:[%s1566 + $0xc] sm:$0xf]
    %v1571 = vld [vmem:[%s1566 + $0x10] sm:$0xf]
    %v1572 = vld [vmem:[%s1566 + $0x14] sm:$0xf]
    %v1573 = vld [vmem:[%s1566 + $0x18] sm:$0xf]
    %v1574 = vld [vmem:[%s1566 + $0x1c] sm:$0xf]
    %v1575 = vld [vmem:[%s1566 + $0x20] sm:$0xf]
    %v1576 = vld [vmem:[%s1566 + $0x24] sm:$0xf]
    %v1577 = vld [vmem:[%s1566 + $0x28] sm:$0xf]
    %v1578 = vld [vmem:[%s1566 + $0x2c] sm:$0xf]
    %v1579 = vld [vmem:[%s1566 + $0x30] sm:$0xf]
    %v1580 = vld [vmem:[%s1566 + $0x34] sm:$0xf]
    %v1581 = vld [vmem:[%s1566 + $0x38] sm:$0xf]
    %v1582 = vld [vmem:[%s1566 + $0x3c] sm:$0xf]
    %v1599 = vunpack.c.l.b16 %v1567
    %v1600 = vunpack.c.l.b16 %v1568
    %v1601 = vunpack.c.l.b16 %v1569
    %v1602 = vunpack.c.l.b16 %v1570
    %v1603 = vunpack.c.l.b16 %v1571
    %v1604 = vunpack.c.l.b16 %v1572
    %v1605 = vunpack.c.l.b16 %v1573
    %v1606 = vunpack.c.l.b16 %v1574
    %v1607 = vunpack.c.l.b16 %v1575
    %v1608 = vunpack.c.l.b16 %v1576
    %v1609 = vunpack.c.l.b16 %v1577
    %v1610 = vunpack.c.l.b16 %v1578
    %v1611 = vunpack.c.l.b16 %v1579
    %v1612 = vunpack.c.l.b16 %v1580
    %v1613 = vunpack.c.l.b16 %v1581
    %v1614 = vunpack.c.l.b16 %v1582
    %v1615 = vpack.c.b16 %v1600, %v1599
    %v1616 = vpack.c.b16 %v1602, %v1601
    %v1617 = vpack.c.b16 %v1604, %v1603
    %v1618 = vpack.c.b16 %v1606, %v1605
    %v1619 = vpack.c.b16 %v1608, %v1607
    %v1620 = vpack.c.b16 %v1610, %v1609
    %v1621 = vpack.c.b16 %v1612, %v1611
    %v1622 = vpack.c.b16 %v1614, %v1613
    %1631 = vmatpush.bf16.msra.mxu0 %v1622
    %1632 = vmatpush.bf16.msra.mxu0 %v1621
    %1633 = vmatpush.bf16.msra.mxu0 %v1620
    %1634 = vmatpush.bf16.msra.mxu0 %v1619
    %1635 = vmatpush.bf16.msra.mxu0 %v1618
    %1636 = vmatpush.bf16.msra.mxu0 %v1617
    %1637 = vmatpush.bf16.msra.mxu0 %v1616
    %1638 = vmatpush.bf16.msra.mxu0 %v1615
    %1639 = vmatmul.bf16.gmra.mxu0 %v1565
    %v1640 = vpop.f32.mrf.mxu0
    %v1641 = vadd.f32 0.0, %v1640
    %v1642 = vpop.f32.mrf.mxu0
    %1643 = vdwg.mxu0
    %v1644 = vadd.f32 %v1562, %v1641
    %v1645 = vpack.c.bf16 %v1386, %v1386
    %s1646 = scalar_lea.vmem %s3, 192
    %v1647 = vld [vmem:[%s1646] sm:$0xf]
    %v1648 = vld [vmem:[%s1646 + $0x4] sm:$0xf]
    %v1649 = vld [vmem:[%s1646 + $0x8] sm:$0xf]
    %v1650 = vld [vmem:[%s1646 + $0xc] sm:$0xf]
    %v1651 = vld [vmem:[%s1646 + $0x10] sm:$0xf]
    %v1652 = vld [vmem:[%s1646 + $0x14] sm:$0xf]
    %v1653 = vld [vmem:[%s1646 + $0x18] sm:$0xf]
    %v1654 = vld [vmem:[%s1646 + $0x1c] sm:$0xf]
    %v1655 = vld [vmem:[%s1646 + $0x20] sm:$0xf]
    %v1656 = vld [vmem:[%s1646 + $0x24] sm:$0xf]
    %v1657 = vld [vmem:[%s1646 + $0x28] sm:$0xf]
    %v1658 = vld [vmem:[%s1646 + $0x2c] sm:$0xf]
    %v1659 = vld [vmem:[%s1646 + $0x30] sm:$0xf]
    %v1660 = vld [vmem:[%s1646 + $0x34] sm:$0xf]
    %v1661 = vld [vmem:[%s1646 + $0x38] sm:$0xf]
    %v1662 = vld [vmem:[%s1646 + $0x3c] sm:$0xf]
    %v1679 = vunpack.c.l.b16 %v1647
    %v1680 = vunpack.c.l.b16 %v1648
    %v1681 = vunpack.c.l.b16 %v1649
    %v1682 = vunpack.c.l.b16 %v1650
    %v1683 = vunpack.c.l.b16 %v1651
    %v1684 = vunpack.c.l.b16 %v1652
    %v1685 = vunpack.c.l.b16 %v1653
    %v1686 = vunpack.c.l.b16 %v1654
    %v1687 = vunpack.c.l.b16 %v1655
    %v1688 = vunpack.c.l.b16 %v1656
    %v1689 = vunpack.c.l.b16 %v1657
    %v1690 = vunpack.c.l.b16 %v1658
    %v1691 = vunpack.c.l.b16 %v1659
    %v1692 = vunpack.c.l.b16 %v1660
    %v1693 = vunpack.c.l.b16 %v1661
    %v1694 = vunpack.c.l.b16 %v1662
    %v1695 = vpack.c.b16 %v1680, %v1679
    %v1696 = vpack.c.b16 %v1682, %v1681
    %v1697 = vpack.c.b16 %v1684, %v1683
    %v1698 = vpack.c.b16 %v1686, %v1685
    %v1699 = vpack.c.b16 %v1688, %v1687
    %v1700 = vpack.c.b16 %v1690, %v1689
    %v1701 = vpack.c.b16 %v1692, %v1691
    %v1702 = vpack.c.b16 %v1694, %v1693
    %1711 = vmatpush.bf16.msra.mxu0 %v1702
    %1712 = vmatpush.bf16.msra.mxu0 %v1701
    %1713 = vmatpush.bf16.msra.mxu0 %v1700
    %1714 = vmatpush.bf16.msra.mxu0 %v1699
    %1715 = vmatpush.bf16.msra.mxu0 %v1698
    %1716 = vmatpush.bf16.msra.mxu0 %v1697
    %1717 = vmatpush.bf16.msra.mxu0 %v1696
    %1718 = vmatpush.bf16.msra.mxu0 %v1695
    %1719 = vmatmul.bf16.gmra.mxu0 %v1645
    %v1720 = vpop.f32.mrf.mxu0
    %v1721 = vadd.f32 0.0, %v1720
    %v1722 = vpop.f32.mrf.mxu0
    %1723 = vdwg.mxu0
    %v1724 = vadd.f32 %v1644, %v1721
    %v1725 = vpack.c.bf16 %v1387, %v1387
    %s1726 = scalar_lea.vmem %s3, 256
    %v1727 = vld [vmem:[%s1726] sm:$0xf]
    %v1728 = vld [vmem:[%s1726 + $0x4] sm:$0xf]
    %v1729 = vld [vmem:[%s1726 + $0x8] sm:$0xf]
    %v1730 = vld [vmem:[%s1726 + $0xc] sm:$0xf]
    %v1731 = vld [vmem:[%s1726 + $0x10] sm:$0xf]
    %v1732 = vld [vmem:[%s1726 + $0x14] sm:$0xf]
    %v1733 = vld [vmem:[%s1726 + $0x18] sm:$0xf]
    %v1734 = vld [vmem:[%s1726 + $0x1c] sm:$0xf]
    %v1735 = vld [vmem:[%s1726 + $0x20] sm:$0xf]
    %v1736 = vld [vmem:[%s1726 + $0x24] sm:$0xf]
    %v1737 = vld [vmem:[%s1726 + $0x28] sm:$0xf]
    %v1738 = vld [vmem:[%s1726 + $0x2c] sm:$0xf]
    %v1739 = vld [vmem:[%s1726 + $0x30] sm:$0xf]
    %v1740 = vld [vmem:[%s1726 + $0x34] sm:$0xf]
    %v1741 = vld [vmem:[%s1726 + $0x38] sm:$0xf]
    %v1742 = vld [vmem:[%s1726 + $0x3c] sm:$0xf]
    %v1759 = vunpack.c.l.b16 %v1727
    %v1760 = vunpack.c.l.b16 %v1728
    %v1761 = vunpack.c.l.b16 %v1729
    %v1762 = vunpack.c.l.b16 %v1730
    %v1763 = vunpack.c.l.b16 %v1731
    %v1764 = vunpack.c.l.b16 %v1732
    %v1765 = vunpack.c.l.b16 %v1733
    %v1766 = vunpack.c.l.b16 %v1734
    %v1767 = vunpack.c.l.b16 %v1735
    %v1768 = vunpack.c.l.b16 %v1736
    %v1769 = vunpack.c.l.b16 %v1737
    %v1770 = vunpack.c.l.b16 %v1738
    %v1771 = vunpack.c.l.b16 %v1739
    %v1772 = vunpack.c.l.b16 %v1740
    %v1773 = vunpack.c.l.b16 %v1741
    %v1774 = vunpack.c.l.b16 %v1742
    %v1775 = vpack.c.b16 %v1760, %v1759
    %v1776 = vpack.c.b16 %v1762, %v1761
    %v1777 = vpack.c.b16 %v1764, %v1763
    %v1778 = vpack.c.b16 %v1766, %v1765
    %v1779 = vpack.c.b16 %v1768, %v1767
    %v1780 = vpack.c.b16 %v1770, %v1769
    %v1781 = vpack.c.b16 %v1772, %v1771
    %v1782 = vpack.c.b16 %v1774, %v1773
    %1791 = vmatpush.bf16.msra.mxu0 %v1782
    %1792 = vmatpush.bf16.msra.mxu0 %v1781
    %1793 = vmatpush.bf16.msra.mxu0 %v1780
    %1794 = vmatpush.bf16.msra.mxu0 %v1779
    %1795 = vmatpush.bf16.msra.mxu0 %v1778
    %1796 = vmatpush.bf16.msra.mxu0 %v1777
    %1797 = vmatpush.bf16.msra.mxu0 %v1776
    %1798 = vmatpush.bf16.msra.mxu0 %v1775
    %1799 = vmatmul.bf16.gmra.mxu0 %v1725
    %v1800 = vpop.f32.mrf.mxu0
    %v1801 = vadd.f32 0.0, %v1800
    %v1802 = vpop.f32.mrf.mxu0
    %1803 = vdwg.mxu0
    %v1804 = vadd.f32 %v1724, %v1801
    %v1805 = vpack.c.bf16 %v1388, %v1388
    %s1806 = scalar_lea.vmem %s3, 320
    %v1807 = vld [vmem:[%s1806] sm:$0xf]
    %v1808 = vld [vmem:[%s1806 + $0x4] sm:$0xf]
    %v1809 = vld [vmem:[%s1806 + $0x8] sm:$0xf]
    %v1810 = vld [vmem:[%s1806 + $0xc] sm:$0xf]
    %v1811 = vld [vmem:[%s1806 + $0x10] sm:$0xf]
    %v1812 = vld [vmem:[%s1806 + $0x14] sm:$0xf]
    %v1813 = vld [vmem:[%s1806 + $0x18] sm:$0xf]
    %v1814 = vld [vmem:[%s1806 + $0x1c] sm:$0xf]
    %v1815 = vld [vmem:[%s1806 + $0x20] sm:$0xf]
    %v1816 = vld [vmem:[%s1806 + $0x24] sm:$0xf]
    %v1817 = vld [vmem:[%s1806 + $0x28] sm:$0xf]
    %v1818 = vld [vmem:[%s1806 + $0x2c] sm:$0xf]
    %v1819 = vld [vmem:[%s1806 + $0x30] sm:$0xf]
    %v1820 = vld [vmem:[%s1806 + $0x34] sm:$0xf]
    %v1821 = vld [vmem:[%s1806 + $0x38] sm:$0xf]
    %v1822 = vld [vmem:[%s1806 + $0x3c] sm:$0xf]
    %v1839 = vunpack.c.l.b16 %v1807
    %v1840 = vunpack.c.l.b16 %v1808
    %v1841 = vunpack.c.l.b16 %v1809
    %v1842 = vunpack.c.l.b16 %v1810
    %v1843 = vunpack.c.l.b16 %v1811
    %v1844 = vunpack.c.l.b16 %v1812
    %v1845 = vunpack.c.l.b16 %v1813
    %v1846 = vunpack.c.l.b16 %v1814
    %v1847 = vunpack.c.l.b16 %v1815
    %v1848 = vunpack.c.l.b16 %v1816
    %v1849 = vunpack.c.l.b16 %v1817
    %v1850 = vunpack.c.l.b16 %v1818
    %v1851 = vunpack.c.l.b16 %v1819
    %v1852 = vunpack.c.l.b16 %v1820
    %v1853 = vunpack.c.l.b16 %v1821
    %v1854 = vunpack.c.l.b16 %v1822
    %v1855 = vpack.c.b16 %v1840, %v1839
    %v1856 = vpack.c.b16 %v1842, %v1841
    %v1857 = vpack.c.b16 %v1844, %v1843
    %v1858 = vpack.c.b16 %v1846, %v1845
    %v1859 = vpack.c.b16 %v1848, %v1847
    %v1860 = vpack.c.b16 %v1850, %v1849
    %v1861 = vpack.c.b16 %v1852, %v1851
    %v1862 = vpack.c.b16 %v1854, %v1853
    %1871 = vmatpush.bf16.msra.mxu0 %v1862
    %1872 = vmatpush.bf16.msra.mxu0 %v1861
    %1873 = vmatpush.bf16.msra.mxu0 %v1860
    %1874 = vmatpush.bf16.msra.mxu0 %v1859
    %1875 = vmatpush.bf16.msra.mxu0 %v1858
    %1876 = vmatpush.bf16.msra.mxu0 %v1857
    %1877 = vmatpush.bf16.msra.mxu0 %v1856
    %1878 = vmatpush.bf16.msra.mxu0 %v1855
    %1879 = vmatmul.bf16.gmra.mxu0 %v1805
    %v1880 = vpop.f32.mrf.mxu0
    %v1881 = vadd.f32 0.0, %v1880
    %v1882 = vpop.f32.mrf.mxu0
    %1883 = vdwg.mxu0
    %v1884 = vadd.f32 %v1804, %v1881
    %v1885 = vpack.c.bf16 %v1389, %v1389
    %s1886 = scalar_lea.vmem %s3, 384
    %v1887 = vld [vmem:[%s1886] sm:$0xf]
    %v1888 = vld [vmem:[%s1886 + $0x4] sm:$0xf]
    %v1889 = vld [vmem:[%s1886 + $0x8] sm:$0xf]
    %v1890 = vld [vmem:[%s1886 + $0xc] sm:$0xf]
    %v1891 = vld [vmem:[%s1886 + $0x10] sm:$0xf]
    %v1892 = vld [vmem:[%s1886 + $0x14] sm:$0xf]
    %v1893 = vld [vmem:[%s1886 + $0x18] sm:$0xf]
    %v1894 = vld [vmem:[%s1886 + $0x1c] sm:$0xf]
    %v1895 = vld [vmem:[%s1886 + $0x20] sm:$0xf]
    %v1896 = vld [vmem:[%s1886 + $0x24] sm:$0xf]
    %v1897 = vld [vmem:[%s1886 + $0x28] sm:$0xf]
    %v1898 = vld [vmem:[%s1886 + $0x2c] sm:$0xf]
    %v1899 = vld [vmem:[%s1886 + $0x30] sm:$0xf]
    %v1900 = vld [vmem:[%s1886 + $0x34] sm:$0xf]
    %v1901 = vld [vmem:[%s1886 + $0x38] sm:$0xf]
    %v1902 = vld [vmem:[%s1886 + $0x3c] sm:$0xf]
    %v1919 = vunpack.c.l.b16 %v1887
    %v1920 = vunpack.c.l.b16 %v1888
    %v1921 = vunpack.c.l.b16 %v1889
    %v1922 = vunpack.c.l.b16 %v1890
    %v1923 = vunpack.c.l.b16 %v1891
    %v1924 = vunpack.c.l.b16 %v1892
    %v1925 = vunpack.c.l.b16 %v1893
    %v1926 = vunpack.c.l.b16 %v1894
    %v1927 = vunpack.c.l.b16 %v1895
    %v1928 = vunpack.c.l.b16 %v1896
    %v1929 = vunpack.c.l.b16 %v1897
    %v1930 = vunpack.c.l.b16 %v1898
    %v1931 = vunpack.c.l.b16 %v1899
    %v1932 = vunpack.c.l.b16 %v1900
    %v1933 = vunpack.c.l.b16 %v1901
    %v1934 = vunpack.c.l.b16 %v1902
    %v1935 = vpack.c.b16 %v1920, %v1919
    %v1936 = vpack.c.b16 %v1922, %v1921
    %v1937 = vpack.c.b16 %v1924, %v1923
    %v1938 = vpack.c.b16 %v1926, %v1925
    %v1939 = vpack.c.b16 %v1928, %v1927
    %v1940 = vpack.c.b16 %v1930, %v1929
    %v1941 = vpack.c.b16 %v1932, %v1931
    %v1942 = vpack.c.b16 %v1934, %v1933
    %1951 = vmatpush.bf16.msra.mxu0 %v1942
    %1952 = vmatpush.bf16.msra.mxu0 %v1941
    %1953 = vmatpush.bf16.msra.mxu0 %v1940
    %1954 = vmatpush.bf16.msra.mxu0 %v1939
    %1955 = vmatpush.bf16.msra.mxu0 %v1938
    %1956 = vmatpush.bf16.msra.mxu0 %v1937
    %1957 = vmatpush.bf16.msra.mxu0 %v1936
    %1958 = vmatpush.bf16.msra.mxu0 %v1935
    %1959 = vmatmul.bf16.gmra.mxu0 %v1885
    %v1960 = vpop.f32.mrf.mxu0
    %v1961 = vadd.f32 0.0, %v1960
    %v1962 = vpop.f32.mrf.mxu0
    %1963 = vdwg.mxu0
    %v1964 = vadd.f32 %v1884, %v1961
    %v1965 = vpack.c.bf16 %v1390, %v1390
    %s1966 = scalar_lea.vmem %s3, 448
    %v1967 = vld [vmem:[%s1966] sm:$0xf]
    %v1968 = vld [vmem:[%s1966 + $0x4] sm:$0xf]
    %v1969 = vld [vmem:[%s1966 + $0x8] sm:$0xf]
    %v1970 = vld [vmem:[%s1966 + $0xc] sm:$0xf]
    %v1971 = vld [vmem:[%s1966 + $0x10] sm:$0xf]
    %v1972 = vld [vmem:[%s1966 + $0x14] sm:$0xf]
    %v1973 = vld [vmem:[%s1966 + $0x18] sm:$0xf]
    %v1974 = vld [vmem:[%s1966 + $0x1c] sm:$0xf]
    %v1975 = vld [vmem:[%s1966 + $0x20] sm:$0xf]
    %v1976 = vld [vmem:[%s1966 + $0x24] sm:$0xf]
    %v1977 = vld [vmem:[%s1966 + $0x28] sm:$0xf]
    %v1978 = vld [vmem:[%s1966 + $0x2c] sm:$0xf]
    %v1979 = vld [vmem:[%s1966 + $0x30] sm:$0xf]
    %v1980 = vld [vmem:[%s1966 + $0x34] sm:$0xf]
    %v1981 = vld [vmem:[%s1966 + $0x38] sm:$0xf]
    %v1982 = vld [vmem:[%s1966 + $0x3c] sm:$0xf]
    %v1999 = vunpack.c.l.b16 %v1967
    %v2000 = vunpack.c.l.b16 %v1968
    %v2001 = vunpack.c.l.b16 %v1969
    %v2002 = vunpack.c.l.b16 %v1970
    %v2003 = vunpack.c.l.b16 %v1971
    %v2004 = vunpack.c.l.b16 %v1972
    %v2005 = vunpack.c.l.b16 %v1973
    %v2006 = vunpack.c.l.b16 %v1974
    %v2007 = vunpack.c.l.b16 %v1975
    %v2008 = vunpack.c.l.b16 %v1976
    %v2009 = vunpack.c.l.b16 %v1977
    %v2010 = vunpack.c.l.b16 %v1978
    %v2011 = vunpack.c.l.b16 %v1979
    %v2012 = vunpack.c.l.b16 %v1980
    %v2013 = vunpack.c.l.b16 %v1981
    %v2014 = vunpack.c.l.b16 %v1982
    %v2015 = vpack.c.b16 %v2000, %v1999
    %v2016 = vpack.c.b16 %v2002, %v2001
    %v2017 = vpack.c.b16 %v2004, %v2003
    %v2018 = vpack.c.b16 %v2006, %v2005
    %v2019 = vpack.c.b16 %v2008, %v2007
    %v2020 = vpack.c.b16 %v2010, %v2009
    %v2021 = vpack.c.b16 %v2012, %v2011
    %v2022 = vpack.c.b16 %v2014, %v2013
    %2031 = vmatpush.bf16.msra.mxu0 %v2022
    %2032 = vmatpush.bf16.msra.mxu0 %v2021
    %2033 = vmatpush.bf16.msra.mxu0 %v2020
    %2034 = vmatpush.bf16.msra.mxu0 %v2019
    %2035 = vmatpush.bf16.msra.mxu0 %v2018
    %2036 = vmatpush.bf16.msra.mxu0 %v2017
    %2037 = vmatpush.bf16.msra.mxu0 %v2016
    %2038 = vmatpush.bf16.msra.mxu0 %v2015
    %2039 = vmatmul.bf16.gmra.mxu0 %v1965
    %v2040 = vpop.f32.mrf.mxu0
    %v2041 = vadd.f32 0.0, %v2040
    %v2042 = vpop.f32.mrf.mxu0
    %2043 = vdwg.mxu0
    %v2044 = vadd.f32 %v1964, %v2041
    %v2045 = vpack.c.bf16 %v1391, %v1391
    %s2046 = scalar_lea.vmem %s3, 512
    %v2047 = vld [vmem:[%s2046] sm:$0xf]
    %v2048 = vld [vmem:[%s2046 + $0x4] sm:$0xf]
    %v2049 = vld [vmem:[%s2046 + $0x8] sm:$0xf]
    %v2050 = vld [vmem:[%s2046 + $0xc] sm:$0xf]
    %v2051 = vld [vmem:[%s2046 + $0x10] sm:$0xf]
    %v2052 = vld [vmem:[%s2046 + $0x14] sm:$0xf]
    %v2053 = vld [vmem:[%s2046 + $0x18] sm:$0xf]
    %v2054 = vld [vmem:[%s2046 + $0x1c] sm:$0xf]
    %v2055 = vld [vmem:[%s2046 + $0x20] sm:$0xf]
    %v2056 = vld [vmem:[%s2046 + $0x24] sm:$0xf]
    %v2057 = vld [vmem:[%s2046 + $0x28] sm:$0xf]
    %v2058 = vld [vmem:[%s2046 + $0x2c] sm:$0xf]
    %v2059 = vld [vmem:[%s2046 + $0x30] sm:$0xf]
    %v2060 = vld [vmem:[%s2046 + $0x34] sm:$0xf]
    %v2061 = vld [vmem:[%s2046 + $0x38] sm:$0xf]
    %v2062 = vld [vmem:[%s2046 + $0x3c] sm:$0xf]
    %v2079 = vunpack.c.l.b16 %v2047
    %v2080 = vunpack.c.l.b16 %v2048
    %v2081 = vunpack.c.l.b16 %v2049
    %v2082 = vunpack.c.l.b16 %v2050
    %v2083 = vunpack.c.l.b16 %v2051
    %v2084 = vunpack.c.l.b16 %v2052
    %v2085 = vunpack.c.l.b16 %v2053
    %v2086 = vunpack.c.l.b16 %v2054
    %v2087 = vunpack.c.l.b16 %v2055
    %v2088 = vunpack.c.l.b16 %v2056
    %v2089 = vunpack.c.l.b16 %v2057
    %v2090 = vunpack.c.l.b16 %v2058
    %v2091 = vunpack.c.l.b16 %v2059
    %v2092 = vunpack.c.l.b16 %v2060
    %v2093 = vunpack.c.l.b16 %v2061
    %v2094 = vunpack.c.l.b16 %v2062
    %v2095 = vpack.c.b16 %v2080, %v2079
    %v2096 = vpack.c.b16 %v2082, %v2081
    %v2097 = vpack.c.b16 %v2084, %v2083
    %v2098 = vpack.c.b16 %v2086, %v2085
    %v2099 = vpack.c.b16 %v2088, %v2087
    %v2100 = vpack.c.b16 %v2090, %v2089
    %v2101 = vpack.c.b16 %v2092, %v2091
    %v2102 = vpack.c.b16 %v2094, %v2093
    %2111 = vmatpush.bf16.msra.mxu0 %v2102
    %2112 = vmatpush.bf16.msra.mxu0 %v2101
    %2113 = vmatpush.bf16.msra.mxu0 %v2100
    %2114 = vmatpush.bf16.msra.mxu0 %v2099
    %2115 = vmatpush.bf16.msra.mxu0 %v2098
    %2116 = vmatpush.bf16.msra.mxu0 %v2097
    %2117 = vmatpush.bf16.msra.mxu0 %v2096
    %2118 = vmatpush.bf16.msra.mxu0 %v2095
    %2119 = vmatmul.bf16.gmra.mxu0 %v2045
    %v2120 = vpop.f32.mrf.mxu0
    %v2121 = vadd.f32 0.0, %v2120
    %v2122 = vpop.f32.mrf.mxu0
    %2123 = vdwg.mxu0
    %v2124 = vadd.f32 %v2044, %v2121
    %v2125 = vpack.c.bf16 %v1392, %v1392
    %s2126 = scalar_lea.vmem %s3, 576
    %v2127 = vld [vmem:[%s2126] sm:$0xf]
    %v2128 = vld [vmem:[%s2126 + $0x4] sm:$0xf]
    %v2129 = vld [vmem:[%s2126 + $0x8] sm:$0xf]
    %v2130 = vld [vmem:[%s2126 + $0xc] sm:$0xf]
    %v2131 = vld [vmem:[%s2126 + $0x10] sm:$0xf]
    %v2132 = vld [vmem:[%s2126 + $0x14] sm:$0xf]
    %v2133 = vld [vmem:[%s2126 + $0x18] sm:$0xf]
    %v2134 = vld [vmem:[%s2126 + $0x1c] sm:$0xf]
    %v2135 = vld [vmem:[%s2126 + $0x20] sm:$0xf]
    %v2136 = vld [vmem:[%s2126 + $0x24] sm:$0xf]
    %v2137 = vld [vmem:[%s2126 + $0x28] sm:$0xf]
    %v2138 = vld [vmem:[%s2126 + $0x2c] sm:$0xf]
    %v2139 = vld [vmem:[%s2126 + $0x30] sm:$0xf]
    %v2140 = vld [vmem:[%s2126 + $0x34] sm:$0xf]
    %v2141 = vld [vmem:[%s2126 + $0x38] sm:$0xf]
    %v2142 = vld [vmem:[%s2126 + $0x3c] sm:$0xf]
    %v2159 = vunpack.c.l.b16 %v2127
    %v2160 = vunpack.c.l.b16 %v2128
    %v2161 = vunpack.c.l.b16 %v2129
    %v2162 = vunpack.c.l.b16 %v2130
    %v2163 = vunpack.c.l.b16 %v2131
    %v2164 = vunpack.c.l.b16 %v2132
    %v2165 = vunpack.c.l.b16 %v2133
    %v2166 = vunpack.c.l.b16 %v2134
    %v2167 = vunpack.c.l.b16 %v2135
    %v2168 = vunpack.c.l.b16 %v2136
    %v2169 = vunpack.c.l.b16 %v2137
    %v2170 = vunpack.c.l.b16 %v2138
    %v2171 = vunpack.c.l.b16 %v2139
    %v2172 = vunpack.c.l.b16 %v2140
    %v2173 = vunpack.c.l.b16 %v2141
    %v2174 = vunpack.c.l.b16 %v2142
    %v2175 = vpack.c.b16 %v2160, %v2159
    %v2176 = vpack.c.b16 %v2162, %v2161
    %v2177 = vpack.c.b16 %v2164, %v2163
    %v2178 = vpack.c.b16 %v2166, %v2165
    %v2179 = vpack.c.b16 %v2168, %v2167
    %v2180 = vpack.c.b16 %v2170, %v2169
    %v2181 = vpack.c.b16 %v2172, %v2171
    %v2182 = vpack.c.b16 %v2174, %v2173
    %2191 = vmatpush.bf16.msra.mxu0 %v2182
    %2192 = vmatpush.bf16.msra.mxu0 %v2181
    %2193 = vmatpush.bf16.msra.mxu0 %v2180
    %2194 = vmatpush.bf16.msra.mxu0 %v2179
    %2195 = vmatpush.bf16.msra.mxu0 %v2178
    %2196 = vmatpush.bf16.msra.mxu0 %v2177
    %2197 = vmatpush.bf16.msra.mxu0 %v2176
    %2198 = vmatpush.bf16.msra.mxu0 %v2175
    %2199 = vmatmul.bf16.gmra.mxu0 %v2125
    %v2200 = vpop.f32.mrf.mxu0
    %v2201 = vadd.f32 0.0, %v2200
    %v2202 = vpop.f32.mrf.mxu0
    %2203 = vdwg.mxu0
    %v2204 = vadd.f32 %v2124, %v2201
    %v2205 = vpack.c.bf16 %v1393, %v1393
    %s2206 = scalar_lea.vmem %s3, 640
    %v2207 = vld [vmem:[%s2206] sm:$0xf]
    %v2208 = vld [vmem:[%s2206 + $0x4] sm:$0xf]
    %v2209 = vld [vmem:[%s2206 + $0x8] sm:$0xf]
    %v2210 = vld [vmem:[%s2206 + $0xc] sm:$0xf]
    %v2211 = vld [vmem:[%s2206 + $0x10] sm:$0xf]
    %v2212 = vld [vmem:[%s2206 + $0x14] sm:$0xf]
    %v2213 = vld [vmem:[%s2206 + $0x18] sm:$0xf]
    %v2214 = vld [vmem:[%s2206 + $0x1c] sm:$0xf]
    %v2215 = vld [vmem:[%s2206 + $0x20] sm:$0xf]
    %v2216 = vld [vmem:[%s2206 + $0x24] sm:$0xf]
    %v2217 = vld [vmem:[%s2206 + $0x28] sm:$0xf]
    %v2218 = vld [vmem:[%s2206 + $0x2c] sm:$0xf]
    %v2219 = vld [vmem:[%s2206 + $0x30] sm:$0xf]
    %v2220 = vld [vmem:[%s2206 + $0x34] sm:$0xf]
    %v2221 = vld [vmem:[%s2206 + $0x38] sm:$0xf]
    %v2222 = vld [vmem:[%s2206 + $0x3c] sm:$0xf]
    %v2239 = vunpack.c.l.b16 %v2207
    %v2240 = vunpack.c.l.b16 %v2208
    %v2241 = vunpack.c.l.b16 %v2209
    %v2242 = vunpack.c.l.b16 %v2210
    %v2243 = vunpack.c.l.b16 %v2211
    %v2244 = vunpack.c.l.b16 %v2212
    %v2245 = vunpack.c.l.b16 %v2213
    %v2246 = vunpack.c.l.b16 %v2214
    %v2247 = vunpack.c.l.b16 %v2215
    %v2248 = vunpack.c.l.b16 %v2216
    %v2249 = vunpack.c.l.b16 %v2217
    %v2250 = vunpack.c.l.b16 %v2218
    %v2251 = vunpack.c.l.b16 %v2219
    %v2252 = vunpack.c.l.b16 %v2220
    %v2253 = vunpack.c.l.b16 %v2221
    %v2254 = vunpack.c.l.b16 %v2222
    %v2255 = vpack.c.b16 %v2240, %v2239
    %v2256 = vpack.c.b16 %v2242, %v2241
    %v2257 = vpack.c.b16 %v2244, %v2243
    %v2258 = vpack.c.b16 %v2246, %v2245
    %v2259 = vpack.c.b16 %v2248, %v2247
    %v2260 = vpack.c.b16 %v2250, %v2249
    %v2261 = vpack.c.b16 %v2252, %v2251
    %v2262 = vpack.c.b16 %v2254, %v2253
    %2271 = vmatpush.bf16.msra.mxu0 %v2262
    %2272 = vmatpush.bf16.msra.mxu0 %v2261
    %2273 = vmatpush.bf16.msra.mxu0 %v2260
    %2274 = vmatpush.bf16.msra.mxu0 %v2259
    %2275 = vmatpush.bf16.msra.mxu0 %v2258
    %2276 = vmatpush.bf16.msra.mxu0 %v2257
    %2277 = vmatpush.bf16.msra.mxu0 %v2256
    %2278 = vmatpush.bf16.msra.mxu0 %v2255
    %2279 = vmatmul.bf16.gmra.mxu0 %v2205
    %v2280 = vpop.f32.mrf.mxu0
    %v2281 = vadd.f32 0.0, %v2280
    %v2282 = vpop.f32.mrf.mxu0
    %2283 = vdwg.mxu0
    %v2284 = vadd.f32 %v2204, %v2281
    %v2285 = vpack.c.bf16 %v1394, %v1394
    %s2286 = scalar_lea.vmem %s3, 704
    %v2287 = vld [vmem:[%s2286] sm:$0xf]
    %v2288 = vld [vmem:[%s2286 + $0x4] sm:$0xf]
    %v2289 = vld [vmem:[%s2286 + $0x8] sm:$0xf]
    %v2290 = vld [vmem:[%s2286 + $0xc] sm:$0xf]
    %v2291 = vld [vmem:[%s2286 + $0x10] sm:$0xf]
    %v2292 = vld [vmem:[%s2286 + $0x14] sm:$0xf]
    %v2293 = vld [vmem:[%s2286 + $0x18] sm:$0xf]
    %v2294 = vld [vmem:[%s2286 + $0x1c] sm:$0xf]
    %v2295 = vld [vmem:[%s2286 + $0x20] sm:$0xf]
    %v2296 = vld [vmem:[%s2286 + $0x24] sm:$0xf]
    %v2297 = vld [vmem:[%s2286 + $0x28] sm:$0xf]
    %v2298 = vld [vmem:[%s2286 + $0x2c] sm:$0xf]
    %v2299 = vld [vmem:[%s2286 + $0x30] sm:$0xf]
    %v2300 = vld [vmem:[%s2286 + $0x34] sm:$0xf]
    %v2301 = vld [vmem:[%s2286 + $0x38] sm:$0xf]
    %v2302 = vld [vmem:[%s2286 + $0x3c] sm:$0xf]
    %v2319 = vunpack.c.l.b16 %v2287
    %v2320 = vunpack.c.l.b16 %v2288
    %v2321 = vunpack.c.l.b16 %v2289
    %v2322 = vunpack.c.l.b16 %v2290
    %v2323 = vunpack.c.l.b16 %v2291
    %v2324 = vunpack.c.l.b16 %v2292
    %v2325 = vunpack.c.l.b16 %v2293
    %v2326 = vunpack.c.l.b16 %v2294
    %v2327 = vunpack.c.l.b16 %v2295
    %v2328 = vunpack.c.l.b16 %v2296
    %v2329 = vunpack.c.l.b16 %v2297
    %v2330 = vunpack.c.l.b16 %v2298
    %v2331 = vunpack.c.l.b16 %v2299
    %v2332 = vunpack.c.l.b16 %v2300
    %v2333 = vunpack.c.l.b16 %v2301
    %v2334 = vunpack.c.l.b16 %v2302
    %v2335 = vpack.c.b16 %v2320, %v2319
    %v2336 = vpack.c.b16 %v2322, %v2321
    %v2337 = vpack.c.b16 %v2324, %v2323
    %v2338 = vpack.c.b16 %v2326, %v2325
    %v2339 = vpack.c.b16 %v2328, %v2327
    %v2340 = vpack.c.b16 %v2330, %v2329
    %v2341 = vpack.c.b16 %v2332, %v2331
    %v2342 = vpack.c.b16 %v2334, %v2333
    %2351 = vmatpush.bf16.msra.mxu0 %v2342
    %2352 = vmatpush.bf16.msra.mxu0 %v2341
    %2353 = vmatpush.bf16.msra.mxu0 %v2340
    %2354 = vmatpush.bf16.msra.mxu0 %v2339
    %2355 = vmatpush.bf16.msra.mxu0 %v2338
    %2356 = vmatpush.bf16.msra.mxu0 %v2337
    %2357 = vmatpush.bf16.msra.mxu0 %v2336
    %2358 = vmatpush.bf16.msra.mxu0 %v2335
    %2359 = vmatmul.bf16.gmra.mxu0 %v2285
    %v2360 = vpop.f32.mrf.mxu0
    %v2361 = vadd.f32 0.0, %v2360
    %v2362 = vpop.f32.mrf.mxu0
    %2363 = vdwg.mxu0
    %v2364 = vadd.f32 %v2284, %v2361
    %v2365 = vpack.c.bf16 %v1395, %v1395
    %s2366 = scalar_lea.vmem %s3, 768
    %v2367 = vld [vmem:[%s2366] sm:$0xf]
    %v2368 = vld [vmem:[%s2366 + $0x4] sm:$0xf]
    %v2369 = vld [vmem:[%s2366 + $0x8] sm:$0xf]
    %v2370 = vld [vmem:[%s2366 + $0xc] sm:$0xf]
    %v2371 = vld [vmem:[%s2366 + $0x10] sm:$0xf]
    %v2372 = vld [vmem:[%s2366 + $0x14] sm:$0xf]
    %v2373 = vld [vmem:[%s2366 + $0x18] sm:$0xf]
    %v2374 = vld [vmem:[%s2366 + $0x1c] sm:$0xf]
    %v2375 = vld [vmem:[%s2366 + $0x20] sm:$0xf]
    %v2376 = vld [vmem:[%s2366 + $0x24] sm:$0xf]
    %v2377 = vld [vmem:[%s2366 + $0x28] sm:$0xf]
    %v2378 = vld [vmem:[%s2366 + $0x2c] sm:$0xf]
    %v2379 = vld [vmem:[%s2366 + $0x30] sm:$0xf]
    %v2380 = vld [vmem:[%s2366 + $0x34] sm:$0xf]
    %v2381 = vld [vmem:[%s2366 + $0x38] sm:$0xf]
    %v2382 = vld [vmem:[%s2366 + $0x3c] sm:$0xf]
    %v2399 = vunpack.c.l.b16 %v2367
    %v2400 = vunpack.c.l.b16 %v2368
    %v2401 = vunpack.c.l.b16 %v2369
    %v2402 = vunpack.c.l.b16 %v2370
    %v2403 = vunpack.c.l.b16 %v2371
    %v2404 = vunpack.c.l.b16 %v2372
    %v2405 = vunpack.c.l.b16 %v2373
    %v2406 = vunpack.c.l.b16 %v2374
    %v2407 = vunpack.c.l.b16 %v2375
    %v2408 = vunpack.c.l.b16 %v2376
    %v2409 = vunpack.c.l.b16 %v2377
    %v2410 = vunpack.c.l.b16 %v2378
    %v2411 = vunpack.c.l.b16 %v2379
    %v2412 = vunpack.c.l.b16 %v2380
    %v2413 = vunpack.c.l.b16 %v2381
    %v2414 = vunpack.c.l.b16 %v2382
    %v2415 = vpack.c.b16 %v2400, %v2399
    %v2416 = vpack.c.b16 %v2402, %v2401
    %v2417 = vpack.c.b16 %v2404, %v2403
    %v2418 = vpack.c.b16 %v2406, %v2405
    %v2419 = vpack.c.b16 %v2408, %v2407
    %v2420 = vpack.c.b16 %v2410, %v2409
    %v2421 = vpack.c.b16 %v2412, %v2411
    %v2422 = vpack.c.b16 %v2414, %v2413
    %2431 = vmatpush.bf16.msra.mxu0 %v2422
    %2432 = vmatpush.bf16.msra.mxu0 %v2421
    %2433 = vmatpush.bf16.msra.mxu0 %v2420
    %2434 = vmatpush.bf16.msra.mxu0 %v2419
    %2435 = vmatpush.bf16.msra.mxu0 %v2418
    %2436 = vmatpush.bf16.msra.mxu0 %v2417
    %2437 = vmatpush.bf16.msra.mxu0 %v2416
    %2438 = vmatpush.bf16.msra.mxu0 %v2415
    %2439 = vmatmul.bf16.gmra.mxu0 %v2365
    %v2440 = vpop.f32.mrf.mxu0
    %v2441 = vadd.f32 0.0, %v2440
    %v2442 = vpop.f32.mrf.mxu0
    %2443 = vdwg.mxu0
    %v2444 = vadd.f32 %v2364, %v2441
    %v2445 = vpack.c.bf16 %v1396, %v1396
    %s2446 = scalar_lea.vmem %s3, 832
    %v2447 = vld [vmem:[%s2446] sm:$0xf]
    %v2448 = vld [vmem:[%s2446 + $0x4] sm:$0xf]
    %v2449 = vld [vmem:[%s2446 + $0x8] sm:$0xf]
    %v2450 = vld [vmem:[%s2446 + $0xc] sm:$0xf]
    %v2451 = vld [vmem:[%s2446 + $0x10] sm:$0xf]
    %v2452 = vld [vmem:[%s2446 + $0x14] sm:$0xf]
    %v2453 = vld [vmem:[%s2446 + $0x18] sm:$0xf]
    %v2454 = vld [vmem:[%s2446 + $0x1c] sm:$0xf]
    %v2455 = vld [vmem:[%s2446 + $0x20] sm:$0xf]
    %v2456 = vld [vmem:[%s2446 + $0x24] sm:$0xf]
    %v2457 = vld [vmem:[%s2446 + $0x28] sm:$0xf]
    %v2458 = vld [vmem:[%s2446 + $0x2c] sm:$0xf]
    %v2459 = vld [vmem:[%s2446 + $0x30] sm:$0xf]
    %v2460 = vld [vmem:[%s2446 + $0x34] sm:$0xf]
    %v2461 = vld [vmem:[%s2446 + $0x38] sm:$0xf]
    %v2462 = vld [vmem:[%s2446 + $0x3c] sm:$0xf]
    %v2479 = vunpack.c.l.b16 %v2447
    %v2480 = vunpack.c.l.b16 %v2448
    %v2481 = vunpack.c.l.b16 %v2449
    %v2482 = vunpack.c.l.b16 %v2450
    %v2483 = vunpack.c.l.b16 %v2451
    %v2484 = vunpack.c.l.b16 %v2452
    %v2485 = vunpack.c.l.b16 %v2453
    %v2486 = vunpack.c.l.b16 %v2454
    %v2487 = vunpack.c.l.b16 %v2455
    %v2488 = vunpack.c.l.b16 %v2456
    %v2489 = vunpack.c.l.b16 %v2457
    %v2490 = vunpack.c.l.b16 %v2458
    %v2491 = vunpack.c.l.b16 %v2459
    %v2492 = vunpack.c.l.b16 %v2460
    %v2493 = vunpack.c.l.b16 %v2461
    %v2494 = vunpack.c.l.b16 %v2462
    %v2495 = vpack.c.b16 %v2480, %v2479
    %v2496 = vpack.c.b16 %v2482, %v2481
    %v2497 = vpack.c.b16 %v2484, %v2483
    %v2498 = vpack.c.b16 %v2486, %v2485
    %v2499 = vpack.c.b16 %v2488, %v2487
    %v2500 = vpack.c.b16 %v2490, %v2489
    %v2501 = vpack.c.b16 %v2492, %v2491
    %v2502 = vpack.c.b16 %v2494, %v2493
    %2511 = vmatpush.bf16.msra.mxu0 %v2502
    %2512 = vmatpush.bf16.msra.mxu0 %v2501
    %2513 = vmatpush.bf16.msra.mxu0 %v2500
    %2514 = vmatpush.bf16.msra.mxu0 %v2499
    %2515 = vmatpush.bf16.msra.mxu0 %v2498
    %2516 = vmatpush.bf16.msra.mxu0 %v2497
    %2517 = vmatpush.bf16.msra.mxu0 %v2496
    %2518 = vmatpush.bf16.msra.mxu0 %v2495
    %2519 = vmatmul.bf16.gmra.mxu0 %v2445
    %v2520 = vpop.f32.mrf.mxu0
    %v2521 = vadd.f32 0.0, %v2520
    %v2522 = vpop.f32.mrf.mxu0
    %2523 = vdwg.mxu0
    %v2524 = vadd.f32 %v2444, %v2521
    %v2525 = vpack.c.bf16 %v1397, %v1397
    %s2526 = scalar_lea.vmem %s3, 896
    %v2527 = vld [vmem:[%s2526] sm:$0xf]
    %v2528 = vld [vmem:[%s2526 + $0x4] sm:$0xf]
    %v2529 = vld [vmem:[%s2526 + $0x8] sm:$0xf]
    %v2530 = vld [vmem:[%s2526 + $0xc] sm:$0xf]
    %v2531 = vld [vmem:[%s2526 + $0x10] sm:$0xf]
    %v2532 = vld [vmem:[%s2526 + $0x14] sm:$0xf]
    %v2533 = vld [vmem:[%s2526 + $0x18] sm:$0xf]
    %v2534 = vld [vmem:[%s2526 + $0x1c] sm:$0xf]
    %v2535 = vld [vmem:[%s2526 + $0x20] sm:$0xf]
    %v2536 = vld [vmem:[%s2526 + $0x24] sm:$0xf]
    %v2537 = vld [vmem:[%s2526 + $0x28] sm:$0xf]
    %v2538 = vld [vmem:[%s2526 + $0x2c] sm:$0xf]
    %v2539 = vld [vmem:[%s2526 + $0x30] sm:$0xf]
    %v2540 = vld [vmem:[%s2526 + $0x34] sm:$0xf]
    %v2541 = vld [vmem:[%s2526 + $0x38] sm:$0xf]
    %v2542 = vld [vmem:[%s2526 + $0x3c] sm:$0xf]
    %v2559 = vunpack.c.l.b16 %v2527
    %v2560 = vunpack.c.l.b16 %v2528
    %v2561 = vunpack.c.l.b16 %v2529
    %v2562 = vunpack.c.l.b16 %v2530
    %v2563 = vunpack.c.l.b16 %v2531
    %v2564 = vunpack.c.l.b16 %v2532
    %v2565 = vunpack.c.l.b16 %v2533
    %v2566 = vunpack.c.l.b16 %v2534
    %v2567 = vunpack.c.l.b16 %v2535
    %v2568 = vunpack.c.l.b16 %v2536
    %v2569 = vunpack.c.l.b16 %v2537
    %v2570 = vunpack.c.l.b16 %v2538
    %v2571 = vunpack.c.l.b16 %v2539
    %v2572 = vunpack.c.l.b16 %v2540
    %v2573 = vunpack.c.l.b16 %v2541
    %v2574 = vunpack.c.l.b16 %v2542
    %v2575 = vpack.c.b16 %v2560, %v2559
    %v2576 = vpack.c.b16 %v2562, %v2561
    %v2577 = vpack.c.b16 %v2564, %v2563
    %v2578 = vpack.c.b16 %v2566, %v2565
    %v2579 = vpack.c.b16 %v2568, %v2567
    %v2580 = vpack.c.b16 %v2570, %v2569
    %v2581 = vpack.c.b16 %v2572, %v2571
    %v2582 = vpack.c.b16 %v2574, %v2573
    %2591 = vmatpush.bf16.msra.mxu0 %v2582
    %2592 = vmatpush.bf16.msra.mxu0 %v2581
    %2593 = vmatpush.bf16.msra.mxu0 %v2580
    %2594 = vmatpush.bf16.msra.mxu0 %v2579
    %2595 = vmatpush.bf16.msra.mxu0 %v2578
    %2596 = vmatpush.bf16.msra.mxu0 %v2577
    %2597 = vmatpush.bf16.msra.mxu0 %v2576
    %2598 = vmatpush.bf16.msra.mxu0 %v2575
    %2599 = vmatmul.bf16.gmra.mxu0 %v2525
    %v2600 = vpop.f32.mrf.mxu0
    %v2601 = vadd.f32 0.0, %v2600
    %v2602 = vpop.f32.mrf.mxu0
    %2603 = vdwg.mxu0
    %v2604 = vadd.f32 %v2524, %v2601
    %v2605 = vpack.c.bf16 %v1398, %v1398
    %s2606 = scalar_lea.vmem %s3, 960
    %v2607 = vld [vmem:[%s2606] sm:$0xf]
    %v2608 = vld [vmem:[%s2606 + $0x4] sm:$0xf]
    %v2609 = vld [vmem:[%s2606 + $0x8] sm:$0xf]
    %v2610 = vld [vmem:[%s2606 + $0xc] sm:$0xf]
    %v2611 = vld [vmem:[%s2606 + $0x10] sm:$0xf]
    %v2612 = vld [vmem:[%s2606 + $0x14] sm:$0xf]
    %v2613 = vld [vmem:[%s2606 + $0x18] sm:$0xf]
    %v2614 = vld [vmem:[%s2606 + $0x1c] sm:$0xf]
    %v2615 = vld [vmem:[%s2606 + $0x20] sm:$0xf]
    %v2616 = vld [vmem:[%s2606 + $0x24] sm:$0xf]
    %v2617 = vld [vmem:[%s2606 + $0x28] sm:$0xf]
    %v2618 = vld [vmem:[%s2606 + $0x2c] sm:$0xf]
    %v2619 = vld [vmem:[%s2606 + $0x30] sm:$0xf]
    %v2620 = vld [vmem:[%s2606 + $0x34] sm:$0xf]
    %v2621 = vld [vmem:[%s2606 + $0x38] sm:$0xf]
    %v2622 = vld [vmem:[%s2606 + $0x3c] sm:$0xf]
    %v2639 = vunpack.c.l.b16 %v2607
    %v2640 = vunpack.c.l.b16 %v2608
    %v2641 = vunpack.c.l.b16 %v2609
    %v2642 = vunpack.c.l.b16 %v2610
    %v2643 = vunpack.c.l.b16 %v2611
    %v2644 = vunpack.c.l.b16 %v2612
    %v2645 = vunpack.c.l.b16 %v2613
    %v2646 = vunpack.c.l.b16 %v2614
    %v2647 = vunpack.c.l.b16 %v2615
    %v2648 = vunpack.c.l.b16 %v2616
    %v2649 = vunpack.c.l.b16 %v2617
    %v2650 = vunpack.c.l.b16 %v2618
    %v2651 = vunpack.c.l.b16 %v2619
    %v2652 = vunpack.c.l.b16 %v2620
    %v2653 = vunpack.c.l.b16 %v2621
    %v2654 = vunpack.c.l.b16 %v2622
    %v2655 = vpack.c.b16 %v2640, %v2639
    %v2656 = vpack.c.b16 %v2642, %v2641
    %v2657 = vpack.c.b16 %v2644, %v2643
    %v2658 = vpack.c.b16 %v2646, %v2645
    %v2659 = vpack.c.b16 %v2648, %v2647
    %v2660 = vpack.c.b16 %v2650, %v2649
    %v2661 = vpack.c.b16 %v2652, %v2651
    %v2662 = vpack.c.b16 %v2654, %v2653
    %2671 = vmatpush.bf16.msra.mxu0 %v2662
    %2672 = vmatpush.bf16.msra.mxu0 %v2661
    %2673 = vmatpush.bf16.msra.mxu0 %v2660
    %2674 = vmatpush.bf16.msra.mxu0 %v2659
    %2675 = vmatpush.bf16.msra.mxu0 %v2658
    %2676 = vmatpush.bf16.msra.mxu0 %v2657
    %2677 = vmatpush.bf16.msra.mxu0 %v2656
    %2678 = vmatpush.bf16.msra.mxu0 %v2655
    %2679 = vmatmul.bf16.gmra.mxu0 %v2605
    %v2680 = vpop.f32.mrf.mxu0
    %v2681 = vadd.f32 0.0, %v2680
    %v2682 = vpop.f32.mrf.mxu0
    %2683 = vdwg.mxu0
    %v2684 = vadd.f32 %v2604, %v2681
    %v2685 = vpack.c.bf16 %v1399, %v1399
    %s2686 = scalar_lea.vmem %s3, 1024
    %v2687 = vld [vmem:[%s2686] sm:$0xf]
    %v2688 = vld [vmem:[%s2686 + $0x4] sm:$0xf]
    %v2689 = vld [vmem:[%s2686 + $0x8] sm:$0xf]
    %v2690 = vld [vmem:[%s2686 + $0xc] sm:$0xf]
    %v2691 = vld [vmem:[%s2686 + $0x10] sm:$0xf]
    %v2692 = vld [vmem:[%s2686 + $0x14] sm:$0xf]
    %v2693 = vld [vmem:[%s2686 + $0x18] sm:$0xf]
    %v2694 = vld [vmem:[%s2686 + $0x1c] sm:$0xf]
    %v2695 = vld [vmem:[%s2686 + $0x20] sm:$0xf]
    %v2696 = vld [vmem:[%s2686 + $0x24] sm:$0xf]
    %v2697 = vld [vmem:[%s2686 + $0x28] sm:$0xf]
    %v2698 = vld [vmem:[%s2686 + $0x2c] sm:$0xf]
    %v2699 = vld [vmem:[%s2686 + $0x30] sm:$0xf]
    %v2700 = vld [vmem:[%s2686 + $0x34] sm:$0xf]
    %v2701 = vld [vmem:[%s2686 + $0x38] sm:$0xf]
    %v2702 = vld [vmem:[%s2686 + $0x3c] sm:$0xf]
    %v2719 = vunpack.c.l.b16 %v2687
    %v2720 = vunpack.c.l.b16 %v2688
    %v2721 = vunpack.c.l.b16 %v2689
    %v2722 = vunpack.c.l.b16 %v2690
    %v2723 = vunpack.c.l.b16 %v2691
    %v2724 = vunpack.c.l.b16 %v2692
    %v2725 = vunpack.c.l.b16 %v2693
    %v2726 = vunpack.c.l.b16 %v2694
    %v2727 = vunpack.c.l.b16 %v2695
    %v2728 = vunpack.c.l.b16 %v2696
    %v2729 = vunpack.c.l.b16 %v2697
    %v2730 = vunpack.c.l.b16 %v2698
    %v2731 = vunpack.c.l.b16 %v2699
    %v2732 = vunpack.c.l.b16 %v2700
    %v2733 = vunpack.c.l.b16 %v2701
    %v2734 = vunpack.c.l.b16 %v2702
    %v2735 = vpack.c.b16 %v2720, %v2719
    %v2736 = vpack.c.b16 %v2722, %v2721
    %v2737 = vpack.c.b16 %v2724, %v2723
    %v2738 = vpack.c.b16 %v2726, %v2725
    %v2739 = vpack.c.b16 %v2728, %v2727
    %v2740 = vpack.c.b16 %v2730, %v2729
    %v2741 = vpack.c.b16 %v2732, %v2731
    %v2742 = vpack.c.b16 %v2734, %v2733
    %2751 = vmatpush.bf16.msra.mxu0 %v2742
    %2752 = vmatpush.bf16.msra.mxu0 %v2741
    %2753 = vmatpush.bf16.msra.mxu0 %v2740
    %2754 = vmatpush.bf16.msra.mxu0 %v2739
    %2755 = vmatpush.bf16.msra.mxu0 %v2738
    %2756 = vmatpush.bf16.msra.mxu0 %v2737
    %2757 = vmatpush.bf16.msra.mxu0 %v2736
    %2758 = vmatpush.bf16.msra.mxu0 %v2735
    %2759 = vmatmul.bf16.gmra.mxu0 %v2685
    %v2760 = vpop.f32.mrf.mxu0
    %v2761 = vadd.f32 0.0, %v2760
    %v2762 = vpop.f32.mrf.mxu0
    %2763 = vdwg.mxu0
    %v2764 = vadd.f32 %v2684, %v2761
    %v2765 = vpack.c.bf16 %v1400, %v1400
    %s2766 = scalar_lea.vmem %s3, 1088
    %v2767 = vld [vmem:[%s2766] sm:$0xf]
    %v2768 = vld [vmem:[%s2766 + $0x4] sm:$0xf]
    %v2769 = vld [vmem:[%s2766 + $0x8] sm:$0xf]
    %v2770 = vld [vmem:[%s2766 + $0xc] sm:$0xf]
    %v2771 = vld [vmem:[%s2766 + $0x10] sm:$0xf]
    %v2772 = vld [vmem:[%s2766 + $0x14] sm:$0xf]
    %v2773 = vld [vmem:[%s2766 + $0x18] sm:$0xf]
    %v2774 = vld [vmem:[%s2766 + $0x1c] sm:$0xf]
    %v2775 = vld [vmem:[%s2766 + $0x20] sm:$0xf]
    %v2776 = vld [vmem:[%s2766 + $0x24] sm:$0xf]
    %v2777 = vld [vmem:[%s2766 + $0x28] sm:$0xf]
    %v2778 = vld [vmem:[%s2766 + $0x2c] sm:$0xf]
    %v2779 = vld [vmem:[%s2766 + $0x30] sm:$0xf]
    %v2780 = vld [vmem:[%s2766 + $0x34] sm:$0xf]
    %v2781 = vld [vmem:[%s2766 + $0x38] sm:$0xf]
    %v2782 = vld [vmem:[%s2766 + $0x3c] sm:$0xf]
    %v2799 = vunpack.c.l.b16 %v2767
    %v2800 = vunpack.c.l.b16 %v2768
    %v2801 = vunpack.c.l.b16 %v2769
    %v2802 = vunpack.c.l.b16 %v2770
    %v2803 = vunpack.c.l.b16 %v2771
    %v2804 = vunpack.c.l.b16 %v2772
    %v2805 = vunpack.c.l.b16 %v2773
    %v2806 = vunpack.c.l.b16 %v2774
    %v2807 = vunpack.c.l.b16 %v2775
    %v2808 = vunpack.c.l.b16 %v2776
    %v2809 = vunpack.c.l.b16 %v2777
    %v2810 = vunpack.c.l.b16 %v2778
    %v2811 = vunpack.c.l.b16 %v2779
    %v2812 = vunpack.c.l.b16 %v2780
    %v2813 = vunpack.c.l.b16 %v2781
    %v2814 = vunpack.c.l.b16 %v2782
    %v2815 = vpack.c.b16 %v2800, %v2799
    %v2816 = vpack.c.b16 %v2802, %v2801
    %v2817 = vpack.c.b16 %v2804, %v2803
    %v2818 = vpack.c.b16 %v2806, %v2805
    %v2819 = vpack.c.b16 %v2808, %v2807
    %v2820 = vpack.c.b16 %v2810, %v2809
    %v2821 = vpack.c.b16 %v2812, %v2811
    %v2822 = vpack.c.b16 %v2814, %v2813
    %2831 = vmatpush.bf16.msra.mxu0 %v2822
    %2832 = vmatpush.bf16.msra.mxu0 %v2821
    %2833 = vmatpush.bf16.msra.mxu0 %v2820
    %2834 = vmatpush.bf16.msra.mxu0 %v2819
    %2835 = vmatpush.bf16.msra.mxu0 %v2818
    %2836 = vmatpush.bf16.msra.mxu0 %v2817
    %2837 = vmatpush.bf16.msra.mxu0 %v2816
    %2838 = vmatpush.bf16.msra.mxu0 %v2815
    %2839 = vmatmul.bf16.gmra.mxu0 %v2765
    %v2840 = vpop.f32.mrf.mxu0
    %v2841 = vadd.f32 0.0, %v2840
    %v2842 = vpop.f32.mrf.mxu0
    %2843 = vdwg.mxu0
    %v2844 = vadd.f32 %v2764, %v2841
    %v2845 = vpack.c.bf16 %v1401, %v1401
    %s2846 = scalar_lea.vmem %s3, 1152
    %v2847 = vld [vmem:[%s2846] sm:$0xf]
    %v2848 = vld [vmem:[%s2846 + $0x4] sm:$0xf]
    %v2849 = vld [vmem:[%s2846 + $0x8] sm:$0xf]
    %v2850 = vld [vmem:[%s2846 + $0xc] sm:$0xf]
    %v2851 = vld [vmem:[%s2846 + $0x10] sm:$0xf]
    %v2852 = vld [vmem:[%s2846 + $0x14] sm:$0xf]
    %v2853 = vld [vmem:[%s2846 + $0x18] sm:$0xf]
    %v2854 = vld [vmem:[%s2846 + $0x1c] sm:$0xf]
    %v2855 = vld [vmem:[%s2846 + $0x20] sm:$0xf]
    %v2856 = vld [vmem:[%s2846 + $0x24] sm:$0xf]
    %v2857 = vld [vmem:[%s2846 + $0x28] sm:$0xf]
    %v2858 = vld [vmem:[%s2846 + $0x2c] sm:$0xf]
    %v2859 = vld [vmem:[%s2846 + $0x30] sm:$0xf]
    %v2860 = vld [vmem:[%s2846 + $0x34] sm:$0xf]
    %v2861 = vld [vmem:[%s2846 + $0x38] sm:$0xf]
    %v2862 = vld [vmem:[%s2846 + $0x3c] sm:$0xf]
    %v2879 = vunpack.c.l.b16 %v2847
    %v2880 = vunpack.c.l.b16 %v2848
    %v2881 = vunpack.c.l.b16 %v2849
    %v2882 = vunpack.c.l.b16 %v2850
    %v2883 = vunpack.c.l.b16 %v2851
    %v2884 = vunpack.c.l.b16 %v2852
    %v2885 = vunpack.c.l.b16 %v2853
    %v2886 = vunpack.c.l.b16 %v2854
    %v2887 = vunpack.c.l.b16 %v2855
    %v2888 = vunpack.c.l.b16 %v2856
    %v2889 = vunpack.c.l.b16 %v2857
    %v2890 = vunpack.c.l.b16 %v2858
    %v2891 = vunpack.c.l.b16 %v2859
    %v2892 = vunpack.c.l.b16 %v2860
    %v2893 = vunpack.c.l.b16 %v2861
    %v2894 = vunpack.c.l.b16 %v2862
    %v2895 = vpack.c.b16 %v2880, %v2879
    %v2896 = vpack.c.b16 %v2882, %v2881
    %v2897 = vpack.c.b16 %v2884, %v2883
    %v2898 = vpack.c.b16 %v2886, %v2885
    %v2899 = vpack.c.b16 %v2888, %v2887
    %v2900 = vpack.c.b16 %v2890, %v2889
    %v2901 = vpack.c.b16 %v2892, %v2891
    %v2902 = vpack.c.b16 %v2894, %v2893
    %2911 = vmatpush.bf16.msra.mxu0 %v2902
    %2912 = vmatpush.bf16.msra.mxu0 %v2901
    %2913 = vmatpush.bf16.msra.mxu0 %v2900
    %2914 = vmatpush.bf16.msra.mxu0 %v2899
    %2915 = vmatpush.bf16.msra.mxu0 %v2898
    %2916 = vmatpush.bf16.msra.mxu0 %v2897
    %2917 = vmatpush.bf16.msra.mxu0 %v2896
    %2918 = vmatpush.bf16.msra.mxu0 %v2895
    %2919 = vmatmul.bf16.gmra.mxu0 %v2845
    %v2920 = vpop.f32.mrf.mxu0
    %v2921 = vadd.f32 0.0, %v2920
    %v2922 = vpop.f32.mrf.mxu0
    %2923 = vdwg.mxu0
    %v2924 = vadd.f32 %v2844, %v2921
    %v2925 = vpack.c.bf16 %v1402, %v1402
    %s2926 = scalar_lea.vmem %s3, 1216
    %v2927 = vld [vmem:[%s2926] sm:$0xf]
    %v2928 = vld [vmem:[%s2926 + $0x4] sm:$0xf]
    %v2929 = vld [vmem:[%s2926 + $0x8] sm:$0xf]
    %v2930 = vld [vmem:[%s2926 + $0xc] sm:$0xf]
    %v2931 = vld [vmem:[%s2926 + $0x10] sm:$0xf]
    %v2932 = vld [vmem:[%s2926 + $0x14] sm:$0xf]
    %v2933 = vld [vmem:[%s2926 + $0x18] sm:$0xf]
    %v2934 = vld [vmem:[%s2926 + $0x1c] sm:$0xf]
    %v2935 = vld [vmem:[%s2926 + $0x20] sm:$0xf]
    %v2936 = vld [vmem:[%s2926 + $0x24] sm:$0xf]
    %v2937 = vld [vmem:[%s2926 + $0x28] sm:$0xf]
    %v2938 = vld [vmem:[%s2926 + $0x2c] sm:$0xf]
    %v2939 = vld [vmem:[%s2926 + $0x30] sm:$0xf]
    %v2940 = vld [vmem:[%s2926 + $0x34] sm:$0xf]
    %v2941 = vld [vmem:[%s2926 + $0x38] sm:$0xf]
    %v2942 = vld [vmem:[%s2926 + $0x3c] sm:$0xf]
    %v2959 = vunpack.c.l.b16 %v2927
    %v2960 = vunpack.c.l.b16 %v2928
    %v2961 = vunpack.c.l.b16 %v2929
    %v2962 = vunpack.c.l.b16 %v2930
    %v2963 = vunpack.c.l.b16 %v2931
    %v2964 = vunpack.c.l.b16 %v2932
    %v2965 = vunpack.c.l.b16 %v2933
    %v2966 = vunpack.c.l.b16 %v2934
    %v2967 = vunpack.c.l.b16 %v2935
    %v2968 = vunpack.c.l.b16 %v2936
    %v2969 = vunpack.c.l.b16 %v2937
    %v2970 = vunpack.c.l.b16 %v2938
    %v2971 = vunpack.c.l.b16 %v2939
    %v2972 = vunpack.c.l.b16 %v2940
    %v2973 = vunpack.c.l.b16 %v2941
    %v2974 = vunpack.c.l.b16 %v2942
    %v2975 = vpack.c.b16 %v2960, %v2959
    %v2976 = vpack.c.b16 %v2962, %v2961
    %v2977 = vpack.c.b16 %v2964, %v2963
    %v2978 = vpack.c.b16 %v2966, %v2965
    %v2979 = vpack.c.b16 %v2968, %v2967
    %v2980 = vpack.c.b16 %v2970, %v2969
    %v2981 = vpack.c.b16 %v2972, %v2971
    %v2982 = vpack.c.b16 %v2974, %v2973
    %2991 = vmatpush.bf16.msra.mxu0 %v2982
    %2992 = vmatpush.bf16.msra.mxu0 %v2981
    %2993 = vmatpush.bf16.msra.mxu0 %v2980
    %2994 = vmatpush.bf16.msra.mxu0 %v2979
    %2995 = vmatpush.bf16.msra.mxu0 %v2978
    %2996 = vmatpush.bf16.msra.mxu0 %v2977
    %2997 = vmatpush.bf16.msra.mxu0 %v2976
    %2998 = vmatpush.bf16.msra.mxu0 %v2975
    %2999 = vmatmul.bf16.gmra.mxu0 %v2925
    %v3000 = vpop.f32.mrf.mxu0
    %v3001 = vadd.f32 0.0, %v3000
    %v3002 = vpop.f32.mrf.mxu0
    %3003 = vdwg.mxu0
    %v3004 = vadd.f32 %v2924, %v3001
    %v3005 = vpack.c.bf16 %v1403, %v1403
    %s3006 = scalar_lea.vmem %s3, 1280
    %v3007 = vld [vmem:[%s3006] sm:$0xf]
    %v3008 = vld [vmem:[%s3006 + $0x4] sm:$0xf]
    %v3009 = vld [vmem:[%s3006 + $0x8] sm:$0xf]
    %v3010 = vld [vmem:[%s3006 + $0xc] sm:$0xf]
    %v3011 = vld [vmem:[%s3006 + $0x10] sm:$0xf]
    %v3012 = vld [vmem:[%s3006 + $0x14] sm:$0xf]
    %v3013 = vld [vmem:[%s3006 + $0x18] sm:$0xf]
    %v3014 = vld [vmem:[%s3006 + $0x1c] sm:$0xf]
    %v3015 = vld [vmem:[%s3006 + $0x20] sm:$0xf]
    %v3016 = vld [vmem:[%s3006 + $0x24] sm:$0xf]
    %v3017 = vld [vmem:[%s3006 + $0x28] sm:$0xf]
    %v3018 = vld [vmem:[%s3006 + $0x2c] sm:$0xf]
    %v3019 = vld [vmem:[%s3006 + $0x30] sm:$0xf]
    %v3020 = vld [vmem:[%s3006 + $0x34] sm:$0xf]
    %v3021 = vld [vmem:[%s3006 + $0x38] sm:$0xf]
    %v3022 = vld [vmem:[%s3006 + $0x3c] sm:$0xf]
    %v3039 = vunpack.c.l.b16 %v3007
    %v3040 = vunpack.c.l.b16 %v3008
    %v3041 = vunpack.c.l.b16 %v3009
    %v3042 = vunpack.c.l.b16 %v3010
    %v3043 = vunpack.c.l.b16 %v3011
    %v3044 = vunpack.c.l.b16 %v3012
    %v3045 = vunpack.c.l.b16 %v3013
    %v3046 = vunpack.c.l.b16 %v3014
    %v3047 = vunpack.c.l.b16 %v3015
    %v3048 = vunpack.c.l.b16 %v3016
    %v3049 = vunpack.c.l.b16 %v3017
    %v3050 = vunpack.c.l.b16 %v3018
    %v3051 = vunpack.c.l.b16 %v3019
    %v3052 = vunpack.c.l.b16 %v3020
    %v3053 = vunpack.c.l.b16 %v3021
    %v3054 = vunpack.c.l.b16 %v3022
    %v3055 = vpack.c.b16 %v3040, %v3039
    %v3056 = vpack.c.b16 %v3042, %v3041
    %v3057 = vpack.c.b16 %v3044, %v3043
    %v3058 = vpack.c.b16 %v3046, %v3045
    %v3059 = vpack.c.b16 %v3048, %v3047
    %v3060 = vpack.c.b16 %v3050, %v3049
    %v3061 = vpack.c.b16 %v3052, %v3051
    %v3062 = vpack.c.b16 %v3054, %v3053
    %3071 = vmatpush.bf16.msra.mxu0 %v3062
    %3072 = vmatpush.bf16.msra.mxu0 %v3061
    %3073 = vmatpush.bf16.msra.mxu0 %v3060
    %3074 = vmatpush.bf16.msra.mxu0 %v3059
    %3075 = vmatpush.bf16.msra.mxu0 %v3058
    %3076 = vmatpush.bf16.msra.mxu0 %v3057
    %3077 = vmatpush.bf16.msra.mxu0 %v3056
    %3078 = vmatpush.bf16.msra.mxu0 %v3055
    %3079 = vmatmul.bf16.gmra.mxu0 %v3005
    %v3080 = vpop.f32.mrf.mxu0
    %v3081 = vadd.f32 0.0, %v3080
    %v3082 = vpop.f32.mrf.mxu0
    %3083 = vdwg.mxu0
    %v3084 = vadd.f32 %v3004, %v3081
    %v3085 = vpack.c.bf16 %v1404, %v1404
    %s3086 = scalar_lea.vmem %s3, 1344
    %v3087 = vld [vmem:[%s3086] sm:$0xf]
    %v3088 = vld [vmem:[%s3086 + $0x4] sm:$0xf]
    %v3089 = vld [vmem:[%s3086 + $0x8] sm:$0xf]
    %v3090 = vld [vmem:[%s3086 + $0xc] sm:$0xf]
    %v3091 = vld [vmem:[%s3086 + $0x10] sm:$0xf]
    %v3092 = vld [vmem:[%s3086 + $0x14] sm:$0xf]
    %v3093 = vld [vmem:[%s3086 + $0x18] sm:$0xf]
    %v3094 = vld [vmem:[%s3086 + $0x1c] sm:$0xf]
    %v3095 = vld [vmem:[%s3086 + $0x20] sm:$0xf]
    %v3096 = vld [vmem:[%s3086 + $0x24] sm:$0xf]
    %v3097 = vld [vmem:[%s3086 + $0x28] sm:$0xf]
    %v3098 = vld [vmem:[%s3086 + $0x2c] sm:$0xf]
    %v3099 = vld [vmem:[%s3086 + $0x30] sm:$0xf]
    %v3100 = vld [vmem:[%s3086 + $0x34] sm:$0xf]
    %v3101 = vld [vmem:[%s3086 + $0x38] sm:$0xf]
    %v3102 = vld [vmem:[%s3086 + $0x3c] sm:$0xf]
    %v3119 = vunpack.c.l.b16 %v3087
    %v3120 = vunpack.c.l.b16 %v3088
    %v3121 = vunpack.c.l.b16 %v3089
    %v3122 = vunpack.c.l.b16 %v3090
    %v3123 = vunpack.c.l.b16 %v3091
    %v3124 = vunpack.c.l.b16 %v3092
    %v3125 = vunpack.c.l.b16 %v3093
    %v3126 = vunpack.c.l.b16 %v3094
    %v3127 = vunpack.c.l.b16 %v3095
    %v3128 = vunpack.c.l.b16 %v3096
    %v3129 = vunpack.c.l.b16 %v3097
    %v3130 = vunpack.c.l.b16 %v3098
    %v3131 = vunpack.c.l.b16 %v3099
    %v3132 = vunpack.c.l.b16 %v3100
    %v3133 = vunpack.c.l.b16 %v3101
    %v3134 = vunpack.c.l.b16 %v3102
    %v3135 = vpack.c.b16 %v3120, %v3119
    %v3136 = vpack.c.b16 %v3122, %v3121
    %v3137 = vpack.c.b16 %v3124, %v3123
    %v3138 = vpack.c.b16 %v3126, %v3125
    %v3139 = vpack.c.b16 %v3128, %v3127
    %v3140 = vpack.c.b16 %v3130, %v3129
    %v3141 = vpack.c.b16 %v3132, %v3131
    %v3142 = vpack.c.b16 %v3134, %v3133
    %3151 = vmatpush.bf16.msra.mxu0 %v3142
    %3152 = vmatpush.bf16.msra.mxu0 %v3141
    %3153 = vmatpush.bf16.msra.mxu0 %v3140
    %3154 = vmatpush.bf16.msra.mxu0 %v3139
    %3155 = vmatpush.bf16.msra.mxu0 %v3138
    %3156 = vmatpush.bf16.msra.mxu0 %v3137
    %3157 = vmatpush.bf16.msra.mxu0 %v3136
    %3158 = vmatpush.bf16.msra.mxu0 %v3135
    %3159 = vmatmul.bf16.gmra.mxu0 %v3085
    %v3160 = vpop.f32.mrf.mxu0
    %v3161 = vadd.f32 0.0, %v3160
    %v3162 = vpop.f32.mrf.mxu0
    %3163 = vdwg.mxu0
    %v3164 = vadd.f32 %v3084, %v3161
    %v3165 = vpack.c.bf16 %v1405, %v1405
    %s3166 = scalar_lea.vmem %s3, 1408
    %v3167 = vld [vmem:[%s3166] sm:$0xf]
    %v3168 = vld [vmem:[%s3166 + $0x4] sm:$0xf]
    %v3169 = vld [vmem:[%s3166 + $0x8] sm:$0xf]
    %v3170 = vld [vmem:[%s3166 + $0xc] sm:$0xf]
    %v3171 = vld [vmem:[%s3166 + $0x10] sm:$0xf]
    %v3172 = vld [vmem:[%s3166 + $0x14] sm:$0xf]
    %v3173 = vld [vmem:[%s3166 + $0x18] sm:$0xf]
    %v3174 = vld [vmem:[%s3166 + $0x1c] sm:$0xf]
    %v3175 = vld [vmem:[%s3166 + $0x20] sm:$0xf]
    %v3176 = vld [vmem:[%s3166 + $0x24] sm:$0xf]
    %v3177 = vld [vmem:[%s3166 + $0x28] sm:$0xf]
    %v3178 = vld [vmem:[%s3166 + $0x2c] sm:$0xf]
    %v3179 = vld [vmem:[%s3166 + $0x30] sm:$0xf]
    %v3180 = vld [vmem:[%s3166 + $0x34] sm:$0xf]
    %v3181 = vld [vmem:[%s3166 + $0x38] sm:$0xf]
    %v3182 = vld [vmem:[%s3166 + $0x3c] sm:$0xf]
    %v3199 = vunpack.c.l.b16 %v3167
    %v3200 = vunpack.c.l.b16 %v3168
    %v3201 = vunpack.c.l.b16 %v3169
    %v3202 = vunpack.c.l.b16 %v3170
    %v3203 = vunpack.c.l.b16 %v3171
    %v3204 = vunpack.c.l.b16 %v3172
    %v3205 = vunpack.c.l.b16 %v3173
    %v3206 = vunpack.c.l.b16 %v3174
    %v3207 = vunpack.c.l.b16 %v3175
    %v3208 = vunpack.c.l.b16 %v3176
    %v3209 = vunpack.c.l.b16 %v3177
    %v3210 = vunpack.c.l.b16 %v3178
    %v3211 = vunpack.c.l.b16 %v3179
    %v3212 = vunpack.c.l.b16 %v3180
    %v3213 = vunpack.c.l.b16 %v3181
    %v3214 = vunpack.c.l.b16 %v3182
    %v3215 = vpack.c.b16 %v3200, %v3199
    %v3216 = vpack.c.b16 %v3202, %v3201
    %v3217 = vpack.c.b16 %v3204, %v3203
    %v3218 = vpack.c.b16 %v3206, %v3205
    %v3219 = vpack.c.b16 %v3208, %v3207
    %v3220 = vpack.c.b16 %v3210, %v3209
    %v3221 = vpack.c.b16 %v3212, %v3211
    %v3222 = vpack.c.b16 %v3214, %v3213
    %3231 = vmatpush.bf16.msra.mxu0 %v3222
    %3232 = vmatpush.bf16.msra.mxu0 %v3221
    %3233 = vmatpush.bf16.msra.mxu0 %v3220
    %3234 = vmatpush.bf16.msra.mxu0 %v3219
    %3235 = vmatpush.bf16.msra.mxu0 %v3218
    %3236 = vmatpush.bf16.msra.mxu0 %v3217
    %3237 = vmatpush.bf16.msra.mxu0 %v3216
    %3238 = vmatpush.bf16.msra.mxu0 %v3215
    %3239 = vmatmul.bf16.gmra.mxu0 %v3165
    %v3240 = vpop.f32.mrf.mxu0
    %v3241 = vadd.f32 0.0, %v3240
    %v3242 = vpop.f32.mrf.mxu0
    %3243 = vdwg.mxu0
    %v3244 = vadd.f32 %v3164, %v3241
    %v3245 = vpack.c.bf16 %v1406, %v1406
    %s3246 = scalar_lea.vmem %s3, 1472
    %v3247 = vld [vmem:[%s3246] sm:$0xf]
    %v3248 = vld [vmem:[%s3246 + $0x4] sm:$0xf]
    %v3249 = vld [vmem:[%s3246 + $0x8] sm:$0xf]
    %v3250 = vld [vmem:[%s3246 + $0xc] sm:$0xf]
    %v3251 = vld [vmem:[%s3246 + $0x10] sm:$0xf]
    %v3252 = vld [vmem:[%s3246 + $0x14] sm:$0xf]
    %v3253 = vld [vmem:[%s3246 + $0x18] sm:$0xf]
    %v3254 = vld [vmem:[%s3246 + $0x1c] sm:$0xf]
    %v3255 = vld [vmem:[%s3246 + $0x20] sm:$0xf]
    %v3256 = vld [vmem:[%s3246 + $0x24] sm:$0xf]
    %v3257 = vld [vmem:[%s3246 + $0x28] sm:$0xf]
    %v3258 = vld [vmem:[%s3246 + $0x2c] sm:$0xf]
    %v3259 = vld [vmem:[%s3246 + $0x30] sm:$0xf]
    %v3260 = vld [vmem:[%s3246 + $0x34] sm:$0xf]
    %v3261 = vld [vmem:[%s3246 + $0x38] sm:$0xf]
    %v3262 = vld [vmem:[%s3246 + $0x3c] sm:$0xf]
    %v3279 = vunpack.c.l.b16 %v3247
    %v3280 = vunpack.c.l.b16 %v3248
    %v3281 = vunpack.c.l.b16 %v3249
    %v3282 = vunpack.c.l.b16 %v3250
    %v3283 = vunpack.c.l.b16 %v3251
    %v3284 = vunpack.c.l.b16 %v3252
    %v3285 = vunpack.c.l.b16 %v3253
    %v3286 = vunpack.c.l.b16 %v3254
    %v3287 = vunpack.c.l.b16 %v3255
    %v3288 = vunpack.c.l.b16 %v3256
    %v3289 = vunpack.c.l.b16 %v3257
    %v3290 = vunpack.c.l.b16 %v3258
    %v3291 = vunpack.c.l.b16 %v3259
    %v3292 = vunpack.c.l.b16 %v3260
    %v3293 = vunpack.c.l.b16 %v3261
    %v3294 = vunpack.c.l.b16 %v3262
    %v3295 = vpack.c.b16 %v3280, %v3279
    %v3296 = vpack.c.b16 %v3282, %v3281
    %v3297 = vpack.c.b16 %v3284, %v3283
    %v3298 = vpack.c.b16 %v3286, %v3285
    %v3299 = vpack.c.b16 %v3288, %v3287
    %v3300 = vpack.c.b16 %v3290, %v3289
    %v3301 = vpack.c.b16 %v3292, %v3291
    %v3302 = vpack.c.b16 %v3294, %v3293
    %3311 = vmatpush.bf16.msra.mxu0 %v3302
    %3312 = vmatpush.bf16.msra.mxu0 %v3301
    %3313 = vmatpush.bf16.msra.mxu0 %v3300
    %3314 = vmatpush.bf16.msra.mxu0 %v3299
    %3315 = vmatpush.bf16.msra.mxu0 %v3298
    %3316 = vmatpush.bf16.msra.mxu0 %v3297
    %3317 = vmatpush.bf16.msra.mxu0 %v3296
    %3318 = vmatpush.bf16.msra.mxu0 %v3295
    %3319 = vmatmul.bf16.gmra.mxu0 %v3245
    %v3320 = vpop.f32.mrf.mxu0
    %v3321 = vadd.f32 0.0, %v3320
    %v3322 = vpop.f32.mrf.mxu0
    %3323 = vdwg.mxu0
    %v3324 = vadd.f32 %v3244, %v3321
    %v3325 = vpack.c.bf16 %v1407, %v1407
    %s3326 = scalar_lea.vmem %s3, 1536
    %v3327 = vld [vmem:[%s3326] sm:$0xf]
    %v3328 = vld [vmem:[%s3326 + $0x4] sm:$0xf]
    %v3329 = vld [vmem:[%s3326 + $0x8] sm:$0xf]
    %v3330 = vld [vmem:[%s3326 + $0xc] sm:$0xf]
    %v3331 = vld [vmem:[%s3326 + $0x10] sm:$0xf]
    %v3332 = vld [vmem:[%s3326 + $0x14] sm:$0xf]
    %v3333 = vld [vmem:[%s3326 + $0x18] sm:$0xf]
    %v3334 = vld [vmem:[%s3326 + $0x1c] sm:$0xf]
    %v3335 = vld [vmem:[%s3326 + $0x20] sm:$0xf]
    %v3336 = vld [vmem:[%s3326 + $0x24] sm:$0xf]
    %v3337 = vld [vmem:[%s3326 + $0x28] sm:$0xf]
    %v3338 = vld [vmem:[%s3326 + $0x2c] sm:$0xf]
    %v3339 = vld [vmem:[%s3326 + $0x30] sm:$0xf]
    %v3340 = vld [vmem:[%s3326 + $0x34] sm:$0xf]
    %v3341 = vld [vmem:[%s3326 + $0x38] sm:$0xf]
    %v3342 = vld [vmem:[%s3326 + $0x3c] sm:$0xf]
    %v3359 = vunpack.c.l.b16 %v3327
    %v3360 = vunpack.c.l.b16 %v3328
    %v3361 = vunpack.c.l.b16 %v3329
    %v3362 = vunpack.c.l.b16 %v3330
    %v3363 = vunpack.c.l.b16 %v3331
    %v3364 = vunpack.c.l.b16 %v3332
    %v3365 = vunpack.c.l.b16 %v3333
    %v3366 = vunpack.c.l.b16 %v3334
    %v3367 = vunpack.c.l.b16 %v3335
    %v3368 = vunpack.c.l.b16 %v3336
    %v3369 = vunpack.c.l.b16 %v3337
    %v3370 = vunpack.c.l.b16 %v3338
    %v3371 = vunpack.c.l.b16 %v3339
    %v3372 = vunpack.c.l.b16 %v3340
    %v3373 = vunpack.c.l.b16 %v3341
    %v3374 = vunpack.c.l.b16 %v3342
    %v3375 = vpack.c.b16 %v3360, %v3359
    %v3376 = vpack.c.b16 %v3362, %v3361
    %v3377 = vpack.c.b16 %v3364, %v3363
    %v3378 = vpack.c.b16 %v3366, %v3365
    %v3379 = vpack.c.b16 %v3368, %v3367
    %v3380 = vpack.c.b16 %v3370, %v3369
    %v3381 = vpack.c.b16 %v3372, %v3371
    %v3382 = vpack.c.b16 %v3374, %v3373
    %3391 = vmatpush.bf16.msra.mxu0 %v3382
    %3392 = vmatpush.bf16.msra.mxu0 %v3381
    %3393 = vmatpush.bf16.msra.mxu0 %v3380
    %3394 = vmatpush.bf16.msra.mxu0 %v3379
    %3395 = vmatpush.bf16.msra.mxu0 %v3378
    %3396 = vmatpush.bf16.msra.mxu0 %v3377
    %3397 = vmatpush.bf16.msra.mxu0 %v3376
    %3398 = vmatpush.bf16.msra.mxu0 %v3375
    %3399 = vmatmul.bf16.gmra.mxu0 %v3325
    %v3400 = vpop.f32.mrf.mxu0
    %v3401 = vadd.f32 0.0, %v3400
    %v3402 = vpop.f32.mrf.mxu0
    %3403 = vdwg.mxu0
    %v3404 = vadd.f32 %v3324, %v3401
    %v3405 = vld [vmem:[%s4] sm:$0x1]
    %v3407 = vperm.slane %v3405, 0
    %v3409 = vadd.f32 %v3404, %v3407
    %v3410 = vmax.f32 %v3409, 0.0
    %v3411 = vpack.c.bf16 %v3410, %v3410
    %v3412 = vld [vmem:[%s5] sm:$0xf]
    %v3413 = vld [vmem:[%s5 + $0x4] sm:$0xf]
    %v3414 = vld [vmem:[%s5 + $0x8] sm:$0xf]
    %v3415 = vld [vmem:[%s5 + $0xc] sm:$0xf]
    %v3416 = vld [vmem:[%s5 + $0x10] sm:$0xf]
    %v3417 = vld [vmem:[%s5 + $0x14] sm:$0xf]
    %v3418 = vld [vmem:[%s5 + $0x18] sm:$0xf]
    %v3419 = vld [vmem:[%s5 + $0x1c] sm:$0xf]
    %v3420 = vld [vmem:[%s5 + $0x20] sm:$0xf]
    %v3421 = vld [vmem:[%s5 + $0x24] sm:$0xf]
    %v3422 = vld [vmem:[%s5 + $0x28] sm:$0xf]
    %v3423 = vld [vmem:[%s5 + $0x2c] sm:$0xf]
    %v3424 = vld [vmem:[%s5 + $0x30] sm:$0xf]
    %v3425 = vld [vmem:[%s5 + $0x34] sm:$0xf]
    %v3426 = vld [vmem:[%s5 + $0x38] sm:$0xf]
    %v3427 = vld [vmem:[%s5 + $0x3c] sm:$0xf]
    %v3428 = vld [vmem:[%s6] sm:$0x1]
    %v3430 = vperm.slane %v3428, 0
    %v3448 = vunpack.c.l.b16 %v3412
    %v3449 = vunpack.c.l.b16 %v3413
    %v3450 = vunpack.c.l.b16 %v3414
    %v3451 = vunpack.c.l.b16 %v3415
    %v3452 = vunpack.c.l.b16 %v3416
    %v3453 = vunpack.c.l.b16 %v3417
    %v3454 = vunpack.c.l.b16 %v3418
    %v3455 = vunpack.c.l.b16 %v3419
    %v3456 = vunpack.c.l.b16 %v3420
    %v3457 = vunpack.c.l.b16 %v3421
    %v3458 = vunpack.c.l.b16 %v3422
    %v3459 = vunpack.c.l.b16 %v3423
    %v3460 = vunpack.c.l.b16 %v3424
    %v3461 = vunpack.c.l.b16 %v3425
    %v3462 = vunpack.c.l.b16 %v3426
    %v3463 = vunpack.c.l.b16 %v3427
    %v3464 = vpack.c.b16 %v3449, %v3448
    %v3465 = vpack.c.b16 %v3451, %v3450
    %v3466 = vpack.c.b16 %v3453, %v3452
    %v3467 = vpack.c.b16 %v3455, %v3454
    %v3468 = vpack.c.b16 %v3457, %v3456
    %v3469 = vpack.c.b16 %v3459, %v3458
    %v3470 = vpack.c.b16 %v3461, %v3460
    %v3471 = vpack.c.b16 %v3463, %v3462
    %3480 = vmatpush.bf16.msra.mxu0 %v3471
    %3481 = vmatpush.bf16.msra.mxu0 %v3470
    %3482 = vmatpush.bf16.msra.mxu0 %v3469
    %3483 = vmatpush.bf16.msra.mxu0 %v3468
    %3484 = vmatpush.bf16.msra.mxu0 %v3467
    %3485 = vmatpush.bf16.msra.mxu0 %v3466
    %3486 = vmatpush.bf16.msra.mxu0 %v3465
    %3487 = vmatpush.bf16.msra.mxu0 %v3464
    %3488 = vmatmul.bf16.gmra.mxu0 %v3411
    %v3489 = vpop.f32.mrf.mxu0
    %v3490 = vadd.f32 %v3430, %v3489
    %v3491 = vpop.f32.mrf.mxu0
    %3492 = vdwg.mxu0
    %v3493 = vmax.f32 %v3490, 0.0
    %v3494 = vpack.c.bf16 %v3493, %v3493
    %v3495 = vld [vmem:[%s7] sm:$0xf]
    %v3496 = vld [vmem:[%s7 + $0x4] sm:$0xf]
    %v3497 = vld [vmem:[%s7 + $0x8] sm:$0xf]
    %v3498 = vld [vmem:[%s7 + $0xc] sm:$0xf]
    %v3499 = vld [vmem:[%s7 + $0x10] sm:$0xf]
    %v3500 = vld [vmem:[%s7 + $0x14] sm:$0xf]
    %v3501 = vld [vmem:[%s7 + $0x18] sm:$0xf]
    %v3502 = vld [vmem:[%s7 + $0x1c] sm:$0xf]
    %v3503 = vld [vmem:[%s7 + $0x20] sm:$0xf]
    %v3504 = vld [vmem:[%s7 + $0x24] sm:$0xf]
    %v3505 = vld [vmem:[%s7 + $0x28] sm:$0xf]
    %v3506 = vld [vmem:[%s7 + $0x2c] sm:$0xf]
    %v3507 = vld [vmem:[%s7 + $0x30] sm:$0xf]
    %v3508 = vld [vmem:[%s7 + $0x34] sm:$0xf]
    %v3509 = vld [vmem:[%s7 + $0x38] sm:$0xf]
    %v3510 = vld [vmem:[%s7 + $0x3c] sm:$0xf]
    %v3511 = vld [vmem:[%s8] sm:$0x1]
    %v3513 = vperm.slane %v3511, 0
    %v3531 = vunpack.c.l.b16 %v3495
    %v3532 = vunpack.c.l.b16 %v3496
    %v3533 = vunpack.c.l.b16 %v3497
    %v3534 = vunpack.c.l.b16 %v3498
    %v3535 = vunpack.c.l.b16 %v3499
    %v3536 = vunpack.c.l.b16 %v3500
    %v3537 = vunpack.c.l.b16 %v3501
    %v3538 = vunpack.c.l.b16 %v3502
    %v3539 = vunpack.c.l.b16 %v3503
    %v3540 = vunpack.c.l.b16 %v3504
    %v3541 = vunpack.c.l.b16 %v3505
    %v3542 = vunpack.c.l.b16 %v3506
    %v3543 = vunpack.c.l.b16 %v3507
    %v3544 = vunpack.c.l.b16 %v3508
    %v3545 = vunpack.c.l.b16 %v3509
    %v3546 = vunpack.c.l.b16 %v3510
    %v3547 = vpack.c.b16 %v3532, %v3531
    %v3548 = vpack.c.b16 %v3534, %v3533
    %v3549 = vpack.c.b16 %v3536, %v3535
    %v3550 = vpack.c.b16 %v3538, %v3537
    %v3551 = vpack.c.b16 %v3540, %v3539
    %v3552 = vpack.c.b16 %v3542, %v3541
    %v3553 = vpack.c.b16 %v3544, %v3543
    %v3554 = vpack.c.b16 %v3546, %v3545
    %3563 = vmatpush.bf16.msra.mxu0 %v3554
    %3564 = vmatpush.bf16.msra.mxu0 %v3553
    %3565 = vmatpush.bf16.msra.mxu0 %v3552
    %3566 = vmatpush.bf16.msra.mxu0 %v3551
    %3567 = vmatpush.bf16.msra.mxu0 %v3550
    %3568 = vmatpush.bf16.msra.mxu0 %v3549
    %3569 = vmatpush.bf16.msra.mxu0 %v3548
    %3570 = vmatpush.bf16.msra.mxu0 %v3547
    %3571 = vmatmul.bf16.gmra.mxu0 %v3494
    %v3572 = vpop.f32.mrf.mxu0
    %v3573 = vadd.f32 %v3513, %v3572
    %v3574 = vpop.f32.mrf.mxu0
    %3575 = vdwg.mxu0
    %vm3576 = vcmask 74752
    %3577 = vst.msk [vmem:[#allocation2] sm:$0x3] %vm3576, %v3573
    // Predicated region
    $region38: #{lenet_forward.3} parent=1 // pred_check
      _
    $region39: #{lenet_forward.3} parent=1 // pred_check_branch
      %3579 = sbr.rel (0) target = $region41
    $region40: #{lenet_forward.3} parent=1 // pred_region
      %3581 = vsyncadd [#allocation3], 0
      %s3583 = sshll.u32 [#allocation2], 4
      %s3584 = int_to_ptr.vmem [resolvable:$true] %s3583
      %s3585 = sshll.u32 %s9, 4
      %s3586 = int_to_ptr.hbm [resolvable:$true] %s3585
      %3588 = dma.vmem_to_hbm [thread:$0]  %s3584, 32, %s3586, [#allocation3]
    $region41: #{lenet_forward.3} parent=1 // pred_fallthru
      _
    // Predicated region
    $region42: #{lenet_forward.3} parent=1 // pred_check
      _
    $region43: #{lenet_forward.3} parent=1 // pred_check_branch
      %3590 = sbr.rel (0) target = $region45
    $region44: #{lenet_forward.3} parent=1 // pred_region
      %3592 = dma.done [#allocation3], 32
    $region45: #{lenet_forward.3} parent=1 // pred_fallthru
      _
    %3593 = vsyncpa [#allocation3], 1

</llo_original>
